<compile_context>
chip_gen: v6e
topology: v6e:2x2x1
jax: 0.10.0
libtpu: 0.0.40
codegen_flags: <defaults>
</compile_context>

<pallas_src>
import math
from functools import partial

import jax
import jax.numpy as jnp
from jax.experimental import pallas as pl
from jax.experimental.pallas import tpu as pltpu

# ----------------------------- model dims (small demo sizes) -----------------------------
B = 2          # batch
S_TGT = 8      # decoder sequence length
S_SRC = 16     # encoder sequence length
D_MODEL = 32   # hidden size
N_HEADS = 4    # attention heads
D_FF = 64      # feed-forward width
EPS = 1e-6
NEG_INF = -1e9


# ----------------------------- in-kernel helpers (traced into the kernel) ----------------
def _layernorm(x, alpha, bias):
    # matches tutorial LayerNormalization: unbiased std (ddof=1), eps added to std
    d = x.shape[-1]
    mean = jnp.mean(x, axis=-1, keepdims=True)
    var = jnp.sum((x - mean) ** 2, axis=-1, keepdims=True) / (d - 1)
    std = jnp.sqrt(var)
    return alpha * (x - mean) / (std + EPS) + bias


def _mha_heads(q, k, v, bias, wo, n_heads):
    # q: (Sq, D) with 1/sqrt(dk) already folded into the projection weight
    # k, v: (Sk, D); bias: (Sq, Sk) additive f32 mask (-1e9 where masked, 0 elsewhere)
    d = q.shape[-1]
    dk = d // n_heads
    heads = []
    for h in range(n_heads):
        lo = h * dk
        s = jax.lax.dot_general(q[:, lo:lo + dk], k[:, lo:lo + dk],
                                (((1,), (1,)), ((), ())),
                                preferred_element_type=jnp.float32)
        s = s + bias
        s = s - jnp.max(s, axis=-1, keepdims=True)
        p = jnp.exp(s)
        p = p * pl.reciprocal(jnp.sum(p, axis=-1, keepdims=True), approx=True)
        heads.append(jnp.dot(p, v[:, lo:lo + dk], preferred_element_type=jnp.float32))
    o = jnp.concatenate(heads, axis=-1)                 # (Sq, D) contiguous head buffer
    return jnp.dot(o, wo, preferred_element_type=jnp.float32)   # single Wo matmul


# ----------------------------- the fused Pallas kernel ------------------------------------
def decoder_stack_kernel(
        x_ref, enc_ref, tgt_bias_ref, src_bias_ref, ln_ref,
        w_qkv1, wo1, wq2, w_kv2, wo2,
        wff1, bff1, wff2, bff2,
        out_ref, *, n_heads, batch, s_tgt, s_src):
    x = x_ref[...].astype(jnp.float32)        # (B*S_tgt, D)
    enc = enc_ref[...].astype(jnp.float32)    # (B*S_src, D)
    tgt_bias = tgt_bias_ref[...]              # (S_tgt, S_tgt) f32 additive
    src_bias = src_bias_ref[...]              # (S_tgt, S_src) f32 additive
    ln = ln_ref[...]                          # (6, D): [ln1_a, ln1_b, ln2_a, ln2_b, ln3_a, ln3_b]
    d = x.shape[-1]

    # residual 1: self-attention (causal via additive tgt bias), pre-norm
    xn = _layernorm(x, ln[0:1], ln[1:2])
    attn = []
    for bi in range(batch):
        r = bi * s_tgt
        qkv = jnp.dot(xn[r:r + s_tgt], w_qkv1[...], preferred_element_type=jnp.float32)
        attn.append(_mha_heads(qkv[:, :d], qkv[:, d:2 * d], qkv[:, 2 * d:],
                               tgt_bias, wo1[...], n_heads))
    x = x + jnp.concatenate(attn, axis=0)

    # residual 2: cross-attention over (raw) encoder output, pre-norm on the query path only
    xn = _layernorm(x, ln[2:3], ln[3:4])
    attn = []
    for bi in range(batch):
        rq = bi * s_tgt
        rk = bi * s_src
        q = jnp.dot(xn[rq:rq + s_tgt], wq2[...], preferred_element_type=jnp.float32)
        kv = jnp.dot(enc[rk:rk + s_src], w_kv2[...], preferred_element_type=jnp.float32)
        attn.append(_mha_heads(q, kv[:, :d], kv[:, d:], src_bias, wo2[...], n_heads))
    x = x + jnp.concatenate(attn, axis=0)

    # residual 3: feed-forward block
    xn = _layernorm(x, ln[4:5], ln[5:6])
    h = jnp.dot(xn, wff1[...], preferred_element_type=jnp.float32) + bff1[...]
    h = jnp.maximum(h, 0.0)
    x = x + jnp.dot(h, wff2[...], preferred_element_type=jnp.float32) + bff2[...]

    out_ref[...] = x.astype(out_ref.dtype)


# ----------------------------- wrapper -----------------------------------------------------
def decoder_stack(x, enc, tgt_mask, src_mask, params):
    b, s_tgt, d = x.shape
    s_src = enc.shape[1]
    dk = d // N_HEADS
    scale = 1.0 / math.sqrt(dk)

    # one-time operand fusion / precompute outside the kernel (cheap XLA ops)
    w_qkv1 = jnp.concatenate(
        [params["wq1"] * scale, params["wk1"], params["wv1"]], axis=1)       # (D, 3D)
    wq2 = params["wq2"] * scale                                              # (D, D)
    w_kv2 = jnp.concatenate([params["wk2"], params["wv2"]], axis=1)          # (D, 2D)
    ln = jnp.concatenate([params["ln1_a"], params["ln1_b"],
                          params["ln2_a"], params["ln2_b"],
                          params["ln3_a"], params["ln3_b"]], axis=0)         # (6, D)
    tgt_bias = jnp.where(tgt_mask == 0, NEG_INF, 0.0).astype(jnp.float32)
    src_bias = jnp.where(src_mask == 0, NEG_INF, 0.0).astype(jnp.float32)

    # flatten batch into rows: LN/FFN run over all B*S rows at once; single store for output
    x2 = x.reshape(b * s_tgt, d)
    enc2 = enc.reshape(b * s_src, d)

    operands = [x2, enc2, tgt_bias, src_bias, ln,
                w_qkv1, params["wo1"], wq2, w_kv2, params["wo2"],
                params["wff1"], params["bff1"], params["wff2"], params["bff2"]]

    def full_spec(shape):
        nd = len(shape)
        return pl.BlockSpec(shape, lambda i, _nd=nd: (0,) * _nd)

    out2 = pl.pallas_call(
        partial(decoder_stack_kernel, n_heads=N_HEADS, batch=b, s_tgt=s_tgt, s_src=s_src),
        out_shape=jax.ShapeDtypeStruct((b * s_tgt, d), x.dtype),
        grid=(1,),  # single grid step: amortizes per-step overhead + operand pipeline setup
        in_specs=[full_spec(a.shape) for a in operands],
        out_specs=full_spec((b * s_tgt, d)),
        compiler_params=pltpu.CompilerParams(dimension_semantics=("arbitrary",)),
    )(*operands)
    return out2.reshape(b, s_tgt, d)


# ----------------------------- pure-JAX reference (for verification) -----------------------
def reference(x, enc, tgt_mask, src_mask, p):
    def ln(x, a, b):
        d = x.shape[-1]
        m = jnp.mean(x, axis=-1, keepdims=True)
        v = jnp.sum((x - m) ** 2, axis=-1, keepdims=True) / (d - 1)
        return a * (x - m) / (jnp.sqrt(v) + EPS) + b

    def mha(xq, xkv, mask, wq, wk, wv, wo):
        bsz, sq, d = xq.shape
        sk = xkv.shape[1]
        dk = d // N_HEADS
        q = (xq @ wq).reshape(bsz, sq, N_HEADS, dk).transpose(0, 2, 1, 3)
        k = (xkv @ wk).reshape(bsz, sk, N_HEADS, dk).transpose(0, 2, 1, 3)
        v = (xkv @ wv).reshape(bsz, sk, N_HEADS, dk).transpose(0, 2, 1, 3)
        scores = jnp.einsum("bhqd,bhkd->bhqk", q, k) / math.sqrt(dk)
        scores = jnp.where(mask[None, None] == 0, -1e9, scores)
        attn = jax.nn.softmax(scores, axis=-1)
        o = jnp.einsum("bhqk,bhkd->bhqd", attn, v).transpose(0, 2, 1, 3).reshape(bsz, sq, d)
        return o @ wo

    xn = ln(x, p["ln1_a"], p["ln1_b"])
    x = x + mha(xn, xn, tgt_mask, p["wq1"], p["wk1"], p["wv1"], p["wo1"])
    xn = ln(x, p["ln2_a"], p["ln2_b"])
    x = x + mha(xn, enc, src_mask, p["wq2"], p["wk2"], p["wv2"], p["wo2"])
    xn = ln(x, p["ln3_a"], p["ln3_b"])
    h = jnp.maximum(xn @ p["wff1"] + p["bff1"], 0.0)
    return x + h @ p["wff2"] + p["bff2"]


# ----------------------------- main ---------------------------------------------------------
if __name__ == "__main__":
    key = jax.random.PRNGKey(0)
    keys = jax.random.split(key, 16)

    def w(k, shape, scale=0.02):
        return (scale * jax.random.normal(k, shape)).astype(jnp.float32)

    params = {
        # self-attention projections (stored as (in, out))
        "wq1": w(keys[0], (D_MODEL, D_MODEL)), "wk1": w(keys[1], (D_MODEL, D_MODEL)),
        "wv1": w(keys[2], (D_MODEL, D_MODEL)), "wo1": w(keys[3], (D_MODEL, D_MODEL)),
        "ln1_a": jnp.ones((1, D_MODEL), jnp.float32), "ln1_b": jnp.zeros((1, D_MODEL), jnp.float32),
        # cross-attention projections
        "wq2": w(keys[4], (D_MODEL, D_MODEL)), "wk2": w(keys[5], (D_MODEL, D_MODEL)),
        "wv2": w(keys[6], (D_MODEL, D_MODEL)), "wo2": w(keys[7], (D_MODEL, D_MODEL)),
        "ln2_a": jnp.ones((1, D_MODEL), jnp.float32), "ln2_b": jnp.zeros((1, D_MODEL), jnp.float32),
        # feed-forward
        "wff1": w(keys[8], (D_MODEL, D_FF)), "bff1": w(keys[9], (1, D_FF)),
        "wff2": w(keys[10], (D_FF, D_MODEL)), "bff2": w(keys[11], (1, D_MODEL)),
        "ln3_a": jnp.ones((1, D_MODEL), jnp.float32), "ln3_b": jnp.zeros((1, D_MODEL), jnp.float32),
    }

    x = jax.random.normal(keys[12], (B, S_TGT, D_MODEL), jnp.float32)
    enc = jax.random.normal(keys[13], (B, S_SRC, D_MODEL), jnp.float32)
    # causal target mask (S_tgt, S_tgt), full source mask (S_tgt, S_src); 0 => masked
    tgt_mask = jnp.tril(jnp.ones((S_TGT, S_TGT), jnp.int32))
    src_mask = jnp.ones((S_TGT, S_SRC), jnp.int32)

    out = decoder_stack(x, enc, tgt_mask, src_mask, params)
    out = jax.block_until_ready(out)

    ref = reference(x, enc, tgt_mask, src_mask, params)
    assert out.shape == (B, S_TGT, D_MODEL)
    # slightly looser tolerance: softmax denom uses the EUP approx reciprocal
    assert jnp.allclose(out, ref, atol=1e-3, rtol=1e-3), "mismatch vs pure-JAX reference"

    print("KERNEL_OK")
</pallas_src>

<mosaic_0001>
module attributes {stable_mosaic.version = 11 : i64} {
  func.func @decoder_stack_kernel(%arg0: i32, %arg1: memref<16x32xf32, #tpu.memory_space<vmem>>, %arg2: memref<32x32xf32, #tpu.memory_space<vmem>>, %arg3: memref<8x8xf32, #tpu.memory_space<vmem>>, %arg4: memref<8x16xf32, #tpu.memory_space<vmem>>, %arg5: memref<6x32xf32, #tpu.memory_space<vmem>>, %arg6: memref<32x96xf32, #tpu.memory_space<vmem>>, %arg7: memref<32x32xf32, #tpu.memory_space<vmem>>, %arg8: memref<32x32xf32, #tpu.memory_space<vmem>>, %arg9: memref<32x64xf32, #tpu.memory_space<vmem>>, %arg10: memref<32x32xf32, #tpu.memory_space<vmem>>, %arg11: memref<32x64xf32, #tpu.memory_space<vmem>>, %arg12: memref<1x64xf32, #tpu.memory_space<vmem>>, %arg13: memref<64x32xf32, #tpu.memory_space<vmem>>, %arg14: memref<1x32xf32, #tpu.memory_space<vmem>>, %arg15: memref<16x32xf32, #tpu.memory_space<vmem>>) attributes {dimension_semantics = [#tpu.dimension_semantics<arbitrary>], iteration_bounds = array<i64: 1>, scalar_prefetch = 0 : i64, scratch_operands = 0 : i64, tpu.core_type = #tpu.core_type<tc>, window_params = [{pipeline_mode = #tpu.pipeline_mode<synchronous>, transform_indices = @transform_0, window_bounds = array<i64: 16, 32>}, {pipeline_mode = #tpu.pipeline_mode<synchronous>, transform_indices = @transform_1, window_bounds = array<i64: 32, 32>}, {pipeline_mode = #tpu.pipeline_mode<synchronous>, transform_indices = @transform_2, window_bounds = array<i64: 8, 8>}, {pipeline_mode = #tpu.pipeline_mode<synchronous>, transform_indices = @transform_3, window_bounds = array<i64: 8, 16>}, {pipeline_mode = #tpu.pipeline_mode<synchronous>, transform_indices = @transform_4, window_bounds = array<i64: 6, 32>}, {pipeline_mode = #tpu.pipeline_mode<synchronous>, transform_indices = @transform_5, window_bounds = array<i64: 32, 96>}, {pipeline_mode = #tpu.pipeline_mode<synchronous>, transform_indices = @transform_6, window_bounds = array<i64: 32, 32>}, {pipeline_mode = #tpu.pipeline_mode<synchronous>, transform_indices = @transform_7, window_bounds = array<i64: 32, 32>}, {pipeline_mode = #tpu.pipeline_mode<synchronous>, transform_indices = @transform_8, window_bounds = array<i64: 32, 64>}, {pipeline_mode = #tpu.pipeline_mode<synchronous>, transform_indices = @transform_9, window_bounds = array<i64: 32, 32>}, {pipeline_mode = #tpu.pipeline_mode<synchronous>, transform_indices = @transform_10, window_bounds = array<i64: 32, 64>}, {pipeline_mode = #tpu.pipeline_mode<synchronous>, transform_indices = @transform_11, window_bounds = array<i64: 1, 64>}, {pipeline_mode = #tpu.pipeline_mode<synchronous>, transform_indices = @transform_12, window_bounds = array<i64: 64, 32>}, {pipeline_mode = #tpu.pipeline_mode<synchronous>, transform_indices = @transform_13, window_bounds = array<i64: 1, 32>}, {pipeline_mode = #tpu.pipeline_mode<synchronous>, transform_indices = @transform_14, window_bounds = array<i64: 16, 32>}]} {
    %c0 = arith.constant 0 : index
    %c0_0 = arith.constant 0 : index
    %0 = vector.load %arg1[%c0, %c0_0] : memref<16x32xf32, #tpu.memory_space<vmem>>, vector<16x32xf32>
    %c0_1 = arith.constant 0 : index
    %c0_2 = arith.constant 0 : index
    %1 = vector.load %arg2[%c0_1, %c0_2] : memref<32x32xf32, #tpu.memory_space<vmem>>, vector<32x32xf32>
    %c0_3 = arith.constant 0 : index
    %c0_4 = arith.constant 0 : index
    %2 = vector.load %arg3[%c0_3, %c0_4] : memref<8x8xf32, #tpu.memory_space<vmem>>, vector<8x8xf32>
    %c0_5 = arith.constant 0 : index
    %c0_6 = arith.constant 0 : index
    %3 = vector.load %arg4[%c0_5, %c0_6] : memref<8x16xf32, #tpu.memory_space<vmem>>, vector<8x16xf32>
    %c0_7 = arith.constant 0 : index
    %c0_8 = arith.constant 0 : index
    %4 = vector.load %arg5[%c0_7, %c0_8] : memref<6x32xf32, #tpu.memory_space<vmem>>, vector<6x32xf32>
    %5 = vector.extract_strided_slice %4 {offsets = [0, 0], sizes = [1, 32], strides = [1, 1]} : vector<6x32xf32> to vector<1x32xf32>
    %6 = vector.extract_strided_slice %4 {offsets = [1, 0], sizes = [1, 32], strides = [1, 1]} : vector<6x32xf32> to vector<1x32xf32>
    %cst = arith.constant dense<0.000000e+00> : vector<16xf32>
    %7 = vector.multi_reduction <add>, %0, %cst [1] : vector<16x32xf32> to vector<16xf32>
    %8 = vector.shape_cast %7 : vector<16xf32> to vector<16x1xf32>
    %cst_9 = arith.constant 3.200000e+01 : f32
    %9 = vector.broadcast %cst_9 : f32 to vector<16x1xf32>
    %10 = arith.divf %8, %9 : vector<16x1xf32>
    %11 = vector.broadcast %10 : vector<16x1xf32> to vector<16x32xf32>
    %12 = arith.subf %0, %11 : vector<16x32xf32>
    %13 = arith.mulf %12, %12 : vector<16x32xf32>
    %cst_10 = arith.constant dense<0.000000e+00> : vector<16xf32>
    %14 = vector.multi_reduction <add>, %13, %cst_10 [1] : vector<16x32xf32> to vector<16xf32>
    %15 = vector.shape_cast %14 : vector<16xf32> to vector<16x1xf32>
    %cst_11 = arith.constant 3.100000e+01 : f32
    %16 = vector.broadcast %cst_11 : f32 to vector<16x1xf32>
    %17 = arith.divf %15, %16 : vector<16x1xf32>
    %18 = math.sqrt %17 : vector<16x1xf32>
    %19 = vector.broadcast %10 : vector<16x1xf32> to vector<16x32xf32>
    %20 = arith.subf %0, %19 : vector<16x32xf32>
    %21 = vector.broadcast %5 : vector<1x32xf32> to vector<16x32xf32>
    %22 = arith.mulf %21, %20 : vector<16x32xf32>
    %cst_12 = arith.constant 9.99999997E-7 : f32
    %23 = vector.broadcast %cst_12 : f32 to vector<16x1xf32>
    %24 = arith.addf %18, %23 : vector<16x1xf32>
    %25 = vector.broadcast %24 : vector<16x1xf32> to vector<16x32xf32>
    %26 = arith.divf %22, %25 : vector<16x32xf32>
    %27 = vector.broadcast %6 : vector<1x32xf32> to vector<16x32xf32>
    %28 = arith.addf %26, %27 : vector<16x32xf32>
    %29 = vector.extract_strided_slice %28 {offsets = [0, 0], sizes = [8, 32], strides = [1, 1]} : vector<16x32xf32> to vector<8x32xf32>
    %c0_13 = arith.constant 0 : index
    %c0_14 = arith.constant 0 : index
    %30 = vector.load %arg6[%c0_13, %c0_14] : memref<32x96xf32, #tpu.memory_space<vmem>>, vector<32x96xf32>
    %cst_15 = arith.constant dense<0.000000e+00> : vector<8x96xf32>
    %31 = tpu.matmul %29, %30, %cst_15 {dimension_numbers = #tpu.dot_dimension_numbers<[1], [0], [0], [1], [0, 0, 1, 1], [], []>} : vector<8x32xf32>, vector<32x96xf32>, vector<8x96xf32> -> vector<8x96xf32>
    %32 = vector.extract_strided_slice %31 {offsets = [0, 0], sizes = [8, 32], strides = [1, 1]} : vector<8x96xf32> to vector<8x32xf32>
    %33 = vector.extract_strided_slice %31 {offsets = [0, 32], sizes = [8, 32], strides = [1, 1]} : vector<8x96xf32> to vector<8x32xf32>
    %34 = vector.extract_strided_slice %31 {offsets = [0, 64], sizes = [8, 32], strides = [1, 1]} : vector<8x96xf32> to vector<8x32xf32>
    %c0_16 = arith.constant 0 : index
    %c0_17 = arith.constant 0 : index
    %35 = vector.load %arg7[%c0_16, %c0_17] : memref<32x32xf32, #tpu.memory_space<vmem>>, vector<32x32xf32>
    %36 = vector.extract_strided_slice %32 {offsets = [0, 0], sizes = [8, 8], strides = [1, 1]} : vector<8x32xf32> to vector<8x8xf32>
    %37 = vector.extract_strided_slice %33 {offsets = [0, 0], sizes = [8, 8], strides = [1, 1]} : vector<8x32xf32> to vector<8x8xf32>
    %cst_18 = arith.constant dense<0.000000e+00> : vector<8x8xf32>
    %38 = tpu.matmul %36, %37, %cst_18 {dimension_numbers = #tpu.dot_dimension_numbers<[1], [1], [0], [0], [0, 0, 1, 0], [], []>} : vector<8x8xf32>, vector<8x8xf32>, vector<8x8xf32> -> vector<8x8xf32>
    %39 = arith.addf %38, %2 : vector<8x8xf32>
    %cst_19 = arith.constant dense<0xFF800000> : vector<8xf32>
    %40 = vector.multi_reduction <maximumf>, %39, %cst_19 [1] : vector<8x8xf32> to vector<8xf32>
    %41 = vector.shape_cast %40 : vector<8xf32> to vector<8x1xf32>
    %42 = vector.broadcast %41 : vector<8x1xf32> to vector<8x8xf32>
    %43 = arith.subf %39, %42 : vector<8x8xf32>
    %44 = math.exp %43 : vector<8x8xf32>
    %cst_20 = arith.constant dense<0.000000e+00> : vector<8xf32>
    %45 = vector.multi_reduction <add>, %44, %cst_20 [1] : vector<8x8xf32> to vector<8xf32>
    %46 = vector.shape_cast %45 : vector<8xf32> to vector<8x1xf32>
    %47 = tpu.reciprocal %46 {approx = true} : vector<8x1xf32> -> vector<8x1xf32>
    %48 = vector.broadcast %47 : vector<8x1xf32> to vector<8x8xf32>
    %49 = arith.mulf %44, %48 : vector<8x8xf32>
    %50 = vector.extract_strided_slice %34 {offsets = [0, 0], sizes = [8, 8], strides = [1, 1]} : vector<8x32xf32> to vector<8x8xf32>
    %cst_21 = arith.constant dense<0.000000e+00> : vector<8x8xf32>
    %51 = tpu.matmul %49, %50, %cst_21 {dimension_numbers = #tpu.dot_dimension_numbers<[1], [0], [0], [1], [0, 0, 1, 1], [], []>} : vector<8x8xf32>, vector<8x8xf32>, vector<8x8xf32> -> vector<8x8xf32>
    %52 = vector.extract_strided_slice %32 {offsets = [0, 8], sizes = [8, 8], strides = [1, 1]} : vector<8x32xf32> to vector<8x8xf32>
    %53 = vector.extract_strided_slice %33 {offsets = [0, 8], sizes = [8, 8], strides = [1, 1]} : vector<8x32xf32> to vector<8x8xf32>
    %cst_22 = arith.constant dense<0.000000e+00> : vector<8x8xf32>
    %54 = tpu.matmul %52, %53, %cst_22 {dimension_numbers = #tpu.dot_dimension_numbers<[1], [1], [0], [0], [0, 0, 1, 0], [], []>} : vector<8x8xf32>, vector<8x8xf32>, vector<8x8xf32> -> vector<8x8xf32>
    %55 = arith.addf %54, %2 : vector<8x8xf32>
    %cst_23 = arith.constant dense<0xFF800000> : vector<8xf32>
    %56 = vector.multi_reduction <maximumf>, %55, %cst_23 [1] : vector<8x8xf32> to vector<8xf32>
    %57 = vector.shape_cast %56 : vector<8xf32> to vector<8x1xf32>
    %58 = vector.broadcast %57 : vector<8x1xf32> to vector<8x8xf32>
    %59 = arith.subf %55, %58 : vector<8x8xf32>
    %60 = math.exp %59 : vector<8x8xf32>
    %cst_24 = arith.constant dense<0.000000e+00> : vector<8xf32>
    %61 = vector.multi_reduction <add>, %60, %cst_24 [1] : vector<8x8xf32> to vector<8xf32>
    %62 = vector.shape_cast %61 : vector<8xf32> to vector<8x1xf32>
    %63 = tpu.reciprocal %62 {approx = true} : vector<8x1xf32> -> vector<8x1xf32>
    %64 = vector.broadcast %63 : vector<8x1xf32> to vector<8x8xf32>
    %65 = arith.mulf %60, %64 : vector<8x8xf32>
    %66 = vector.extract_strided_slice %34 {offsets = [0, 8], sizes = [8, 8], strides = [1, 1]} : vector<8x32xf32> to vector<8x8xf32>
    %cst_25 = arith.constant dense<0.000000e+00> : vector<8x8xf32>
    %67 = tpu.matmul %65, %66, %cst_25 {dimension_numbers = #tpu.dot_dimension_numbers<[1], [0], [0], [1], [0, 0, 1, 1], [], []>} : vector<8x8xf32>, vector<8x8xf32>, vector<8x8xf32> -> vector<8x8xf32>
    %68 = vector.extract_strided_slice %32 {offsets = [0, 16], sizes = [8, 8], strides = [1, 1]} : vector<8x32xf32> to vector<8x8xf32>
    %69 = vector.extract_strided_slice %33 {offsets = [0, 16], sizes = [8, 8], strides = [1, 1]} : vector<8x32xf32> to vector<8x8xf32>
    %cst_26 = arith.constant dense<0.000000e+00> : vector<8x8xf32>
    %70 = tpu.matmul %68, %69, %cst_26 {dimension_numbers = #tpu.dot_dimension_numbers<[1], [1], [0], [0], [0, 0, 1, 0], [], []>} : vector<8x8xf32>, vector<8x8xf32>, vector<8x8xf32> -> vector<8x8xf32>
    %71 = arith.addf %70, %2 : vector<8x8xf32>
    %cst_27 = arith.constant dense<0xFF800000> : vector<8xf32>
    %72 = vector.multi_reduction <maximumf>, %71, %cst_27 [1] : vector<8x8xf32> to vector<8xf32>
    %73 = vector.shape_cast %72 : vector<8xf32> to vector<8x1xf32>
    %74 = vector.broadcast %73 : vector<8x1xf32> to vector<8x8xf32>
    %75 = arith.subf %71, %74 : vector<8x8xf32>
    %76 = math.exp %75 : vector<8x8xf32>
    %cst_28 = arith.constant dense<0.000000e+00> : vector<8xf32>
    %77 = vector.multi_reduction <add>, %76, %cst_28 [1] : vector<8x8xf32> to vector<8xf32>
    %78 = vector.shape_cast %77 : vector<8xf32> to vector<8x1xf32>
    %79 = tpu.reciprocal %78 {approx = true} : vector<8x1xf32> -> vector<8x1xf32>
    %80 = vector.broadcast %79 : vector<8x1xf32> to vector<8x8xf32>
    %81 = arith.mulf %76, %80 : vector<8x8xf32>
    %82 = vector.extract_strided_slice %34 {offsets = [0, 16], sizes = [8, 8], strides = [1, 1]} : vector<8x32xf32> to vector<8x8xf32>
    %cst_29 = arith.constant dense<0.000000e+00> : vector<8x8xf32>
    %83 = tpu.matmul %81, %82, %cst_29 {dimension_numbers = #tpu.dot_dimension_numbers<[1], [0], [0], [1], [0, 0, 1, 1], [], []>} : vector<8x8xf32>, vector<8x8xf32>, vector<8x8xf32> -> vector<8x8xf32>
    %84 = vector.extract_strided_slice %32 {offsets = [0, 24], sizes = [8, 8], strides = [1, 1]} : vector<8x32xf32> to vector<8x8xf32>
    %85 = vector.extract_strided_slice %33 {offsets = [0, 24], sizes = [8, 8], strides = [1, 1]} : vector<8x32xf32> to vector<8x8xf32>
    %cst_30 = arith.constant dense<0.000000e+00> : vector<8x8xf32>
    %86 = tpu.matmul %84, %85, %cst_30 {dimension_numbers = #tpu.dot_dimension_numbers<[1], [1], [0], [0], [0, 0, 1, 0], [], []>} : vector<8x8xf32>, vector<8x8xf32>, vector<8x8xf32> -> vector<8x8xf32>
    %87 = arith.addf %86, %2 : vector<8x8xf32>
    %cst_31 = arith.constant dense<0xFF800000> : vector<8xf32>
    %88 = vector.multi_reduction <maximumf>, %87, %cst_31 [1] : vector<8x8xf32> to vector<8xf32>
    %89 = vector.shape_cast %88 : vector<8xf32> to vector<8x1xf32>
    %90 = vector.broadcast %89 : vector<8x1xf32> to vector<8x8xf32>
    %91 = arith.subf %87, %90 : vector<8x8xf32>
    %92 = math.exp %91 : vector<8x8xf32>
    %cst_32 = arith.constant dense<0.000000e+00> : vector<8xf32>
    %93 = vector.multi_reduction <add>, %92, %cst_32 [1] : vector<8x8xf32> to vector<8xf32>
    %94 = vector.shape_cast %93 : vector<8xf32> to vector<8x1xf32>
    %95 = tpu.reciprocal %94 {approx = true} : vector<8x1xf32> -> vector<8x1xf32>
    %96 = vector.broadcast %95 : vector<8x1xf32> to vector<8x8xf32>
    %97 = arith.mulf %92, %96 : vector<8x8xf32>
    %98 = vector.extract_strided_slice %34 {offsets = [0, 24], sizes = [8, 8], strides = [1, 1]} : vector<8x32xf32> to vector<8x8xf32>
    %cst_33 = arith.constant dense<0.000000e+00> : vector<8x8xf32>
    %99 = tpu.matmul %97, %98, %cst_33 {dimension_numbers = #tpu.dot_dimension_numbers<[1], [0], [0], [1], [0, 0, 1, 1], [], []>} : vector<8x8xf32>, vector<8x8xf32>, vector<8x8xf32> -> vector<8x8xf32>
    %100 = tpu.concatenate %51, %67, %83, %99 in 1 : vector<8x8xf32>, vector<8x8xf32>, vector<8x8xf32>, vector<8x8xf32> -> vector<8x32xf32>
    %cst_34 = arith.constant dense<0.000000e+00> : vector<8x32xf32>
    %101 = tpu.matmul %100, %35, %cst_34 {dimension_numbers = #tpu.dot_dimension_numbers<[1], [0], [0], [1], [0, 0, 1, 1], [], []>} : vector<8x32xf32>, vector<32x32xf32>, vector<8x32xf32> -> vector<8x32xf32>
    %102 = vector.extract_strided_slice %28 {offsets = [8, 0], sizes = [8, 32], strides = [1, 1]} : vector<16x32xf32> to vector<8x32xf32>
    %c0_35 = arith.constant 0 : index
    %c0_36 = arith.constant 0 : index
    %103 = vector.load %arg6[%c0_35, %c0_36] : memref<32x96xf32, #tpu.memory_space<vmem>>, vector<32x96xf32>
    %cst_37 = arith.constant dense<0.000000e+00> : vector<8x96xf32>
    %104 = tpu.matmul %102, %103, %cst_37 {dimension_numbers = #tpu.dot_dimension_numbers<[1], [0], [0], [1], [0, 0, 1, 1], [], []>} : vector<8x32xf32>, vector<32x96xf32>, vector<8x96xf32> -> vector<8x96xf32>
    %105 = vector.extract_strided_slice %104 {offsets = [0, 0], sizes = [8, 32], strides = [1, 1]} : vector<8x96xf32> to vector<8x32xf32>
    %106 = vector.extract_strided_slice %104 {offsets = [0, 32], sizes = [8, 32], strides = [1, 1]} : vector<8x96xf32> to vector<8x32xf32>
    %107 = vector.extract_strided_slice %104 {offsets = [0, 64], sizes = [8, 32], strides = [1, 1]} : vector<8x96xf32> to vector<8x32xf32>
    %c0_38 = arith.constant 0 : index
    %c0_39 = arith.constant 0 : index
    %108 = vector.load %arg7[%c0_38, %c0_39] : memref<32x32xf32, #tpu.memory_space<vmem>>, vector<32x32xf32>
    %109 = vector.extract_strided_slice %105 {offsets = [0, 0], sizes = [8, 8], strides = [1, 1]} : vector<8x32xf32> to vector<8x8xf32>
    %110 = vector.extract_strided_slice %106 {offsets = [0, 0], sizes = [8, 8], strides = [1, 1]} : vector<8x32xf32> to vector<8x8xf32>
    %cst_40 = arith.constant dense<0.000000e+00> : vector<8x8xf32>
    %111 = tpu.matmul %109, %110, %cst_40 {dimension_numbers = #tpu.dot_dimension_numbers<[1], [1], [0], [0], [0, 0, 1, 0], [], []>} : vector<8x8xf32>, vector<8x8xf32>, vector<8x8xf32> -> vector<8x8xf32>
    %112 = arith.addf %111, %2 : vector<8x8xf32>
    %cst_41 = arith.constant dense<0xFF800000> : vector<8xf32>
    %113 = vector.multi_reduction <maximumf>, %112, %cst_41 [1] : vector<8x8xf32> to vector<8xf32>
    %114 = vector.shape_cast %113 : vector<8xf32> to vector<8x1xf32>
    %115 = vector.broadcast %114 : vector<8x1xf32> to vector<8x8xf32>
    %116 = arith.subf %112, %115 : vector<8x8xf32>
    %117 = math.exp %116 : vector<8x8xf32>
    %cst_42 = arith.constant dense<0.000000e+00> : vector<8xf32>
    %118 = vector.multi_reduction <add>, %117, %cst_42 [1] : vector<8x8xf32> to vector<8xf32>
    %119 = vector.shape_cast %118 : vector<8xf32> to vector<8x1xf32>
    %120 = tpu.reciprocal %119 {approx = true} : vector<8x1xf32> -> vector<8x1xf32>
    %121 = vector.broadcast %120 : vector<8x1xf32> to vector<8x8xf32>
    %122 = arith.mulf %117, %121 : vector<8x8xf32>
    %123 = vector.extract_strided_slice %107 {offsets = [0, 0], sizes = [8, 8], strides = [1, 1]} : vector<8x32xf32> to vector<8x8xf32>
    %cst_43 = arith.constant dense<0.000000e+00> : vector<8x8xf32>
    %124 = tpu.matmul %122, %123, %cst_43 {dimension_numbers = #tpu.dot_dimension_numbers<[1], [0], [0], [1], [0, 0, 1, 1], [], []>} : vector<8x8xf32>, vector<8x8xf32>, vector<8x8xf32> -> vector<8x8xf32>
    %125 = vector.extract_strided_slice %105 {offsets = [0, 8], sizes = [8, 8], strides = [1, 1]} : vector<8x32xf32> to vector<8x8xf32>
    %126 = vector.extract_strided_slice %106 {offsets = [0, 8], sizes = [8, 8], strides = [1, 1]} : vector<8x32xf32> to vector<8x8xf32>
    %cst_44 = arith.constant dense<0.000000e+00> : vector<8x8xf32>
    %127 = tpu.matmul %125, %126, %cst_44 {dimension_numbers = #tpu.dot_dimension_numbers<[1], [1], [0], [0], [0, 0, 1, 0], [], []>} : vector<8x8xf32>, vector<8x8xf32>, vector<8x8xf32> -> vector<8x8xf32>
    %128 = arith.addf %127, %2 : vector<8x8xf32>
    %cst_45 = arith.constant dense<0xFF800000> : vector<8xf32>
    %129 = vector.multi_reduction <maximumf>, %128, %cst_45 [1] : vector<8x8xf32> to vector<8xf32>
    %130 = vector.shape_cast %129 : vector<8xf32> to vector<8x1xf32>
    %131 = vector.broadcast %130 : vector<8x1xf32> to vector<8x8xf32>
    %132 = arith.subf %128, %131 : vector<8x8xf32>
    %133 = math.exp %132 : vector<8x8xf32>
    %cst_46 = arith.constant dense<0.000000e+00> : vector<8xf32>
    %134 = vector.multi_reduction <add>, %133, %cst_46 [1] : vector<8x8xf32> to vector<8xf32>
    %135 = vector.shape_cast %134 : vector<8xf32> to vector<8x1xf32>
    %136 = tpu.reciprocal %135 {approx = true} : vector<8x1xf32> -> vector<8x1xf32>
    %137 = vector.broadcast %136 : vector<8x1xf32> to vector<8x8xf32>
    %138 = arith.mulf %133, %137 : vector<8x8xf32>
    %139 = vector.extract_strided_slice %107 {offsets = [0, 8], sizes = [8, 8], strides = [1, 1]} : vector<8x32xf32> to vector<8x8xf32>
    %cst_47 = arith.constant dense<0.000000e+00> : vector<8x8xf32>
    %140 = tpu.matmul %138, %139, %cst_47 {dimension_numbers = #tpu.dot_dimension_numbers<[1], [0], [0], [1], [0, 0, 1, 1], [], []>} : vector<8x8xf32>, vector<8x8xf32>, vector<8x8xf32> -> vector<8x8xf32>
    %141 = vector.extract_strided_slice %105 {offsets = [0, 16], sizes = [8, 8], strides = [1, 1]} : vector<8x32xf32> to vector<8x8xf32>
    %142 = vector.extract_strided_slice %106 {offsets = [0, 16], sizes = [8, 8], strides = [1, 1]} : vector<8x32xf32> to vector<8x8xf32>
    %cst_48 = arith.constant dense<0.000000e+00> : vector<8x8xf32>
    %143 = tpu.matmul %141, %142, %cst_48 {dimension_numbers = #tpu.dot_dimension_numbers<[1], [1], [0], [0], [0, 0, 1, 0], [], []>} : vector<8x8xf32>, vector<8x8xf32>, vector<8x8xf32> -> vector<8x8xf32>
    %144 = arith.addf %143, %2 : vector<8x8xf32>
    %cst_49 = arith.constant dense<0xFF800000> : vector<8xf32>
    %145 = vector.multi_reduction <maximumf>, %144, %cst_49 [1] : vector<8x8xf32> to vector<8xf32>
    %146 = vector.shape_cast %145 : vector<8xf32> to vector<8x1xf32>
    %147 = vector.broadcast %146 : vector<8x1xf32> to vector<8x8xf32>
    %148 = arith.subf %144, %147 : vector<8x8xf32>
    %149 = math.exp %148 : vector<8x8xf32>
    %cst_50 = arith.constant dense<0.000000e+00> : vector<8xf32>
    %150 = vector.multi_reduction <add>, %149, %cst_50 [1] : vector<8x8xf32> to vector<8xf32>
    %151 = vector.shape_cast %150 : vector<8xf32> to vector<8x1xf32>
    %152 = tpu.reciprocal %151 {approx = true} : vector<8x1xf32> -> vector<8x1xf32>
    %153 = vector.broadcast %152 : vector<8x1xf32> to vector<8x8xf32>
    %154 = arith.mulf %149, %153 : vector<8x8xf32>
    %155 = vector.extract_strided_slice %107 {offsets = [0, 16], sizes = [8, 8], strides = [1, 1]} : vector<8x32xf32> to vector<8x8xf32>
    %cst_51 = arith.constant dense<0.000000e+00> : vector<8x8xf32>
    %156 = tpu.matmul %154, %155, %cst_51 {dimension_numbers = #tpu.dot_dimension_numbers<[1], [0], [0], [1], [0, 0, 1, 1], [], []>} : vector<8x8xf32>, vector<8x8xf32>, vector<8x8xf32> -> vector<8x8xf32>
    %157 = vector.extract_strided_slice %105 {offsets = [0, 24], sizes = [8, 8], strides = [1, 1]} : vector<8x32xf32> to vector<8x8xf32>
    %158 = vector.extract_strided_slice %106 {offsets = [0, 24], sizes = [8, 8], strides = [1, 1]} : vector<8x32xf32> to vector<8x8xf32>
    %cst_52 = arith.constant dense<0.000000e+00> : vector<8x8xf32>
    %159 = tpu.matmul %157, %158, %cst_52 {dimension_numbers = #tpu.dot_dimension_numbers<[1], [1], [0], [0], [0, 0, 1, 0], [], []>} : vector<8x8xf32>, vector<8x8xf32>, vector<8x8xf32> -> vector<8x8xf32>
    %160 = arith.addf %159, %2 : vector<8x8xf32>
    %cst_53 = arith.constant dense<0xFF800000> : vector<8xf32>
    %161 = vector.multi_reduction <maximumf>, %160, %cst_53 [1] : vector<8x8xf32> to vector<8xf32>
    %162 = vector.shape_cast %161 : vector<8xf32> to vector<8x1xf32>
    %163 = vector.broadcast %162 : vector<8x1xf32> to vector<8x8xf32>
    %164 = arith.subf %160, %163 : vector<8x8xf32>
    %165 = math.exp %164 : vector<8x8xf32>
    %cst_54 = arith.constant dense<0.000000e+00> : vector<8xf32>
    %166 = vector.multi_reduction <add>, %165, %cst_54 [1] : vector<8x8xf32> to vector<8xf32>
    %167 = vector.shape_cast %166 : vector<8xf32> to vector<8x1xf32>
    %168 = tpu.reciprocal %167 {approx = true} : vector<8x1xf32> -> vector<8x1xf32>
    %169 = vector.broadcast %168 : vector<8x1xf32> to vector<8x8xf32>
    %170 = arith.mulf %165, %169 : vector<8x8xf32>
    %171 = vector.extract_strided_slice %107 {offsets = [0, 24], sizes = [8, 8], strides = [1, 1]} : vector<8x32xf32> to vector<8x8xf32>
    %cst_55 = arith.constant dense<0.000000e+00> : vector<8x8xf32>
    %172 = tpu.matmul %170, %171, %cst_55 {dimension_numbers = #tpu.dot_dimension_numbers<[1], [0], [0], [1], [0, 0, 1, 1], [], []>} : vector<8x8xf32>, vector<8x8xf32>, vector<8x8xf32> -> vector<8x8xf32>
    %173 = tpu.concatenate %124, %140, %156, %172 in 1 : vector<8x8xf32>, vector<8x8xf32>, vector<8x8xf32>, vector<8x8xf32> -> vector<8x32xf32>
    %cst_56 = arith.constant dense<0.000000e+00> : vector<8x32xf32>
    %174 = tpu.matmul %173, %108, %cst_56 {dimension_numbers = #tpu.dot_dimension_numbers<[1], [0], [0], [1], [0, 0, 1, 1], [], []>} : vector<8x32xf32>, vector<32x32xf32>, vector<8x32xf32> -> vector<8x32xf32>
    %175 = tpu.concatenate %101, %174 in 0 : vector<8x32xf32>, vector<8x32xf32> -> vector<16x32xf32>
    %176 = arith.addf %0, %175 : vector<16x32xf32>
    %177 = vector.extract_strided_slice %4 {offsets = [2, 0], sizes = [1, 32], strides = [1, 1]} : vector<6x32xf32> to vector<1x32xf32>
    %178 = vector.extract_strided_slice %4 {offsets = [3, 0], sizes = [1, 32], strides = [1, 1]} : vector<6x32xf32> to vector<1x32xf32>
    %cst_57 = arith.constant dense<0.000000e+00> : vector<16xf32>
    %179 = vector.multi_reduction <add>, %176, %cst_57 [1] : vector<16x32xf32> to vector<16xf32>
    %180 = vector.shape_cast %179 : vector<16xf32> to vector<16x1xf32>
    %cst_58 = arith.constant 3.200000e+01 : f32
    %181 = vector.broadcast %cst_58 : f32 to vector<16x1xf32>
    %182 = arith.divf %180, %181 : vector<16x1xf32>
    %183 = vector.broadcast %182 : vector<16x1xf32> to vector<16x32xf32>
    %184 = arith.subf %176, %183 : vector<16x32xf32>
    %185 = arith.mulf %184, %184 : vector<16x32xf32>
    %cst_59 = arith.constant dense<0.000000e+00> : vector<16xf32>
    %186 = vector.multi_reduction <add>, %185, %cst_59 [1] : vector<16x32xf32> to vector<16xf32>
    %187 = vector.shape_cast %186 : vector<16xf32> to vector<16x1xf32>
    %cst_60 = arith.constant 3.100000e+01 : f32
    %188 = vector.broadcast %cst_60 : f32 to vector<16x1xf32>
    %189 = arith.divf %187, %188 : vector<16x1xf32>
    %190 = math.sqrt %189 : vector<16x1xf32>
    %191 = vector.broadcast %182 : vector<16x1xf32> to vector<16x32xf32>
    %192 = arith.subf %176, %191 : vector<16x32xf32>
    %193 = vector.broadcast %177 : vector<1x32xf32> to vector<16x32xf32>
    %194 = arith.mulf %193, %192 : vector<16x32xf32>
    %cst_61 = arith.constant 9.99999997E-7 : f32
    %195 = vector.broadcast %cst_61 : f32 to vector<16x1xf32>
    %196 = arith.addf %190, %195 : vector<16x1xf32>
    %197 = vector.broadcast %196 : vector<16x1xf32> to vector<16x32xf32>
    %198 = arith.divf %194, %197 : vector<16x32xf32>
    %199 = vector.broadcast %178 : vector<1x32xf32> to vector<16x32xf32>
    %200 = arith.addf %198, %199 : vector<16x32xf32>
    %201 = vector.extract_strided_slice %200 {offsets = [0, 0], sizes = [8, 32], strides = [1, 1]} : vector<16x32xf32> to vector<8x32xf32>
    %c0_62 = arith.constant 0 : index
    %c0_63 = arith.constant 0 : index
    %202 = vector.load %arg8[%c0_62, %c0_63] : memref<32x32xf32, #tpu.memory_space<vmem>>, vector<32x32xf32>
    %cst_64 = arith.constant dense<0.000000e+00> : vector<8x32xf32>
    %203 = tpu.matmul %201, %202, %cst_64 {dimension_numbers = #tpu.dot_dimension_numbers<[1], [0], [0], [1], [0, 0, 1, 1], [], []>} : vector<8x32xf32>, vector<32x32xf32>, vector<8x32xf32> -> vector<8x32xf32>
    %204 = vector.extract_strided_slice %1 {offsets = [0, 0], sizes = [16, 32], strides = [1, 1]} : vector<32x32xf32> to vector<16x32xf32>
    %c0_65 = arith.constant 0 : index
    %c0_66 = arith.constant 0 : index
    %205 = vector.load %arg9[%c0_65, %c0_66] : memref<32x64xf32, #tpu.memory_space<vmem>>, vector<32x64xf32>
    %cst_67 = arith.constant dense<0.000000e+00> : vector<16x64xf32>
    %206 = tpu.matmul %204, %205, %cst_67 {dimension_numbers = #tpu.dot_dimension_numbers<[1], [0], [0], [1], [0, 0, 1, 1], [], []>} : vector<16x32xf32>, vector<32x64xf32>, vector<16x64xf32> -> vector<16x64xf32>
    %207 = vector.extract_strided_slice %206 {offsets = [0, 0], sizes = [16, 32], strides = [1, 1]} : vector<16x64xf32> to vector<16x32xf32>
    %208 = vector.extract_strided_slice %206 {offsets = [0, 32], sizes = [16, 32], strides = [1, 1]} : vector<16x64xf32> to vector<16x32xf32>
    %c0_68 = arith.constant 0 : index
    %c0_69 = arith.constant 0 : index
    %209 = vector.load %arg10[%c0_68, %c0_69] : memref<32x32xf32, #tpu.memory_space<vmem>>, vector<32x32xf32>
    %210 = vector.extract_strided_slice %203 {offsets = [0, 0], sizes = [8, 8], strides = [1, 1]} : vector<8x32xf32> to vector<8x8xf32>
    %211 = vector.extract_strided_slice %207 {offsets = [0, 0], sizes = [16, 8], strides = [1, 1]} : vector<16x32xf32> to vector<16x8xf32>
    %cst_70 = arith.constant dense<0.000000e+00> : vector<8x16xf32>
    %212 = tpu.matmul %210, %211, %cst_70 {dimension_numbers = #tpu.dot_dimension_numbers<[1], [1], [0], [0], [0, 0, 1, 0], [], []>} : vector<8x8xf32>, vector<16x8xf32>, vector<8x16xf32> -> vector<8x16xf32>
    %213 = arith.addf %212, %3 : vector<8x16xf32>
    %cst_71 = arith.constant dense<0xFF800000> : vector<8xf32>
    %214 = vector.multi_reduction <maximumf>, %213, %cst_71 [1] : vector<8x16xf32> to vector<8xf32>
    %215 = vector.shape_cast %214 : vector<8xf32> to vector<8x1xf32>
    %216 = vector.broadcast %215 : vector<8x1xf32> to vector<8x16xf32>
    %217 = arith.subf %213, %216 : vector<8x16xf32>
    %218 = math.exp %217 : vector<8x16xf32>
    %cst_72 = arith.constant dense<0.000000e+00> : vector<8xf32>
    %219 = vector.multi_reduction <add>, %218, %cst_72 [1] : vector<8x16xf32> to vector<8xf32>
    %220 = vector.shape_cast %219 : vector<8xf32> to vector<8x1xf32>
    %221 = tpu.reciprocal %220 {approx = true} : vector<8x1xf32> -> vector<8x1xf32>
    %222 = vector.broadcast %221 : vector<8x1xf32> to vector<8x16xf32>
    %223 = arith.mulf %218, %222 : vector<8x16xf32>
    %224 = vector.extract_strided_slice %208 {offsets = [0, 0], sizes = [16, 8], strides = [1, 1]} : vector<16x32xf32> to vector<16x8xf32>
    %cst_73 = arith.constant dense<0.000000e+00> : vector<8x8xf32>
    %225 = tpu.matmul %223, %224, %cst_73 {dimension_numbers = #tpu.dot_dimension_numbers<[1], [0], [0], [1], [0, 0, 1, 1], [], []>} : vector<8x16xf32>, vector<16x8xf32>, vector<8x8xf32> -> vector<8x8xf32>
    %226 = vector.extract_strided_slice %203 {offsets = [0, 8], sizes = [8, 8], strides = [1, 1]} : vector<8x32xf32> to vector<8x8xf32>
    %227 = vector.extract_strided_slice %207 {offsets = [0, 8], sizes = [16, 8], strides = [1, 1]} : vector<16x32xf32> to vector<16x8xf32>
    %cst_74 = arith.constant dense<0.000000e+00> : vector<8x16xf32>
    %228 = tpu.matmul %226, %227, %cst_74 {dimension_numbers = #tpu.dot_dimension_numbers<[1], [1], [0], [0], [0, 0, 1, 0], [], []>} : vector<8x8xf32>, vector<16x8xf32>, vector<8x16xf32> -> vector<8x16xf32>
    %229 = arith.addf %228, %3 : vector<8x16xf32>
    %cst_75 = arith.constant dense<0xFF800000> : vector<8xf32>
    %230 = vector.multi_reduction <maximumf>, %229, %cst_75 [1] : vector<8x16xf32> to vector<8xf32>
    %231 = vector.shape_cast %230 : vector<8xf32> to vector<8x1xf32>
    %232 = vector.broadcast %231 : vector<8x1xf32> to vector<8x16xf32>
    %233 = arith.subf %229, %232 : vector<8x16xf32>
    %234 = math.exp %233 : vector<8x16xf32>
    %cst_76 = arith.constant dense<0.000000e+00> : vector<8xf32>
    %235 = vector.multi_reduction <add>, %234, %cst_76 [1] : vector<8x16xf32> to vector<8xf32>
    %236 = vector.shape_cast %235 : vector<8xf32> to vector<8x1xf32>
    %237 = tpu.reciprocal %236 {approx = true} : vector<8x1xf32> -> vector<8x1xf32>
    %238 = vector.broadcast %237 : vector<8x1xf32> to vector<8x16xf32>
    %239 = arith.mulf %234, %238 : vector<8x16xf32>
    %240 = vector.extract_strided_slice %208 {offsets = [0, 8], sizes = [16, 8], strides = [1, 1]} : vector<16x32xf32> to vector<16x8xf32>
    %cst_77 = arith.constant dense<0.000000e+00> : vector<8x8xf32>
    %241 = tpu.matmul %239, %240, %cst_77 {dimension_numbers = #tpu.dot_dimension_numbers<[1], [0], [0], [1], [0, 0, 1, 1], [], []>} : vector<8x16xf32>, vector<16x8xf32>, vector<8x8xf32> -> vector<8x8xf32>
    %242 = vector.extract_strided_slice %203 {offsets = [0, 16], sizes = [8, 8], strides = [1, 1]} : vector<8x32xf32> to vector<8x8xf32>
    %243 = vector.extract_strided_slice %207 {offsets = [0, 16], sizes = [16, 8], strides = [1, 1]} : vector<16x32xf32> to vector<16x8xf32>
    %cst_78 = arith.constant dense<0.000000e+00> : vector<8x16xf32>
    %244 = tpu.matmul %242, %243, %cst_78 {dimension_numbers = #tpu.dot_dimension_numbers<[1], [1], [0], [0], [0, 0, 1, 0], [], []>} : vector<8x8xf32>, vector<16x8xf32>, vector<8x16xf32> -> vector<8x16xf32>
    %245 = arith.addf %244, %3 : vector<8x16xf32>
    %cst_79 = arith.constant dense<0xFF800000> : vector<8xf32>
    %246 = vector.multi_reduction <maximumf>, %245, %cst_79 [1] : vector<8x16xf32> to vector<8xf32>
    %247 = vector.shape_cast %246 : vector<8xf32> to vector<8x1xf32>
    %248 = vector.broadcast %247 : vector<8x1xf32> to vector<8x16xf32>
    %249 = arith.subf %245, %248 : vector<8x16xf32>
    %250 = math.exp %249 : vector<8x16xf32>
    %cst_80 = arith.constant dense<0.000000e+00> : vector<8xf32>
    %251 = vector.multi_reduction <add>, %250, %cst_80 [1] : vector<8x16xf32> to vector<8xf32>
    %252 = vector.shape_cast %251 : vector<8xf32> to vector<8x1xf32>
    %253 = tpu.reciprocal %252 {approx = true} : vector<8x1xf32> -> vector<8x1xf32>
    %254 = vector.broadcast %253 : vector<8x1xf32> to vector<8x16xf32>
    %255 = arith.mulf %250, %254 : vector<8x16xf32>
    %256 = vector.extract_strided_slice %208 {offsets = [0, 16], sizes = [16, 8], strides = [1, 1]} : vector<16x32xf32> to vector<16x8xf32>
    %cst_81 = arith.constant dense<0.000000e+00> : vector<8x8xf32>
    %257 = tpu.matmul %255, %256, %cst_81 {dimension_numbers = #tpu.dot_dimension_numbers<[1], [0], [0], [1], [0, 0, 1, 1], [], []>} : vector<8x16xf32>, vector<16x8xf32>, vector<8x8xf32> -> vector<8x8xf32>
    %258 = vector.extract_strided_slice %203 {offsets = [0, 24], sizes = [8, 8], strides = [1, 1]} : vector<8x32xf32> to vector<8x8xf32>
    %259 = vector.extract_strided_slice %207 {offsets = [0, 24], sizes = [16, 8], strides = [1, 1]} : vector<16x32xf32> to vector<16x8xf32>
    %cst_82 = arith.constant dense<0.000000e+00> : vector<8x16xf32>
    %260 = tpu.matmul %258, %259, %cst_82 {dimension_numbers = #tpu.dot_dimension_numbers<[1], [1], [0], [0], [0, 0, 1, 0], [], []>} : vector<8x8xf32>, vector<16x8xf32>, vector<8x16xf32> -> vector<8x16xf32>
    %261 = arith.addf %260, %3 : vector<8x16xf32>
    %cst_83 = arith.constant dense<0xFF800000> : vector<8xf32>
    %262 = vector.multi_reduction <maximumf>, %261, %cst_83 [1] : vector<8x16xf32> to vector<8xf32>
    %263 = vector.shape_cast %262 : vector<8xf32> to vector<8x1xf32>
    %264 = vector.broadcast %263 : vector<8x1xf32> to vector<8x16xf32>
    %265 = arith.subf %261, %264 : vector<8x16xf32>
    %266 = math.exp %265 : vector<8x16xf32>
    %cst_84 = arith.constant dense<0.000000e+00> : vector<8xf32>
    %267 = vector.multi_reduction <add>, %266, %cst_84 [1] : vector<8x16xf32> to vector<8xf32>
    %268 = vector.shape_cast %267 : vector<8xf32> to vector<8x1xf32>
    %269 = tpu.reciprocal %268 {approx = true} : vector<8x1xf32> -> vector<8x1xf32>
    %270 = vector.broadcast %269 : vector<8x1xf32> to vector<8x16xf32>
    %271 = arith.mulf %266, %270 : vector<8x16xf32>
    %272 = vector.extract_strided_slice %208 {offsets = [0, 24], sizes = [16, 8], strides = [1, 1]} : vector<16x32xf32> to vector<16x8xf32>
    %cst_85 = arith.constant dense<0.000000e+00> : vector<8x8xf32>
    %273 = tpu.matmul %271, %272, %cst_85 {dimension_numbers = #tpu.dot_dimension_numbers<[1], [0], [0], [1], [0, 0, 1, 1], [], []>} : vector<8x16xf32>, vector<16x8xf32>, vector<8x8xf32> -> vector<8x8xf32>
    %274 = tpu.concatenate %225, %241, %257, %273 in 1 : vector<8x8xf32>, vector<8x8xf32>, vector<8x8xf32>, vector<8x8xf32> -> vector<8x32xf32>
    %cst_86 = arith.constant dense<0.000000e+00> : vector<8x32xf32>
    %275 = tpu.matmul %274, %209, %cst_86 {dimension_numbers = #tpu.dot_dimension_numbers<[1], [0], [0], [1], [0, 0, 1, 1], [], []>} : vector<8x32xf32>, vector<32x32xf32>, vector<8x32xf32> -> vector<8x32xf32>
    %276 = vector.extract_strided_slice %200 {offsets = [8, 0], sizes = [8, 32], strides = [1, 1]} : vector<16x32xf32> to vector<8x32xf32>
    %c0_87 = arith.constant 0 : index
    %c0_88 = arith.constant 0 : index
    %277 = vector.load %arg8[%c0_87, %c0_88] : memref<32x32xf32, #tpu.memory_space<vmem>>, vector<32x32xf32>
    %cst_89 = arith.constant dense<0.000000e+00> : vector<8x32xf32>
    %278 = tpu.matmul %276, %277, %cst_89 {dimension_numbers = #tpu.dot_dimension_numbers<[1], [0], [0], [1], [0, 0, 1, 1], [], []>} : vector<8x32xf32>, vector<32x32xf32>, vector<8x32xf32> -> vector<8x32xf32>
    %279 = vector.extract_strided_slice %1 {offsets = [16, 0], sizes = [16, 32], strides = [1, 1]} : vector<32x32xf32> to vector<16x32xf32>
    %c0_90 = arith.constant 0 : index
    %c0_91 = arith.constant 0 : index
    %280 = vector.load %arg9[%c0_90, %c0_91] : memref<32x64xf32, #tpu.memory_space<vmem>>, vector<32x64xf32>
    %cst_92 = arith.constant dense<0.000000e+00> : vector<16x64xf32>
    %281 = tpu.matmul %279, %280, %cst_92 {dimension_numbers = #tpu.dot_dimension_numbers<[1], [0], [0], [1], [0, 0, 1, 1], [], []>} : vector<16x32xf32>, vector<32x64xf32>, vector<16x64xf32> -> vector<16x64xf32>
    %282 = vector.extract_strided_slice %281 {offsets = [0, 0], sizes = [16, 32], strides = [1, 1]} : vector<16x64xf32> to vector<16x32xf32>
    %283 = vector.extract_strided_slice %281 {offsets = [0, 32], sizes = [16, 32], strides = [1, 1]} : vector<16x64xf32> to vector<16x32xf32>
    %c0_93 = arith.constant 0 : index
    %c0_94 = arith.constant 0 : index
    %284 = vector.load %arg10[%c0_93, %c0_94] : memref<32x32xf32, #tpu.memory_space<vmem>>, vector<32x32xf32>
    %285 = vector.extract_strided_slice %278 {offsets = [0, 0], sizes = [8, 8], strides = [1, 1]} : vector<8x32xf32> to vector<8x8xf32>
    %286 = vector.extract_strided_slice %282 {offsets = [0, 0], sizes = [16, 8], strides = [1, 1]} : vector<16x32xf32> to vector<16x8xf32>
    %cst_95 = arith.constant dense<0.000000e+00> : vector<8x16xf32>
    %287 = tpu.matmul %285, %286, %cst_95 {dimension_numbers = #tpu.dot_dimension_numbers<[1], [1], [0], [0], [0, 0, 1, 0], [], []>} : vector<8x8xf32>, vector<16x8xf32>, vector<8x16xf32> -> vector<8x16xf32>
    %288 = arith.addf %287, %3 : vector<8x16xf32>
    %cst_96 = arith.constant dense<0xFF800000> : vector<8xf32>
    %289 = vector.multi_reduction <maximumf>, %288, %cst_96 [1] : vector<8x16xf32> to vector<8xf32>
    %290 = vector.shape_cast %289 : vector<8xf32> to vector<8x1xf32>
    %291 = vector.broadcast %290 : vector<8x1xf32> to vector<8x16xf32>
    %292 = arith.subf %288, %291 : vector<8x16xf32>
    %293 = math.exp %292 : vector<8x16xf32>
    %cst_97 = arith.constant dense<0.000000e+00> : vector<8xf32>
    %294 = vector.multi_reduction <add>, %293, %cst_97 [1] : vector<8x16xf32> to vector<8xf32>
    %295 = vector.shape_cast %294 : vector<8xf32> to vector<8x1xf32>
    %296 = tpu.reciprocal %295 {approx = true} : vector<8x1xf32> -> vector<8x1xf32>
    %297 = vector.broadcast %296 : vector<8x1xf32> to vector<8x16xf32>
    %298 = arith.mulf %293, %297 : vector<8x16xf32>
    %299 = vector.extract_strided_slice %283 {offsets = [0, 0], sizes = [16, 8], strides = [1, 1]} : vector<16x32xf32> to vector<16x8xf32>
    %cst_98 = arith.constant dense<0.000000e+00> : vector<8x8xf32>
    %300 = tpu.matmul %298, %299, %cst_98 {dimension_numbers = #tpu.dot_dimension_numbers<[1], [0], [0], [1], [0, 0, 1, 1], [], []>} : vector<8x16xf32>, vector<16x8xf32>, vector<8x8xf32> -> vector<8x8xf32>
    %301 = vector.extract_strided_slice %278 {offsets = [0, 8], sizes = [8, 8], strides = [1, 1]} : vector<8x32xf32> to vector<8x8xf32>
    %302 = vector.extract_strided_slice %282 {offsets = [0, 8], sizes = [16, 8], strides = [1, 1]} : vector<16x32xf32> to vector<16x8xf32>
    %cst_99 = arith.constant dense<0.000000e+00> : vector<8x16xf32>
    %303 = tpu.matmul %301, %302, %cst_99 {dimension_numbers = #tpu.dot_dimension_numbers<[1], [1], [0], [0], [0, 0, 1, 0], [], []>} : vector<8x8xf32>, vector<16x8xf32>, vector<8x16xf32> -> vector<8x16xf32>
    %304 = arith.addf %303, %3 : vector<8x16xf32>
    %cst_100 = arith.constant dense<0xFF800000> : vector<8xf32>
    %305 = vector.multi_reduction <maximumf>, %304, %cst_100 [1] : vector<8x16xf32> to vector<8xf32>
    %306 = vector.shape_cast %305 : vector<8xf32> to vector<8x1xf32>
    %307 = vector.broadcast %306 : vector<8x1xf32> to vector<8x16xf32>
    %308 = arith.subf %304, %307 : vector<8x16xf32>
    %309 = math.exp %308 : vector<8x16xf32>
    %cst_101 = arith.constant dense<0.000000e+00> : vector<8xf32>
    %310 = vector.multi_reduction <add>, %309, %cst_101 [1] : vector<8x16xf32> to vector<8xf32>
    %311 = vector.shape_cast %310 : vector<8xf32> to vector<8x1xf32>
    %312 = tpu.reciprocal %311 {approx = true} : vector<8x1xf32> -> vector<8x1xf32>
    %313 = vector.broadcast %312 : vector<8x1xf32> to vector<8x16xf32>
    %314 = arith.mulf %309, %313 : vector<8x16xf32>
    %315 = vector.extract_strided_slice %283 {offsets = [0, 8], sizes = [16, 8], strides = [1, 1]} : vector<16x32xf32> to vector<16x8xf32>
    %cst_102 = arith.constant dense<0.000000e+00> : vector<8x8xf32>
    %316 = tpu.matmul %314, %315, %cst_102 {dimension_numbers = #tpu.dot_dimension_numbers<[1], [0], [0], [1], [0, 0, 1, 1], [], []>} : vector<8x16xf32>, vector<16x8xf32>, vector<8x8xf32> -> vector<8x8xf32>
    %317 = vector.extract_strided_slice %278 {offsets = [0, 16], sizes = [8, 8], strides = [1, 1]} : vector<8x32xf32> to vector<8x8xf32>
    %318 = vector.extract_strided_slice %282 {offsets = [0, 16], sizes = [16, 8], strides = [1, 1]} : vector<16x32xf32> to vector<16x8xf32>
    %cst_103 = arith.constant dense<0.000000e+00> : vector<8x16xf32>
    %319 = tpu.matmul %317, %318, %cst_103 {dimension_numbers = #tpu.dot_dimension_numbers<[1], [1], [0], [0], [0, 0, 1, 0], [], []>} : vector<8x8xf32>, vector<16x8xf32>, vector<8x16xf32> -> vector<8x16xf32>
    %320 = arith.addf %319, %3 : vector<8x16xf32>
    %cst_104 = arith.constant dense<0xFF800000> : vector<8xf32>
    %321 = vector.multi_reduction <maximumf>, %320, %cst_104 [1] : vector<8x16xf32> to vector<8xf32>
    %322 = vector.shape_cast %321 : vector<8xf32> to vector<8x1xf32>
    %323 = vector.broadcast %322 : vector<8x1xf32> to vector<8x16xf32>
    %324 = arith.subf %320, %323 : vector<8x16xf32>
    %325 = math.exp %324 : vector<8x16xf32>
    %cst_105 = arith.constant dense<0.000000e+00> : vector<8xf32>
    %326 = vector.multi_reduction <add>, %325, %cst_105 [1] : vector<8x16xf32> to vector<8xf32>
    %327 = vector.shape_cast %326 : vector<8xf32> to vector<8x1xf32>
    %328 = tpu.reciprocal %327 {approx = true} : vector<8x1xf32> -> vector<8x1xf32>
    %329 = vector.broadcast %328 : vector<8x1xf32> to vector<8x16xf32>
    %330 = arith.mulf %325, %329 : vector<8x16xf32>
    %331 = vector.extract_strided_slice %283 {offsets = [0, 16], sizes = [16, 8], strides = [1, 1]} : vector<16x32xf32> to vector<16x8xf32>
    %cst_106 = arith.constant dense<0.000000e+00> : vector<8x8xf32>
    %332 = tpu.matmul %330, %331, %cst_106 {dimension_numbers = #tpu.dot_dimension_numbers<[1], [0], [0], [1], [0, 0, 1, 1], [], []>} : vector<8x16xf32>, vector<16x8xf32>, vector<8x8xf32> -> vector<8x8xf32>
    %333 = vector.extract_strided_slice %278 {offsets = [0, 24], sizes = [8, 8], strides = [1, 1]} : vector<8x32xf32> to vector<8x8xf32>
    %334 = vector.extract_strided_slice %282 {offsets = [0, 24], sizes = [16, 8], strides = [1, 1]} : vector<16x32xf32> to vector<16x8xf32>
    %cst_107 = arith.constant dense<0.000000e+00> : vector<8x16xf32>
    %335 = tpu.matmul %333, %334, %cst_107 {dimension_numbers = #tpu.dot_dimension_numbers<[1], [1], [0], [0], [0, 0, 1, 0], [], []>} : vector<8x8xf32>, vector<16x8xf32>, vector<8x16xf32> -> vector<8x16xf32>
    %336 = arith.addf %335, %3 : vector<8x16xf32>
    %cst_108 = arith.constant dense<0xFF800000> : vector<8xf32>
    %337 = vector.multi_reduction <maximumf>, %336, %cst_108 [1] : vector<8x16xf32> to vector<8xf32>
    %338 = vector.shape_cast %337 : vector<8xf32> to vector<8x1xf32>
    %339 = vector.broadcast %338 : vector<8x1xf32> to vector<8x16xf32>
    %340 = arith.subf %336, %339 : vector<8x16xf32>
    %341 = math.exp %340 : vector<8x16xf32>
    %cst_109 = arith.constant dense<0.000000e+00> : vector<8xf32>
    %342 = vector.multi_reduction <add>, %341, %cst_109 [1] : vector<8x16xf32> to vector<8xf32>
    %343 = vector.shape_cast %342 : vector<8xf32> to vector<8x1xf32>
    %344 = tpu.reciprocal %343 {approx = true} : vector<8x1xf32> -> vector<8x1xf32>
    %345 = vector.broadcast %344 : vector<8x1xf32> to vector<8x16xf32>
    %346 = arith.mulf %341, %345 : vector<8x16xf32>
    %347 = vector.extract_strided_slice %283 {offsets = [0, 24], sizes = [16, 8], strides = [1, 1]} : vector<16x32xf32> to vector<16x8xf32>
    %cst_110 = arith.constant dense<0.000000e+00> : vector<8x8xf32>
    %348 = tpu.matmul %346, %347, %cst_110 {dimension_numbers = #tpu.dot_dimension_numbers<[1], [0], [0], [1], [0, 0, 1, 1], [], []>} : vector<8x16xf32>, vector<16x8xf32>, vector<8x8xf32> -> vector<8x8xf32>
    %349 = tpu.concatenate %300, %316, %332, %348 in 1 : vector<8x8xf32>, vector<8x8xf32>, vector<8x8xf32>, vector<8x8xf32> -> vector<8x32xf32>
    %cst_111 = arith.constant dense<0.000000e+00> : vector<8x32xf32>
    %350 = tpu.matmul %349, %284, %cst_111 {dimension_numbers = #tpu.dot_dimension_numbers<[1], [0], [0], [1], [0, 0, 1, 1], [], []>} : vector<8x32xf32>, vector<32x32xf32>, vector<8x32xf32> -> vector<8x32xf32>
    %351 = tpu.concatenate %275, %350 in 0 : vector<8x32xf32>, vector<8x32xf32> -> vector<16x32xf32>
    %352 = arith.addf %176, %351 : vector<16x32xf32>
    %353 = vector.extract_strided_slice %4 {offsets = [4, 0], sizes = [1, 32], strides = [1, 1]} : vector<6x32xf32> to vector<1x32xf32>
    %354 = vector.extract_strided_slice %4 {offsets = [5, 0], sizes = [1, 32], strides = [1, 1]} : vector<6x32xf32> to vector<1x32xf32>
    %cst_112 = arith.constant dense<0.000000e+00> : vector<16xf32>
    %355 = vector.multi_reduction <add>, %352, %cst_112 [1] : vector<16x32xf32> to vector<16xf32>
    %356 = vector.shape_cast %355 : vector<16xf32> to vector<16x1xf32>
    %cst_113 = arith.constant 3.200000e+01 : f32
    %357 = vector.broadcast %cst_113 : f32 to vector<16x1xf32>
    %358 = arith.divf %356, %357 : vector<16x1xf32>
    %359 = vector.broadcast %358 : vector<16x1xf32> to vector<16x32xf32>
    %360 = arith.subf %352, %359 : vector<16x32xf32>
    %361 = arith.mulf %360, %360 : vector<16x32xf32>
    %cst_114 = arith.constant dense<0.000000e+00> : vector<16xf32>
    %362 = vector.multi_reduction <add>, %361, %cst_114 [1] : vector<16x32xf32> to vector<16xf32>
    %363 = vector.shape_cast %362 : vector<16xf32> to vector<16x1xf32>
    %cst_115 = arith.constant 3.100000e+01 : f32
    %364 = vector.broadcast %cst_115 : f32 to vector<16x1xf32>
    %365 = arith.divf %363, %364 : vector<16x1xf32>
    %366 = math.sqrt %365 : vector<16x1xf32>
    %367 = vector.broadcast %358 : vector<16x1xf32> to vector<16x32xf32>
    %368 = arith.subf %352, %367 : vector<16x32xf32>
    %369 = vector.broadcast %353 : vector<1x32xf32> to vector<16x32xf32>
    %370 = arith.mulf %369, %368 : vector<16x32xf32>
    %cst_116 = arith.constant 9.99999997E-7 : f32
    %371 = vector.broadcast %cst_116 : f32 to vector<16x1xf32>
    %372 = arith.addf %366, %371 : vector<16x1xf32>
    %373 = vector.broadcast %372 : vector<16x1xf32> to vector<16x32xf32>
    %374 = arith.divf %370, %373 : vector<16x32xf32>
    %375 = vector.broadcast %354 : vector<1x32xf32> to vector<16x32xf32>
    %376 = arith.addf %374, %375 : vector<16x32xf32>
    %c0_117 = arith.constant 0 : index
    %c0_118 = arith.constant 0 : index
    %377 = vector.load %arg11[%c0_117, %c0_118] : memref<32x64xf32, #tpu.memory_space<vmem>>, vector<32x64xf32>
    %cst_119 = arith.constant dense<0.000000e+00> : vector<16x64xf32>
    %378 = tpu.matmul %376, %377, %cst_119 {dimension_numbers = #tpu.dot_dimension_numbers<[1], [0], [0], [1], [0, 0, 1, 1], [], []>} : vector<16x32xf32>, vector<32x64xf32>, vector<16x64xf32> -> vector<16x64xf32>
    %c0_120 = arith.constant 0 : index
    %c0_121 = arith.constant 0 : index
    %379 = vector.load %arg12[%c0_120, %c0_121] : memref<1x64xf32, #tpu.memory_space<vmem>>, vector<1x64xf32>
    %380 = vector.broadcast %379 : vector<1x64xf32> to vector<16x64xf32>
    %381 = arith.addf %378, %380 : vector<16x64xf32>
    %cst_122 = arith.constant 0.000000e+00 : f32
    %382 = vector.broadcast %cst_122 : f32 to vector<16x64xf32>
    %383 = arith.maximumf %381, %382 : vector<16x64xf32>
    %c0_123 = arith.constant 0 : index
    %c0_124 = arith.constant 0 : index
    %384 = vector.load %arg13[%c0_123, %c0_124] : memref<64x32xf32, #tpu.memory_space<vmem>>, vector<64x32xf32>
    %cst_125 = arith.constant dense<0.000000e+00> : vector<16x32xf32>
    %385 = tpu.matmul %383, %384, %cst_125 {dimension_numbers = #tpu.dot_dimension_numbers<[1], [0], [0], [1], [0, 0, 1, 1], [], []>} : vector<16x64xf32>, vector<64x32xf32>, vector<16x32xf32> -> vector<16x32xf32>
    %386 = arith.addf %352, %385 : vector<16x32xf32>
    %c0_126 = arith.constant 0 : index
    %c0_127 = arith.constant 0 : index
    %387 = vector.load %arg14[%c0_126, %c0_127] : memref<1x32xf32, #tpu.memory_space<vmem>>, vector<1x32xf32>
    %388 = vector.broadcast %387 : vector<1x32xf32> to vector<16x32xf32>
    %389 = arith.addf %386, %388 : vector<16x32xf32>
    %c0_128 = arith.constant 0 : index
    %c0_129 = arith.constant 0 : index
    %390 = vector.load %arg15[%c0_128, %c0_129] : memref<16x32xf32, #tpu.memory_space<vmem>>, vector<16x32xf32>
    tpu.vector_store %arg15[%c0_128, %c0_129], %389 {strides = array<i32>} : memref<16x32xf32, #tpu.memory_space<vmem>>, vector<16x32xf32>,
    return
  }
  func.func @transform_0(%arg0: i32) -> (i32, i32) {
    %c0_i32 = arith.constant 0 : i32
    %c0_i32_0 = arith.constant 0 : i32
    %c0_i32_1 = arith.constant 0 : i32
    return %c0_i32, %c0_i32_0 : i32, i32
  }
  func.func @transform_1(%arg0: i32) -> (i32, i32) {
    %c0_i32 = arith.constant 0 : i32
    %c0_i32_0 = arith.constant 0 : i32
    %c0_i32_1 = arith.constant 0 : i32
    return %c0_i32, %c0_i32_0 : i32, i32
  }
  func.func @transform_2(%arg0: i32) -> (i32, i32) {
    %c0_i32 = arith.constant 0 : i32
    %c0_i32_0 = arith.constant 0 : i32
    %c0_i32_1 = arith.constant 0 : i32
    return %c0_i32, %c0_i32_0 : i32, i32
  }
  func.func @transform_3(%arg0: i32) -> (i32, i32) {
    %c0_i32 = arith.constant 0 : i32
    %c0_i32_0 = arith.constant 0 : i32
    %c0_i32_1 = arith.constant 0 : i32
    return %c0_i32, %c0_i32_0 : i32, i32
  }
  func.func @transform_4(%arg0: i32) -> (i32, i32) {
    %c0_i32 = arith.constant 0 : i32
    %c0_i32_0 = arith.constant 0 : i32
    %c0_i32_1 = arith.constant 0 : i32
    return %c0_i32, %c0_i32_0 : i32, i32
  }
  func.func @transform_5(%arg0: i32) -> (i32, i32) {
    %c0_i32 = arith.constant 0 : i32
    %c0_i32_0 = arith.constant 0 : i32
    %c0_i32_1 = arith.constant 0 : i32
    return %c0_i32, %c0_i32_0 : i32, i32
  }
  func.func @transform_6(%arg0: i32) -> (i32, i32) {
    %c0_i32 = arith.constant 0 : i32
    %c0_i32_0 = arith.constant 0 : i32
    %c0_i32_1 = arith.constant 0 : i32
    return %c0_i32, %c0_i32_0 : i32, i32
  }
  func.func @transform_7(%arg0: i32) -> (i32, i32) {
    %c0_i32 = arith.constant 0 : i32
    %c0_i32_0 = arith.constant 0 : i32
    %c0_i32_1 = arith.constant 0 : i32
    return %c0_i32, %c0_i32_0 : i32, i32
  }
  func.func @transform_8(%arg0: i32) -> (i32, i32) {
    %c0_i32 = arith.constant 0 : i32
    %c0_i32_0 = arith.constant 0 : i32
    %c0_i32_1 = arith.constant 0 : i32
    return %c0_i32, %c0_i32_0 : i32, i32
  }
  func.func @transform_9(%arg0: i32) -> (i32, i32) {
    %c0_i32 = arith.constant 0 : i32
    %c0_i32_0 = arith.constant 0 : i32
    %c0_i32_1 = arith.constant 0 : i32
    return %c0_i32, %c0_i32_0 : i32, i32
  }
  func.func @transform_10(%arg0: i32) -> (i32, i32) {
    %c0_i32 = arith.constant 0 : i32
    %c0_i32_0 = arith.constant 0 : i32
    %c0_i32_1 = arith.constant 0 : i32
    return %c0_i32, %c0_i32_0 : i32, i32
  }
  func.func @transform_11(%arg0: i32) -> (i32, i32) {
    %c0_i32 = arith.constant 0 : i32
    %c0_i32_0 = arith.constant 0 : i32
    %c0_i32_1 = arith.constant 0 : i32
    return %c0_i32, %c0_i32_0 : i32, i32
  }
  func.func @transform_12(%arg0: i32) -> (i32, i32) {
    %c0_i32 = arith.constant 0 : i32
    %c0_i32_0 = arith.constant 0 : i32
    %c0_i32_1 = arith.constant 0 : i32
    return %c0_i32, %c0_i32_0 : i32, i32
  }
  func.func @transform_13(%arg0: i32) -> (i32, i32) {
    %c0_i32 = arith.constant 0 : i32
    %c0_i32_0 = arith.constant 0 : i32
    %c0_i32_1 = arith.constant 0 : i32
    return %c0_i32, %c0_i32_0 : i32, i32
  }
  func.func @transform_14(%arg0: i32) -> (i32, i32) {
    %c0_i32 = arith.constant 0 : i32
    %c0_i32_0 = arith.constant 0 : i32
    %c0_i32_1 = arith.constant 0 : i32
    return %c0_i32, %c0_i32_0 : i32, i32
  }
}

</mosaic_0001>

<llo_original>
// kernel: tpu_custom_call.1
$region0: #{tpu_custom_call.1}
  #allocation0 [shape = 'u32[]', space=smem, size = 0x4, offset = 0x4, fixed_abs, tag = 'smem constant byte address 0x4 - core index']
  #allocation1 [shape = 'u32[144,128]{1,0:T(1,128)}', space=vmem, size = 0x12000, scoped, tag = 'internal scratch']
  %s0 = inlined_call_operand.hbm [shape: f32[16,32], index: 0, kind: input, shape index: {}]
  %s1 = inlined_call_operand.vmem [shape: f32[32,32], index: 1, kind: input, shape index: {}]
  %s2 = inlined_call_operand.hbm [shape: f32[8,8], index: 2, kind: input, shape index: {}]
  %s3 = inlined_call_operand.hbm [shape: f32[8,16], index: 3, kind: input, shape index: {}]
  %s4 = inlined_call_operand.hbm [shape: f32[6,32], index: 4, kind: input, shape index: {}]
  %s5 = inlined_call_operand.vmem [shape: f32[32,96], index: 5, kind: input, shape index: {}]
  %s6 = inlined_call_operand.vmem [shape: f32[32,32], index: 6, kind: input, shape index: {}]
  %s7 = inlined_call_operand.hbm [shape: f32[32,32], index: 7, kind: input, shape index: {}]
  %s8 = inlined_call_operand.hbm [shape: f32[32,64], index: 8, kind: input, shape index: {}]
  %s9 = inlined_call_operand.hbm [shape: f32[32,32], index: 9, kind: input, shape index: {}]
  %s10 = inlined_call_operand.hbm [shape: f32[32,64], index: 10, kind: input, shape index: {}]
  %s11 = inlined_call_operand.vmem [shape: f32[1,64], index: 11, kind: input, shape index: {}]
  %s12 = inlined_call_operand.vmem [shape: f32[64,32], index: 12, kind: input, shape index: {}]
  %s13 = inlined_call_operand.vmem [shape: f32[1,32], index: 13, kind: input, shape index: {}]
  %s14 = inlined_call_operand.hbm [shape: f32[16,32], index: 14, kind: output, shape index: {}]
  %s15 = sld [smem:[#allocation0]]
  $region98: #{tpu_custom_call.1} parent=0
    _
  %s17 = ssub.s32 1, %s15
  %s18 = scalar_select 0, %s17, %s15
  $region1: #{tpu_custom_call.1} parent=0
    #allocation2 [shape = 'u8[8192]{0}', space=vmem, size = 0x2000, scoped, tag = 'input window, operand 0, single buffered']
    #allocation3 [shape = 's32[1]{0}', space=sflag, size = 0x4, scoped, tag = 'scoped memory for tpu_custom_call.1']
    #allocation4 [shape = 's32[1]{0}', space=sflag, size = 0x4, scoped, tag = 'scoped memory for tpu_custom_call.1']
    #allocation5 [shape = 'u8[4096]{0}', space=vmem, size = 0x1000, scoped, tag = 'input window, operand 2, single buffered']
    #allocation6 [shape = 's32[1]{0}', space=sflag, size = 0x4, scoped, tag = 'scoped memory for tpu_custom_call.1']
    #allocation7 [shape = 'u8[4096]{0}', space=vmem, size = 0x1000, scoped, tag = 'input window, operand 3, single buffered']
    #allocation8 [shape = 'u8[4096]{0}', space=vmem, size = 0x1000, scoped, tag = 'input window, operand 4, single buffered']
    #allocation9 [shape = 's32[1]{0}', space=sflag, size = 0x4, scoped, tag = 'scoped memory for tpu_custom_call.1']
    #allocation10 [shape = 'u8[16384]{0}', space=vmem, size = 0x4000, scoped, tag = 'input window, operand 7, single buffered']
    #allocation11 [shape = 'u8[16384]{0}', space=vmem, size = 0x4000, scoped, tag = 'input window, operand 8, single buffered']
    #allocation12 [shape = 's32[1]{0}', space=sflag, size = 0x4, scoped, tag = 'scoped memory for tpu_custom_call.1']
    #allocation13 [shape = 'u8[16384]{0}', space=vmem, size = 0x4000, scoped, tag = 'input window, operand 9, single buffered']
    #allocation14 [shape = 'u8[16384]{0}', space=vmem, size = 0x4000, scoped, tag = 'input window, operand 10, single buffered']
    #allocation15 [shape = 's32[1]{0}', space=sflag, size = 0x4, scoped, tag = 'scoped memory for tpu_custom_call.1']
    #allocation16 [shape = 'u8[8192]{0}', space=vmem, size = 0x2000, scoped, tag = 'output window, operand 0, single buffered']
    %19 = vsyncpa [#allocation3], 0
    %20 = vsyncpa [#allocation6], 0
    %21 = vsyncpa [#allocation9], 0
    %22 = vsyncpa [#allocation12], 0
    %23 = vsyncpa [#allocation15], 0
    %24 = vsyncpa [#allocation4], 0
    // Predicated region
    $region2: #{tpu_custom_call.1} parent=1 // pred_check
      _
    $region3: #{tpu_custom_call.1} parent=1 // pred_check_branch
      %26 = sbr.rel (0) target = $region5
    $region4: #{tpu_custom_call.1} parent=1 // pred_region
      %s28 = ssub.s32 256, 256
      %29 = vsyncadd [#allocation3], %s28
      %s30 = sshll.u32 [#allocation2], 4
      %s31 = int_to_ptr.vmem [resolvable:$true] %s30
      %36 = dma.hbm_to_vmem [thread:$0]  %s0, 256, %s31, [#allocation3], 128, 128, 8
    $region5: #{tpu_custom_call.1} parent=1 // pred_fallthru
      _
    // Predicated region
    $region6: #{tpu_custom_call.1} parent=1 // pred_check
      _
    $region7: #{tpu_custom_call.1} parent=1 // pred_check_branch
      %38 = sbr.rel (0) target = $region9
    $region8: #{tpu_custom_call.1} parent=1 // pred_region
      _
    $region9: #{tpu_custom_call.1} parent=1 // pred_fallthru
      _
    // Predicated region
    $region10: #{tpu_custom_call.1} parent=1 // pred_check
      _
    $region11: #{tpu_custom_call.1} parent=1 // pred_check_branch
      %40 = sbr.rel (0) target = $region13
    $region12: #{tpu_custom_call.1} parent=1 // pred_region
      %s42 = ssub.s32 128, 128
      %43 = vsyncadd [#allocation6], %s42
      %s45 = sshll.u32 [#allocation5], 4
      %s46 = int_to_ptr.vmem [resolvable:$true] %s45
      %48 = dma.hbm_to_vmem [thread:$0]  %s2, 128, %s46, [#allocation6]
    $region13: #{tpu_custom_call.1} parent=1 // pred_fallthru
      _
    // Predicated region
    $region14: #{tpu_custom_call.1} parent=1 // pred_check
      _
    $region15: #{tpu_custom_call.1} parent=1 // pred_check_branch
      %50 = sbr.rel (0) target = $region17
    $region16: #{tpu_custom_call.1} parent=1 // pred_region
      %s52 = ssub.s32 128, 128
      %53 = vsyncadd [#allocation6], %s52
      %s55 = sshll.u32 [#allocation7], 4
      %s56 = int_to_ptr.vmem [resolvable:$true] %s55
      %58 = dma.hbm_to_vmem [thread:$0]  %s3, 128, %s56, [#allocation6]
    $region17: #{tpu_custom_call.1} parent=1 // pred_fallthru
      _
    // Predicated region
    $region18: #{tpu_custom_call.1} parent=1 // pred_check
      _
    $region19: #{tpu_custom_call.1} parent=1 // pred_check_branch
      %60 = sbr.rel (0) target = $region21
    $region20: #{tpu_custom_call.1} parent=1 // pred_region
      %s62 = ssub.s32 128, 128
      %63 = vsyncadd [#allocation9], %s62
      %s65 = sshll.u32 [#allocation8], 4
      %s66 = int_to_ptr.vmem [resolvable:$true] %s65
      %68 = dma.hbm_to_vmem [thread:$0]  %s4, 128, %s66, [#allocation9]
    $region21: #{tpu_custom_call.1} parent=1 // pred_fallthru
      _
    // Predicated region
    $region22: #{tpu_custom_call.1} parent=1 // pred_check
      _
    $region23: #{tpu_custom_call.1} parent=1 // pred_check_branch
      %70 = sbr.rel (0) target = $region25
    $region24: #{tpu_custom_call.1} parent=1 // pred_region
      _
    $region25: #{tpu_custom_call.1} parent=1 // pred_fallthru
      _
    // Predicated region
    $region26: #{tpu_custom_call.1} parent=1 // pred_check
      _
    $region27: #{tpu_custom_call.1} parent=1 // pred_check_branch
      %72 = sbr.rel (0) target = $region29
    $region28: #{tpu_custom_call.1} parent=1 // pred_region
      _
    $region29: #{tpu_custom_call.1} parent=1 // pred_fallthru
      _
    // Predicated region
    $region30: #{tpu_custom_call.1} parent=1 // pred_check
      _
    $region31: #{tpu_custom_call.1} parent=1 // pred_check_branch
      %74 = sbr.rel (0) target = $region33
    $region32: #{tpu_custom_call.1} parent=1 // pred_region
      %s76 = ssub.s32 512, 512
      %77 = vsyncadd [#allocation9], %s76
      %s78 = sshll.u32 [#allocation10], 4
      %s79 = int_to_ptr.vmem [resolvable:$true] %s78
      %84 = dma.hbm_to_vmem [thread:$0]  %s7, 512, %s79, [#allocation9], 128, 128, 8
    $region33: #{tpu_custom_call.1} parent=1 // pred_fallthru
      _
    // Predicated region
    $region34: #{tpu_custom_call.1} parent=1 // pred_check
      _
    $region35: #{tpu_custom_call.1} parent=1 // pred_check_branch
      %86 = sbr.rel (0) target = $region37
    $region36: #{tpu_custom_call.1} parent=1 // pred_region
      %s88 = ssub.s32 512, 512
      %89 = vsyncadd [#allocation12], %s88
      %s90 = sshll.u32 [#allocation11], 4
      %s91 = int_to_ptr.vmem [resolvable:$true] %s90
      %96 = dma.hbm_to_vmem [thread:$0]  %s8, 512, %s91, [#allocation12], 128, 128, 8
    $region37: #{tpu_custom_call.1} parent=1 // pred_fallthru
      _
    // Predicated region
    $region38: #{tpu_custom_call.1} parent=1 // pred_check
      _
    $region39: #{tpu_custom_call.1} parent=1 // pred_check_branch
      %98 = sbr.rel (0) target = $region41
    $region40: #{tpu_custom_call.1} parent=1 // pred_region
      %s100 = ssub.s32 512, 512
      %101 = vsyncadd [#allocation12], %s100
      %s102 = sshll.u32 [#allocation13], 4
      %s103 = int_to_ptr.vmem [resolvable:$true] %s102
      %108 = dma.hbm_to_vmem [thread:$0]  %s9, 512, %s103, [#allocation12], 128, 128, 8
    $region41: #{tpu_custom_call.1} parent=1 // pred_fallthru
      _
    // Predicated region
    $region42: #{tpu_custom_call.1} parent=1 // pred_check
      _
    $region43: #{tpu_custom_call.1} parent=1 // pred_check_branch
      %110 = sbr.rel (0) target = $region45
    $region44: #{tpu_custom_call.1} parent=1 // pred_region
      %s112 = ssub.s32 512, 512
      %113 = vsyncadd [#allocation15], %s112
      %s114 = sshll.u32 [#allocation14], 4
      %s115 = int_to_ptr.vmem [resolvable:$true] %s114
      %120 = dma.hbm_to_vmem [thread:$0]  %s10, 512, %s115, [#allocation15], 128, 128, 8
    $region45: #{tpu_custom_call.1} parent=1 // pred_fallthru
      _
    // Predicated region
    $region46: #{tpu_custom_call.1} parent=1 // pred_check
      _
    $region47: #{tpu_custom_call.1} parent=1 // pred_check_branch
      %122 = sbr.rel (0) target = $region49
    $region48: #{tpu_custom_call.1} parent=1 // pred_region
      _
    $region49: #{tpu_custom_call.1} parent=1 // pred_fallthru
      _
    // Predicated region
    $region50: #{tpu_custom_call.1} parent=1 // pred_check
      _
    $region51: #{tpu_custom_call.1} parent=1 // pred_check_branch
      %124 = sbr.rel (0) target = $region53
    $region52: #{tpu_custom_call.1} parent=1 // pred_region
      _
    $region53: #{tpu_custom_call.1} parent=1 // pred_fallthru
      _
    // Predicated region
    $region54: #{tpu_custom_call.1} parent=1 // pred_check
      _
    $region55: #{tpu_custom_call.1} parent=1 // pred_check_branch
      %126 = sbr.rel (0) target = $region57
    $region56: #{tpu_custom_call.1} parent=1 // pred_region
      _
    $region57: #{tpu_custom_call.1} parent=1 // pred_fallthru
      _
    // Predicated region
    $region58: #{tpu_custom_call.1} parent=1 // pred_check
      _
    $region59: #{tpu_custom_call.1} parent=1 // pred_check_branch
      %128 = sbr.rel (0) target = $region61
    $region60: #{tpu_custom_call.1} parent=1 // pred_region
      %129 = dma.done [#allocation3], 256
    $region61: #{tpu_custom_call.1} parent=1 // pred_fallthru
      _
    // Predicated region
    $region62: #{tpu_custom_call.1} parent=1 // pred_check
      _
    $region63: #{tpu_custom_call.1} parent=1 // pred_check_branch
      %131 = sbr.rel (0) target = $region65
    $region64: #{tpu_custom_call.1} parent=1 // pred_region
      %132 = dma.done [#allocation6], 128
    $region65: #{tpu_custom_call.1} parent=1 // pred_fallthru
      _
    // Predicated region
    $region66: #{tpu_custom_call.1} parent=1 // pred_check
      _
    $region67: #{tpu_custom_call.1} parent=1 // pred_check_branch
      %134 = sbr.rel (0) target = $region69
    $region68: #{tpu_custom_call.1} parent=1 // pred_region
      %135 = dma.done [#allocation6], 128
    $region69: #{tpu_custom_call.1} parent=1 // pred_fallthru
      _
    // Predicated region
    $region70: #{tpu_custom_call.1} parent=1 // pred_check
      _
    $region71: #{tpu_custom_call.1} parent=1 // pred_check_branch
      %137 = sbr.rel (0) target = $region73
    $region72: #{tpu_custom_call.1} parent=1 // pred_region
      %138 = dma.done [#allocation9], 128
    $region73: #{tpu_custom_call.1} parent=1 // pred_fallthru
      _
    // Predicated region
    $region74: #{tpu_custom_call.1} parent=1 // pred_check
      _
    $region75: #{tpu_custom_call.1} parent=1 // pred_check_branch
      %140 = sbr.rel (0) target = $region77
    $region76: #{tpu_custom_call.1} parent=1 // pred_region
      %141 = dma.done [#allocation9], 512
    $region77: #{tpu_custom_call.1} parent=1 // pred_fallthru
      _
    // Predicated region
    $region78: #{tpu_custom_call.1} parent=1 // pred_check
      _
    $region79: #{tpu_custom_call.1} parent=1 // pred_check_branch
      %143 = sbr.rel (0) target = $region81
    $region80: #{tpu_custom_call.1} parent=1 // pred_region
      %144 = dma.done [#allocation12], 512
    $region81: #{tpu_custom_call.1} parent=1 // pred_fallthru
      _
    // Predicated region
    $region82: #{tpu_custom_call.1} parent=1 // pred_check
      _
    $region83: #{tpu_custom_call.1} parent=1 // pred_check_branch
      %146 = sbr.rel (0) target = $region85
    $region84: #{tpu_custom_call.1} parent=1 // pred_region
      %147 = dma.done [#allocation12], 512
    $region85: #{tpu_custom_call.1} parent=1 // pred_fallthru
      _
    // Predicated region
    $region86: #{tpu_custom_call.1} parent=1 // pred_check
      _
    $region87: #{tpu_custom_call.1} parent=1 // pred_check_branch
      %149 = sbr.rel (0) target = $region89
    $region88: #{tpu_custom_call.1} parent=1 // pred_region
      %150 = dma.done [#allocation15], 512
    $region89: #{tpu_custom_call.1} parent=1 // pred_fallthru
      _
    %v151 = vld [vmem:[#allocation2] sm:$0xff]
    %v152 = vld [vmem:[#allocation2 + $0x8] sm:$0xff]
    %v153 = vld [vmem:[%s1] sm:$0xff]
    %v154 = vld [vmem:[%s1 + $0x8] sm:$0xff]
    %v155 = vld [vmem:[%s1 + $0x10] sm:$0xff]
    %v156 = vld [vmem:[%s1 + $0x18] sm:$0xff]
    %v157 = vld [vmem:[#allocation5] sm:$0xff]
    %v158 = vld [vmem:[#allocation7] sm:$0xff]
    %v159 = vld [vmem:[#allocation8] sm:$0x3f]
    %vm160 = vcmask 261120
    %v161 = vsel %vm160, %v151, 0.0
    %162 = vadd.xlane.f32.xlu0 %v161
    %v163 = vpop.xlane.xlu0 %162
    %v164 = vsel %vm160, %v152, 0.0
    %165 = vadd.xlane.f32.xlu0 %v164
    %v166 = vpop.xlane.xlu0 %165
    %v167 = vrcp.pop 32.0
    %v168 = vmul.f32 %v163, %v167
    %v169 = vmul.f32 %v166, %v167
    %v170 = vsub.f32 %v151, %v168
    %v171 = vsub.f32 %v152, %v169
    %v172 = vmul.f32 %v170, %v170
    %v173 = vmul.f32 %v171, %v171
    %v174 = vsel %vm160, %v172, 0.0
    %175 = vadd.xlane.f32.xlu0 %v174
    %v176 = vpop.xlane.xlu0 %175
    %v177 = vsel %vm160, %v173, 0.0
    %178 = vadd.xlane.f32.xlu0 %v177
    %v179 = vpop.xlane.xlu0 %178
    %v180 = vrcp.pop 31.0
    %v181 = vmul.f32 %v176, %v180
    %v182 = vmul.f32 %v179, %v180
    %v183 = vrsqrt.pop %v181
    %v184 = vmul.f32 %v181, %v183
    %vm185 = vcmp.eq.f32.partialorder %v181, inf
    %v186 = vsel %vm185, %v181, %v184
    %vm187 = vcmp.eq.f32.partialorder %v181, 0.0
    %v188 = vand.u32 %v181, 2147483648
    %v189 = vsel %vm187, %v188, %v186
    %v190 = vrsqrt.pop %v182
    %v191 = vmul.f32 %v182, %v190
    %vm192 = vcmp.eq.f32.partialorder %v182, inf
    %v193 = vsel %vm192, %v182, %v191
    %vm194 = vcmp.eq.f32.partialorder %v182, 0.0
    %v195 = vand.u32 %v182, 2147483648
    %v196 = vsel %vm194, %v195, %v193
    %v197 = vlaneseq
    %v198 = vshrl.u32 %v197, 7
    %v199 = vsub.s32 0, %v198
    %v200 = vrot.slane %v159, %v199
    %v201 = vmul.f32 %v200, %v170
    %v202 = vmul.f32 %v200, %v171
    %v203 = vadd.f32 %v189, 1e-06
    %v204 = vadd.f32 %v196, 1e-06
    %v205 = vrcp.pop %v203
    %v206 = vmul.f32 %v201, %v205
    %v207 = vrcp.pop %v204
    %v208 = vmul.f32 %v202, %v207
    %v209 = vlaneseq
    %v210 = vshrl.u32 %v209, 7
    %v211 = vsub.s32 1, %v210
    %v212 = vrot.slane %v159, %v211
    %v213 = vadd.f32 %v206, %v212
    %v214 = vadd.f32 %v208, %v212
    %v215 = vld [vmem:[%s5] sm:$0xff]
    %v216 = vld [vmem:[%s5 + $0x8] sm:$0xff]
    %v217 = vld [vmem:[%s5 + $0x10] sm:$0xff]
    %v218 = vld [vmem:[%s5 + $0x18] sm:$0xff]
    %v220 = vsel %vm160, %v213, 0
    %222 = vmatprep.subr.mxu0 0.0
    %223 = vmatpush1.msra.mxu0 0.0
    %224 = vmatprep.subr.mxu0 0.0
    %225 = vmatpush1.msra.mxu0 0.0
    %226 = vmatprep.subr.mxu0 0.0
    %227 = vmatpush1.msra.mxu0 0.0
    %228 = vmatprep.subr.mxu0 0.0
    %229 = vmatpush1.msra.mxu0 0.0
    %230 = vmatprep.subr.mxu0 0.0
    %231 = vmatpush1.msra.mxu0 0.0
    %232 = vmatprep.subr.mxu0 0.0
    %233 = vmatpush1.msra.mxu0 0.0
    %234 = vmatprep.subr.mxu0 0.0
    %235 = vmatpush1.msra.mxu0 0.0
    %236 = vmatprep.subr.mxu0 0.0
    %237 = vmatpush1.msra.mxu0 0.0
    %238 = vmatprep.subr.mxu0 0.0
    %239 = vmatpush1.msra.mxu0 0.0
    %240 = vmatprep.subr.mxu0 0.0
    %241 = vmatpush1.msra.mxu0 0.0
    %242 = vmatprep.subr.mxu0 0.0
    %243 = vmatpush1.msra.mxu0 0.0
    %244 = vmatprep.subr.mxu0 0.0
    %245 = vmatpush1.msra.mxu0 0.0
    %246 = vmatprep.subr.mxu0 0.0
    %247 = vmatpush1.msra.mxu0 %v218
    %248 = vmatprep.subr.mxu0 0.0
    %249 = vmatpush1.msra.mxu0 %v217
    %250 = vmatprep.subr.mxu0 0.0
    %251 = vmatpush1.msra.mxu0 %v216
    %252 = vmatprep.subr.mxu0 0.0
    %253 = vmatpush1.msra.mxu0 %v215
    %254 = vmatprep.subr.mxu0 0.0
    %255 = vmatpush2.msra.mxu0 0.0
    %256 = vmatprep.subr.mxu0 0.0
    %257 = vmatpush2.msra.mxu0 0.0
    %258 = vmatprep.subr.mxu0 0.0
    %259 = vmatpush2.msra.mxu0 0.0
    %260 = vmatprep.subr.mxu0 0.0
    %261 = vmatpush2.msra.mxu0 0.0
    %262 = vmatprep.subr.mxu0 0.0
    %263 = vmatpush2.msra.mxu0 0.0
    %264 = vmatprep.subr.mxu0 0.0
    %265 = vmatpush2.msra.mxu0 0.0
    %266 = vmatprep.subr.mxu0 0.0
    %267 = vmatpush2.msra.mxu0 0.0
    %268 = vmatprep.subr.mxu0 0.0
    %269 = vmatpush2.msra.mxu0 0.0
    %270 = vmatprep.subr.mxu0 0.0
    %271 = vmatpush2.msra.mxu0 0.0
    %272 = vmatprep.subr.mxu0 0.0
    %273 = vmatpush2.msra.mxu0 0.0
    %274 = vmatprep.subr.mxu0 0.0
    %275 = vmatpush2.msra.mxu0 0.0
    %276 = vmatprep.subr.mxu0 0.0
    %277 = vmatpush2.msra.mxu0 0.0
    %278 = vmatprep.subr.mxu0 0.0
    %279 = vmatpush2.msra.mxu0 0.0
    %280 = vmatprep.subr.mxu0 0.0
    %281 = vmatpush2.msra.mxu0 0.0
    %282 = vmatprep.subr.mxu0 0.0
    %283 = vmatpush2.msra.mxu0 0.0
    %284 = vmatprep.subr.mxu0 0.0
    %285 = vmatpush2.msra.mxu0 0.0
    %286 = vmatprep.mubr.f32.mxu0 0.0
    %287 = vmatmul.mubr.f32.gmra.mxu0 %v220
    %v288 = vpop.f32.mrf.mxu0
    %v289 = vadd.f32 0.0, %v288
    %v290 = vpop.f32.mrf.mxu0
    %291 = vdwg.mxu0
    %v292 = vld [vmem:[%s6] sm:$0xff]
    %v293 = vld [vmem:[%s6 + $0x8] sm:$0xff]
    %v294 = vld [vmem:[%s6 + $0x10] sm:$0xff]
    %v295 = vld [vmem:[%s6 + $0x18] sm:$0xff]
    %297 = vrot.lane.b32.xlu0 %v289, 96
    %v298 = vpop.permute.xlu0 %297
    %vm299 = vcmask 64512
    %v300 = vsel %vm299, %v289, 0
    %v302 = vsel %vm299, %v298, 0
    %304 = vmatprep.subr.mxu0 0.0
    %305 = vmatpush1.xpose.msra.mxu0 0.0
    %306 = vmatprep.subr.mxu0 0.0
    %307 = vmatpush1.xpose.msra.mxu0 0.0
    %308 = vmatprep.subr.mxu0 0.0
    %309 = vmatpush1.xpose.msra.mxu0 0.0
    %310 = vmatprep.subr.mxu0 0.0
    %311 = vmatpush1.xpose.msra.mxu0 0.0
    %312 = vmatprep.subr.mxu0 0.0
    %313 = vmatpush1.xpose.msra.mxu0 0.0
    %314 = vmatprep.subr.mxu0 0.0
    %315 = vmatpush1.xpose.msra.mxu0 0.0
    %316 = vmatprep.subr.mxu0 0.0
    %317 = vmatpush1.xpose.msra.mxu0 0.0
    %318 = vmatprep.subr.mxu0 0.0
    %319 = vmatpush1.xpose.msra.mxu0 0.0
    %320 = vmatprep.subr.mxu0 0.0
    %321 = vmatpush1.xpose.msra.mxu0 0.0
    %322 = vmatprep.subr.mxu0 0.0
    %323 = vmatpush1.xpose.msra.mxu0 0.0
    %324 = vmatprep.subr.mxu0 0.0
    %325 = vmatpush1.xpose.msra.mxu0 0.0
    %326 = vmatprep.subr.mxu0 0.0
    %327 = vmatpush1.xpose.msra.mxu0 0.0
    %328 = vmatprep.subr.mxu0 0.0
    %329 = vmatpush1.xpose.msra.mxu0 0.0
    %330 = vmatprep.subr.mxu0 0.0
    %331 = vmatpush1.xpose.msra.mxu0 0.0
    %332 = vmatprep.subr.mxu0 0.0
    %333 = vmatpush1.xpose.msra.mxu0 0.0
    %334 = vmatprep.subr.mxu0 0.0
    %335 = vmatpush1.xpose.msra.mxu0 %v302
    %336 = vmatprep.subr.mxu0 0.0
    %337 = vmatpush2.xpose.msra.mxu0 0.0
    %338 = vmatprep.subr.mxu0 0.0
    %339 = vmatpush2.xpose.msra.mxu0 0.0
    %340 = vmatprep.subr.mxu0 0.0
    %341 = vmatpush2.xpose.msra.mxu0 0.0
    %342 = vmatprep.subr.mxu0 0.0
    %343 = vmatpush2.xpose.msra.mxu0 0.0
    %344 = vmatprep.subr.mxu0 0.0
    %345 = vmatpush2.xpose.msra.mxu0 0.0
    %346 = vmatprep.subr.mxu0 0.0
    %347 = vmatpush2.xpose.msra.mxu0 0.0
    %348 = vmatprep.subr.mxu0 0.0
    %349 = vmatpush2.xpose.msra.mxu0 0.0
    %350 = vmatprep.subr.mxu0 0.0
    %351 = vmatpush2.xpose.msra.mxu0 0.0
    %352 = vmatprep.subr.mxu0 0.0
    %353 = vmatpush2.xpose.msra.mxu0 0.0
    %354 = vmatprep.subr.mxu0 0.0
    %355 = vmatpush2.xpose.msra.mxu0 0.0
    %356 = vmatprep.subr.mxu0 0.0
    %357 = vmatpush2.xpose.msra.mxu0 0.0
    %358 = vmatprep.subr.mxu0 0.0
    %359 = vmatpush2.xpose.msra.mxu0 0.0
    %360 = vmatprep.subr.mxu0 0.0
    %361 = vmatpush2.xpose.msra.mxu0 0.0
    %362 = vmatprep.subr.mxu0 0.0
    %363 = vmatpush2.xpose.msra.mxu0 0.0
    %364 = vmatprep.subr.mxu0 0.0
    %365 = vmatpush2.xpose.msra.mxu0 0.0
    %366 = vmatprep.subr.mxu0 0.0
    %367 = vmatpush2.xpose.msra.mxu0 0.0
    %368 = vmatprep.mubr.f32.mxu0 0.0
    %369 = vmatmul.mubr.f32.gmra.mxu0 %v300
    %v370 = vpop.f32.mrf.mxu0
    %v371 = vadd.f32 %v157, %v370
    %v372 = vpop.f32.mrf.mxu0
    %373 = vdwg.mxu0
    %v374 = vsel %vm299, %v371, -inf
    %375 = vmax.xlane.f32.xlu0 %v374
    %v376 = vpop.xlane.xlu0 %375
    %v377 = vsub.f32 %v371, %v376
    %v378 = vmul.f32 %v377, 1.442695
    %v379 = vpow.pop %v378
    %v380 = vsel %vm299, %v379, 0.0
    %381 = vadd.xlane.f32.xlu0 %v380
    %v382 = vpop.xlane.xlu0 %381
    %v383 = vrcp.pop %v382
    %v384 = vmul.f32 %v379, %v383
    %385 = vrot.lane.b32.xlu0 %v289, 64
    %v386 = vpop.permute.xlu0 %385
    %v389 = vsel %vm299, %v384, 0
    %391 = vmatprep.subr.mxu0 0.0
    %392 = vmatpush1.msra.mxu0 0.0
    %393 = vmatprep.subr.mxu0 0.0
    %394 = vmatpush1.msra.mxu0 0.0
    %395 = vmatprep.subr.mxu0 0.0
    %396 = vmatpush1.msra.mxu0 0.0
    %397 = vmatprep.subr.mxu0 0.0
    %398 = vmatpush1.msra.mxu0 0.0
    %399 = vmatprep.subr.mxu0 0.0
    %400 = vmatpush1.msra.mxu0 0.0
    %401 = vmatprep.subr.mxu0 0.0
    %402 = vmatpush1.msra.mxu0 0.0
    %403 = vmatprep.subr.mxu0 0.0
    %404 = vmatpush1.msra.mxu0 0.0
    %405 = vmatprep.subr.mxu0 0.0
    %406 = vmatpush1.msra.mxu0 0.0
    %407 = vmatprep.subr.mxu0 0.0
    %408 = vmatpush1.msra.mxu0 0.0
    %409 = vmatprep.subr.mxu0 0.0
    %410 = vmatpush1.msra.mxu0 0.0
    %411 = vmatprep.subr.mxu0 0.0
    %412 = vmatpush1.msra.mxu0 0.0
    %413 = vmatprep.subr.mxu0 0.0
    %414 = vmatpush1.msra.mxu0 0.0
    %415 = vmatprep.subr.mxu0 0.0
    %416 = vmatpush1.msra.mxu0 0.0
    %417 = vmatprep.subr.mxu0 0.0
    %418 = vmatpush1.msra.mxu0 0.0
    %419 = vmatprep.subr.mxu0 0.0
    %420 = vmatpush1.msra.mxu0 0.0
    %421 = vmatprep.subr.mxu0 0.0
    %422 = vmatpush1.msra.mxu0 %v386
    %423 = vmatprep.subr.mxu0 0.0
    %424 = vmatpush2.msra.mxu0 0.0
    %425 = vmatprep.subr.mxu0 0.0
    %426 = vmatpush2.msra.mxu0 0.0
    %427 = vmatprep.subr.mxu0 0.0
    %428 = vmatpush2.msra.mxu0 0.0
    %429 = vmatprep.subr.mxu0 0.0
    %430 = vmatpush2.msra.mxu0 0.0
    %431 = vmatprep.subr.mxu0 0.0
    %432 = vmatpush2.msra.mxu0 0.0
    %433 = vmatprep.subr.mxu0 0.0
    %434 = vmatpush2.msra.mxu0 0.0
    %435 = vmatprep.subr.mxu0 0.0
    %436 = vmatpush2.msra.mxu0 0.0
    %437 = vmatprep.subr.mxu0 0.0
    %438 = vmatpush2.msra.mxu0 0.0
    %439 = vmatprep.subr.mxu0 0.0
    %440 = vmatpush2.msra.mxu0 0.0
    %441 = vmatprep.subr.mxu0 0.0
    %442 = vmatpush2.msra.mxu0 0.0
    %443 = vmatprep.subr.mxu0 0.0
    %444 = vmatpush2.msra.mxu0 0.0
    %445 = vmatprep.subr.mxu0 0.0
    %446 = vmatpush2.msra.mxu0 0.0
    %447 = vmatprep.subr.mxu0 0.0
    %448 = vmatpush2.msra.mxu0 0.0
    %449 = vmatprep.subr.mxu0 0.0
    %450 = vmatpush2.msra.mxu0 0.0
    %451 = vmatprep.subr.mxu0 0.0
    %452 = vmatpush2.msra.mxu0 0.0
    %453 = vmatprep.subr.mxu0 0.0
    %454 = vmatpush2.msra.mxu0 0.0
    %455 = vmatprep.mubr.f32.mxu0 0.0
    %456 = vmatmul.mubr.f32.gmra.mxu0 %v389
    %v457 = vpop.f32.mrf.mxu0
    %v458 = vadd.f32 0.0, %v457
    %v459 = vpop.f32.mrf.mxu0
    %460 = vdwg.mxu0
    %461 = vrot.lane.b32.xlu0 %v289, 120
    %v462 = vpop.permute.xlu0 %461
    %463 = vrot.lane.b32.xlu0 %v289, 88
    %v464 = vpop.permute.xlu0 %463
    %v465 = vsel %vm299, %v462, 0
    %v467 = vsel %vm299, %v464, 0
    %469 = vmatprep.subr.mxu0 0.0
    %470 = vmatpush1.xpose.msra.mxu0 0.0
    %471 = vmatprep.subr.mxu0 0.0
    %472 = vmatpush1.xpose.msra.mxu0 0.0
    %473 = vmatprep.subr.mxu0 0.0
    %474 = vmatpush1.xpose.msra.mxu0 0.0
    %475 = vmatprep.subr.mxu0 0.0
    %476 = vmatpush1.xpose.msra.mxu0 0.0
    %477 = vmatprep.subr.mxu0 0.0
    %478 = vmatpush1.xpose.msra.mxu0 0.0
    %479 = vmatprep.subr.mxu0 0.0
    %480 = vmatpush1.xpose.msra.mxu0 0.0
    %481 = vmatprep.subr.mxu0 0.0
    %482 = vmatpush1.xpose.msra.mxu0 0.0
    %483 = vmatprep.subr.mxu0 0.0
    %484 = vmatpush1.xpose.msra.mxu0 0.0
    %485 = vmatprep.subr.mxu0 0.0
    %486 = vmatpush1.xpose.msra.mxu0 0.0
    %487 = vmatprep.subr.mxu0 0.0
    %488 = vmatpush1.xpose.msra.mxu0 0.0
    %489 = vmatprep.subr.mxu0 0.0
    %490 = vmatpush1.xpose.msra.mxu0 0.0
    %491 = vmatprep.subr.mxu0 0.0
    %492 = vmatpush1.xpose.msra.mxu0 0.0
    %493 = vmatprep.subr.mxu0 0.0
    %494 = vmatpush1.xpose.msra.mxu0 0.0
    %495 = vmatprep.subr.mxu0 0.0
    %496 = vmatpush1.xpose.msra.mxu0 0.0
    %497 = vmatprep.subr.mxu0 0.0
    %498 = vmatpush1.xpose.msra.mxu0 0.0
    %499 = vmatprep.subr.mxu0 0.0
    %500 = vmatpush1.xpose.msra.mxu0 %v467
    %501 = vmatprep.subr.mxu0 0.0
    %502 = vmatpush2.xpose.msra.mxu0 0.0
    %503 = vmatprep.subr.mxu0 0.0
    %504 = vmatpush2.xpose.msra.mxu0 0.0
    %505 = vmatprep.subr.mxu0 0.0
    %506 = vmatpush2.xpose.msra.mxu0 0.0
    %507 = vmatprep.subr.mxu0 0.0
    %508 = vmatpush2.xpose.msra.mxu0 0.0
    %509 = vmatprep.subr.mxu0 0.0
    %510 = vmatpush2.xpose.msra.mxu0 0.0
    %511 = vmatprep.subr.mxu0 0.0
    %512 = vmatpush2.xpose.msra.mxu0 0.0
    %513 = vmatprep.subr.mxu0 0.0
    %514 = vmatpush2.xpose.msra.mxu0 0.0
    %515 = vmatprep.subr.mxu0 0.0
    %516 = vmatpush2.xpose.msra.mxu0 0.0
    %517 = vmatprep.subr.mxu0 0.0
    %518 = vmatpush2.xpose.msra.mxu0 0.0
    %519 = vmatprep.subr.mxu0 0.0
    %520 = vmatpush2.xpose.msra.mxu0 0.0
    %521 = vmatprep.subr.mxu0 0.0
    %522 = vmatpush2.xpose.msra.mxu0 0.0
    %523 = vmatprep.subr.mxu0 0.0
    %524 = vmatpush2.xpose.msra.mxu0 0.0
    %525 = vmatprep.subr.mxu0 0.0
    %526 = vmatpush2.xpose.msra.mxu0 0.0
    %527 = vmatprep.subr.mxu0 0.0
    %528 = vmatpush2.xpose.msra.mxu0 0.0
    %529 = vmatprep.subr.mxu0 0.0
    %530 = vmatpush2.xpose.msra.mxu0 0.0
    %531 = vmatprep.subr.mxu0 0.0
    %532 = vmatpush2.xpose.msra.mxu0 0.0
    %533 = vmatprep.mubr.f32.mxu0 0.0
    %534 = vmatmul.mubr.f32.gmra.mxu0 %v465
    %v535 = vpop.f32.mrf.mxu0
    %v536 = vadd.f32 %v157, %v535
    %v537 = vpop.f32.mrf.mxu0
    %538 = vdwg.mxu0
    %v539 = vsel %vm299, %v536, -inf
    %540 = vmax.xlane.f32.xlu0 %v539
    %v541 = vpop.xlane.xlu0 %540
    %v542 = vsub.f32 %v536, %v541
    %v543 = vmul.f32 %v542, 1.442695
    %v544 = vpow.pop %v543
    %v545 = vsel %vm299, %v544, 0.0
    %546 = vadd.xlane.f32.xlu0 %v545
    %v547 = vpop.xlane.xlu0 %546
    %v548 = vrcp.pop %v547
    %v549 = vmul.f32 %v544, %v548
    %550 = vrot.lane.b32.xlu0 %v289, 56
    %v551 = vpop.permute.xlu0 %550
    %v554 = vsel %vm299, %v549, 0
    %556 = vmatprep.subr.mxu0 0.0
    %557 = vmatpush1.msra.mxu0 0.0
    %558 = vmatprep.subr.mxu0 0.0
    %559 = vmatpush1.msra.mxu0 0.0
    %560 = vmatprep.subr.mxu0 0.0
    %561 = vmatpush1.msra.mxu0 0.0
    %562 = vmatprep.subr.mxu0 0.0
    %563 = vmatpush1.msra.mxu0 0.0
    %564 = vmatprep.subr.mxu0 0.0
    %565 = vmatpush1.msra.mxu0 0.0
    %566 = vmatprep.subr.mxu0 0.0
    %567 = vmatpush1.msra.mxu0 0.0
    %568 = vmatprep.subr.mxu0 0.0
    %569 = vmatpush1.msra.mxu0 0.0
    %570 = vmatprep.subr.mxu0 0.0
    %571 = vmatpush1.msra.mxu0 0.0
    %572 = vmatprep.subr.mxu0 0.0
    %573 = vmatpush1.msra.mxu0 0.0
    %574 = vmatprep.subr.mxu0 0.0
    %575 = vmatpush1.msra.mxu0 0.0
    %576 = vmatprep.subr.mxu0 0.0
    %577 = vmatpush1.msra.mxu0 0.0
    %578 = vmatprep.subr.mxu0 0.0
    %579 = vmatpush1.msra.mxu0 0.0
    %580 = vmatprep.subr.mxu0 0.0
    %581 = vmatpush1.msra.mxu0 0.0
    %582 = vmatprep.subr.mxu0 0.0
    %583 = vmatpush1.msra.mxu0 0.0
    %584 = vmatprep.subr.mxu0 0.0
    %585 = vmatpush1.msra.mxu0 0.0
    %586 = vmatprep.subr.mxu0 0.0
    %587 = vmatpush1.msra.mxu0 %v551
    %588 = vmatprep.subr.mxu0 0.0
    %589 = vmatpush2.msra.mxu0 0.0
    %590 = vmatprep.subr.mxu0 0.0
    %591 = vmatpush2.msra.mxu0 0.0
    %592 = vmatprep.subr.mxu0 0.0
    %593 = vmatpush2.msra.mxu0 0.0
    %594 = vmatprep.subr.mxu0 0.0
    %595 = vmatpush2.msra.mxu0 0.0
    %596 = vmatprep.subr.mxu0 0.0
    %597 = vmatpush2.msra.mxu0 0.0
    %598 = vmatprep.subr.mxu0 0.0
    %599 = vmatpush2.msra.mxu0 0.0
    %600 = vmatprep.subr.mxu0 0.0
    %601 = vmatpush2.msra.mxu0 0.0
    %602 = vmatprep.subr.mxu0 0.0
    %603 = vmatpush2.msra.mxu0 0.0
    %604 = vmatprep.subr.mxu0 0.0
    %605 = vmatpush2.msra.mxu0 0.0
    %606 = vmatprep.subr.mxu0 0.0
    %607 = vmatpush2.msra.mxu0 0.0
    %608 = vmatprep.subr.mxu0 0.0
    %609 = vmatpush2.msra.mxu0 0.0
    %610 = vmatprep.subr.mxu0 0.0
    %611 = vmatpush2.msra.mxu0 0.0
    %612 = vmatprep.subr.mxu0 0.0
    %613 = vmatpush2.msra.mxu0 0.0
    %614 = vmatprep.subr.mxu0 0.0
    %615 = vmatpush2.msra.mxu0 0.0
    %616 = vmatprep.subr.mxu0 0.0
    %617 = vmatpush2.msra.mxu0 0.0
    %618 = vmatprep.subr.mxu0 0.0
    %619 = vmatpush2.msra.mxu0 0.0
    %620 = vmatprep.mubr.f32.mxu0 0.0
    %621 = vmatmul.mubr.f32.gmra.mxu0 %v554
    %v622 = vpop.f32.mrf.mxu0
    %v623 = vadd.f32 0.0, %v622
    %v624 = vpop.f32.mrf.mxu0
    %625 = vdwg.mxu0
    %626 = vrot.lane.b32.xlu0 %v289, 112
    %v627 = vpop.permute.xlu0 %626
    %628 = vrot.lane.b32.xlu0 %v289, 80
    %v629 = vpop.permute.xlu0 %628
    %v630 = vsel %vm299, %v627, 0
    %v632 = vsel %vm299, %v629, 0
    %634 = vmatprep.subr.mxu0 0.0
    %635 = vmatpush1.xpose.msra.mxu0 0.0
    %636 = vmatprep.subr.mxu0 0.0
    %637 = vmatpush1.xpose.msra.mxu0 0.0
    %638 = vmatprep.subr.mxu0 0.0
    %639 = vmatpush1.xpose.msra.mxu0 0.0
    %640 = vmatprep.subr.mxu0 0.0
    %641 = vmatpush1.xpose.msra.mxu0 0.0
    %642 = vmatprep.subr.mxu0 0.0
    %643 = vmatpush1.xpose.msra.mxu0 0.0
    %644 = vmatprep.subr.mxu0 0.0
    %645 = vmatpush1.xpose.msra.mxu0 0.0
    %646 = vmatprep.subr.mxu0 0.0
    %647 = vmatpush1.xpose.msra.mxu0 0.0
    %648 = vmatprep.subr.mxu0 0.0
    %649 = vmatpush1.xpose.msra.mxu0 0.0
    %650 = vmatprep.subr.mxu0 0.0
    %651 = vmatpush1.xpose.msra.mxu0 0.0
    %652 = vmatprep.subr.mxu0 0.0
    %653 = vmatpush1.xpose.msra.mxu0 0.0
    %654 = vmatprep.subr.mxu0 0.0
    %655 = vmatpush1.xpose.msra.mxu0 0.0
    %656 = vmatprep.subr.mxu0 0.0
    %657 = vmatpush1.xpose.msra.mxu0 0.0
    %658 = vmatprep.subr.mxu0 0.0
    %659 = vmatpush1.xpose.msra.mxu0 0.0
    %660 = vmatprep.subr.mxu0 0.0
    %661 = vmatpush1.xpose.msra.mxu0 0.0
    %662 = vmatprep.subr.mxu0 0.0
    %663 = vmatpush1.xpose.msra.mxu0 0.0
    %664 = vmatprep.subr.mxu0 0.0
    %665 = vmatpush1.xpose.msra.mxu0 %v632
    %666 = vmatprep.subr.mxu0 0.0
    %667 = vmatpush2.xpose.msra.mxu0 0.0
    %668 = vmatprep.subr.mxu0 0.0
    %669 = vmatpush2.xpose.msra.mxu0 0.0
    %670 = vmatprep.subr.mxu0 0.0
    %671 = vmatpush2.xpose.msra.mxu0 0.0
    %672 = vmatprep.subr.mxu0 0.0
    %673 = vmatpush2.xpose.msra.mxu0 0.0
    %674 = vmatprep.subr.mxu0 0.0
    %675 = vmatpush2.xpose.msra.mxu0 0.0
    %676 = vmatprep.subr.mxu0 0.0
    %677 = vmatpush2.xpose.msra.mxu0 0.0
    %678 = vmatprep.subr.mxu0 0.0
    %679 = vmatpush2.xpose.msra.mxu0 0.0
    %680 = vmatprep.subr.mxu0 0.0
    %681 = vmatpush2.xpose.msra.mxu0 0.0
    %682 = vmatprep.subr.mxu0 0.0
    %683 = vmatpush2.xpose.msra.mxu0 0.0
    %684 = vmatprep.subr.mxu0 0.0
    %685 = vmatpush2.xpose.msra.mxu0 0.0
    %686 = vmatprep.subr.mxu0 0.0
    %687 = vmatpush2.xpose.msra.mxu0 0.0
    %688 = vmatprep.subr.mxu0 0.0
    %689 = vmatpush2.xpose.msra.mxu0 0.0
    %690 = vmatprep.subr.mxu0 0.0
    %691 = vmatpush2.xpose.msra.mxu0 0.0
    %692 = vmatprep.subr.mxu0 0.0
    %693 = vmatpush2.xpose.msra.mxu0 0.0
    %694 = vmatprep.subr.mxu0 0.0
    %695 = vmatpush2.xpose.msra.mxu0 0.0
    %696 = vmatprep.subr.mxu0 0.0
    %697 = vmatpush2.xpose.msra.mxu0 0.0
    %698 = vmatprep.mubr.f32.mxu0 0.0
    %699 = vmatmul.mubr.f32.gmra.mxu0 %v630
    %v700 = vpop.f32.mrf.mxu0
    %v701 = vadd.f32 %v157, %v700
    %v702 = vpop.f32.mrf.mxu0
    %703 = vdwg.mxu0
    %v704 = vsel %vm299, %v701, -inf
    %705 = vmax.xlane.f32.xlu0 %v704
    %v706 = vpop.xlane.xlu0 %705
    %v707 = vsub.f32 %v701, %v706
    %v708 = vmul.f32 %v707, 1.442695
    %v709 = vpow.pop %v708
    %v710 = vsel %vm299, %v709, 0.0
    %711 = vadd.xlane.f32.xlu0 %v710
    %v712 = vpop.xlane.xlu0 %711
    %v713 = vrcp.pop %v712
    %v714 = vmul.f32 %v709, %v713
    %715 = vrot.lane.b32.xlu0 %v289, 48
    %v716 = vpop.permute.xlu0 %715
    %v719 = vsel %vm299, %v714, 0
    %721 = vmatprep.subr.mxu0 0.0
    %722 = vmatpush1.msra.mxu0 0.0
    %723 = vmatprep.subr.mxu0 0.0
    %724 = vmatpush1.msra.mxu0 0.0
    %725 = vmatprep.subr.mxu0 0.0
    %726 = vmatpush1.msra.mxu0 0.0
    %727 = vmatprep.subr.mxu0 0.0
    %728 = vmatpush1.msra.mxu0 0.0
    %729 = vmatprep.subr.mxu0 0.0
    %730 = vmatpush1.msra.mxu0 0.0
    %731 = vmatprep.subr.mxu0 0.0
    %732 = vmatpush1.msra.mxu0 0.0
    %733 = vmatprep.subr.mxu0 0.0
    %734 = vmatpush1.msra.mxu0 0.0
    %735 = vmatprep.subr.mxu0 0.0
    %736 = vmatpush1.msra.mxu0 0.0
    %737 = vmatprep.subr.mxu0 0.0
    %738 = vmatpush1.msra.mxu0 0.0
    %739 = vmatprep.subr.mxu0 0.0
    %740 = vmatpush1.msra.mxu0 0.0
    %741 = vmatprep.subr.mxu0 0.0
    %742 = vmatpush1.msra.mxu0 0.0
    %743 = vmatprep.subr.mxu0 0.0
    %744 = vmatpush1.msra.mxu0 0.0
    %745 = vmatprep.subr.mxu0 0.0
    %746 = vmatpush1.msra.mxu0 0.0
    %747 = vmatprep.subr.mxu0 0.0
    %748 = vmatpush1.msra.mxu0 0.0
    %749 = vmatprep.subr.mxu0 0.0
    %750 = vmatpush1.msra.mxu0 0.0
    %751 = vmatprep.subr.mxu0 0.0
    %752 = vmatpush1.msra.mxu0 %v716
    %753 = vmatprep.subr.mxu0 0.0
    %754 = vmatpush2.msra.mxu0 0.0
    %755 = vmatprep.subr.mxu0 0.0
    %756 = vmatpush2.msra.mxu0 0.0
    %757 = vmatprep.subr.mxu0 0.0
    %758 = vmatpush2.msra.mxu0 0.0
    %759 = vmatprep.subr.mxu0 0.0
    %760 = vmatpush2.msra.mxu0 0.0
    %761 = vmatprep.subr.mxu0 0.0
    %762 = vmatpush2.msra.mxu0 0.0
    %763 = vmatprep.subr.mxu0 0.0
    %764 = vmatpush2.msra.mxu0 0.0
    %765 = vmatprep.subr.mxu0 0.0
    %766 = vmatpush2.msra.mxu0 0.0
    %767 = vmatprep.subr.mxu0 0.0
    %768 = vmatpush2.msra.mxu0 0.0
    %769 = vmatprep.subr.mxu0 0.0
    %770 = vmatpush2.msra.mxu0 0.0
    %771 = vmatprep.subr.mxu0 0.0
    %772 = vmatpush2.msra.mxu0 0.0
    %773 = vmatprep.subr.mxu0 0.0
    %774 = vmatpush2.msra.mxu0 0.0
    %775 = vmatprep.subr.mxu0 0.0
    %776 = vmatpush2.msra.mxu0 0.0
    %777 = vmatprep.subr.mxu0 0.0
    %778 = vmatpush2.msra.mxu0 0.0
    %779 = vmatprep.subr.mxu0 0.0
    %780 = vmatpush2.msra.mxu0 0.0
    %781 = vmatprep.subr.mxu0 0.0
    %782 = vmatpush2.msra.mxu0 0.0
    %783 = vmatprep.subr.mxu0 0.0
    %784 = vmatpush2.msra.mxu0 0.0
    %785 = vmatprep.mubr.f32.mxu0 0.0
    %786 = vmatmul.mubr.f32.gmra.mxu0 %v719
    %v787 = vpop.f32.mrf.mxu0
    %v788 = vadd.f32 0.0, %v787
    %v789 = vpop.f32.mrf.mxu0
    %790 = vdwg.mxu0
    %791 = vrot.lane.b32.xlu0 %v289, 104
    %v792 = vpop.permute.xlu0 %791
    %793 = vrot.lane.b32.xlu0 %v289, 72
    %v794 = vpop.permute.xlu0 %793
    %v795 = vsel %vm299, %v792, 0
    %v797 = vsel %vm299, %v794, 0
    %799 = vmatprep.subr.mxu0 0.0
    %800 = vmatpush1.xpose.msra.mxu0 0.0
    %801 = vmatprep.subr.mxu0 0.0
    %802 = vmatpush1.xpose.msra.mxu0 0.0
    %803 = vmatprep.subr.mxu0 0.0
    %804 = vmatpush1.xpose.msra.mxu0 0.0
    %805 = vmatprep.subr.mxu0 0.0
    %806 = vmatpush1.xpose.msra.mxu0 0.0
    %807 = vmatprep.subr.mxu0 0.0
    %808 = vmatpush1.xpose.msra.mxu0 0.0
    %809 = vmatprep.subr.mxu0 0.0
    %810 = vmatpush1.xpose.msra.mxu0 0.0
    %811 = vmatprep.subr.mxu0 0.0
    %812 = vmatpush1.xpose.msra.mxu0 0.0
    %813 = vmatprep.subr.mxu0 0.0
    %814 = vmatpush1.xpose.msra.mxu0 0.0
    %815 = vmatprep.subr.mxu0 0.0
    %816 = vmatpush1.xpose.msra.mxu0 0.0
    %817 = vmatprep.subr.mxu0 0.0
    %818 = vmatpush1.xpose.msra.mxu0 0.0
    %819 = vmatprep.subr.mxu0 0.0
    %820 = vmatpush1.xpose.msra.mxu0 0.0
    %821 = vmatprep.subr.mxu0 0.0
    %822 = vmatpush1.xpose.msra.mxu0 0.0
    %823 = vmatprep.subr.mxu0 0.0
    %824 = vmatpush1.xpose.msra.mxu0 0.0
    %825 = vmatprep.subr.mxu0 0.0
    %826 = vmatpush1.xpose.msra.mxu0 0.0
    %827 = vmatprep.subr.mxu0 0.0
    %828 = vmatpush1.xpose.msra.mxu0 0.0
    %829 = vmatprep.subr.mxu0 0.0
    %830 = vmatpush1.xpose.msra.mxu0 %v797
    %831 = vmatprep.subr.mxu0 0.0
    %832 = vmatpush2.xpose.msra.mxu0 0.0
    %833 = vmatprep.subr.mxu0 0.0
    %834 = vmatpush2.xpose.msra.mxu0 0.0
    %835 = vmatprep.subr.mxu0 0.0
    %836 = vmatpush2.xpose.msra.mxu0 0.0
    %837 = vmatprep.subr.mxu0 0.0
    %838 = vmatpush2.xpose.msra.mxu0 0.0
    %839 = vmatprep.subr.mxu0 0.0
    %840 = vmatpush2.xpose.msra.mxu0 0.0
    %841 = vmatprep.subr.mxu0 0.0
    %842 = vmatpush2.xpose.msra.mxu0 0.0
    %843 = vmatprep.subr.mxu0 0.0
    %844 = vmatpush2.xpose.msra.mxu0 0.0
    %845 = vmatprep.subr.mxu0 0.0
    %846 = vmatpush2.xpose.msra.mxu0 0.0
    %847 = vmatprep.subr.mxu0 0.0
    %848 = vmatpush2.xpose.msra.mxu0 0.0
    %849 = vmatprep.subr.mxu0 0.0
    %850 = vmatpush2.xpose.msra.mxu0 0.0
    %851 = vmatprep.subr.mxu0 0.0
    %852 = vmatpush2.xpose.msra.mxu0 0.0
    %853 = vmatprep.subr.mxu0 0.0
    %854 = vmatpush2.xpose.msra.mxu0 0.0
    %855 = vmatprep.subr.mxu0 0.0
    %856 = vmatpush2.xpose.msra.mxu0 0.0
    %857 = vmatprep.subr.mxu0 0.0
    %858 = vmatpush2.xpose.msra.mxu0 0.0
    %859 = vmatprep.subr.mxu0 0.0
    %860 = vmatpush2.xpose.msra.mxu0 0.0
    %861 = vmatprep.subr.mxu0 0.0
    %862 = vmatpush2.xpose.msra.mxu0 0.0
    %863 = vmatprep.mubr.f32.mxu0 0.0
    %864 = vmatmul.mubr.f32.gmra.mxu0 %v795
    %v865 = vpop.f32.mrf.mxu0
    %v866 = vadd.f32 %v157, %v865
    %v867 = vpop.f32.mrf.mxu0
    %868 = vdwg.mxu0
    %v869 = vsel %vm299, %v866, -inf
    %870 = vmax.xlane.f32.xlu0 %v869
    %v871 = vpop.xlane.xlu0 %870
    %v872 = vsub.f32 %v866, %v871
    %v873 = vmul.f32 %v872, 1.442695
    %v874 = vpow.pop %v873
    %v875 = vsel %vm299, %v874, 0.0
    %876 = vadd.xlane.f32.xlu0 %v875
    %v877 = vpop.xlane.xlu0 %876
    %v878 = vrcp.pop %v877
    %v879 = vmul.f32 %v874, %v878
    %880 = vrot.lane.b32.xlu0 %v289, 40
    %v881 = vpop.permute.xlu0 %880
    %v884 = vsel %vm299, %v879, 0
    %886 = vmatprep.subr.mxu0 0.0
    %887 = vmatpush1.msra.mxu0 0.0
    %888 = vmatprep.subr.mxu0 0.0
    %889 = vmatpush1.msra.mxu0 0.0
    %890 = vmatprep.subr.mxu0 0.0
    %891 = vmatpush1.msra.mxu0 0.0
    %892 = vmatprep.subr.mxu0 0.0
    %893 = vmatpush1.msra.mxu0 0.0
    %894 = vmatprep.subr.mxu0 0.0
    %895 = vmatpush1.msra.mxu0 0.0
    %896 = vmatprep.subr.mxu0 0.0
    %897 = vmatpush1.msra.mxu0 0.0
    %898 = vmatprep.subr.mxu0 0.0
    %899 = vmatpush1.msra.mxu0 0.0
    %900 = vmatprep.subr.mxu0 0.0
    %901 = vmatpush1.msra.mxu0 0.0
    %902 = vmatprep.subr.mxu0 0.0
    %903 = vmatpush1.msra.mxu0 0.0
    %904 = vmatprep.subr.mxu0 0.0
    %905 = vmatpush1.msra.mxu0 0.0
    %906 = vmatprep.subr.mxu0 0.0
    %907 = vmatpush1.msra.mxu0 0.0
    %908 = vmatprep.subr.mxu0 0.0
    %909 = vmatpush1.msra.mxu0 0.0
    %910 = vmatprep.subr.mxu0 0.0
    %911 = vmatpush1.msra.mxu0 0.0
    %912 = vmatprep.subr.mxu0 0.0
    %913 = vmatpush1.msra.mxu0 0.0
    %914 = vmatprep.subr.mxu0 0.0
    %915 = vmatpush1.msra.mxu0 0.0
    %916 = vmatprep.subr.mxu0 0.0
    %917 = vmatpush1.msra.mxu0 %v881
    %918 = vmatprep.subr.mxu0 0.0
    %919 = vmatpush2.msra.mxu0 0.0
    %920 = vmatprep.subr.mxu0 0.0
    %921 = vmatpush2.msra.mxu0 0.0
    %922 = vmatprep.subr.mxu0 0.0
    %923 = vmatpush2.msra.mxu0 0.0
    %924 = vmatprep.subr.mxu0 0.0
    %925 = vmatpush2.msra.mxu0 0.0
    %926 = vmatprep.subr.mxu0 0.0
    %927 = vmatpush2.msra.mxu0 0.0
    %928 = vmatprep.subr.mxu0 0.0
    %929 = vmatpush2.msra.mxu0 0.0
    %930 = vmatprep.subr.mxu0 0.0
    %931 = vmatpush2.msra.mxu0 0.0
    %932 = vmatprep.subr.mxu0 0.0
    %933 = vmatpush2.msra.mxu0 0.0
    %934 = vmatprep.subr.mxu0 0.0
    %935 = vmatpush2.msra.mxu0 0.0
    %936 = vmatprep.subr.mxu0 0.0
    %937 = vmatpush2.msra.mxu0 0.0
    %938 = vmatprep.subr.mxu0 0.0
    %939 = vmatpush2.msra.mxu0 0.0
    %940 = vmatprep.subr.mxu0 0.0
    %941 = vmatpush2.msra.mxu0 0.0
    %942 = vmatprep.subr.mxu0 0.0
    %943 = vmatpush2.msra.mxu0 0.0
    %944 = vmatprep.subr.mxu0 0.0
    %945 = vmatpush2.msra.mxu0 0.0
    %946 = vmatprep.subr.mxu0 0.0
    %947 = vmatpush2.msra.mxu0 0.0
    %948 = vmatprep.subr.mxu0 0.0
    %949 = vmatpush2.msra.mxu0 0.0
    %950 = vmatprep.mubr.f32.mxu0 0.0
    %951 = vmatmul.mubr.f32.gmra.mxu0 %v884
    %v952 = vpop.f32.mrf.mxu0
    %v953 = vadd.f32 0.0, %v952
    %v954 = vpop.f32.mrf.mxu0
    %955 = vdwg.mxu0
    %957 = vrot.lane.b32.xlu0 %v623, 8
    %v958 = vpop.permute.xlu0 %957
    %961 = vrot.lane.b32.xlu0 %v788, 16
    %v962 = vpop.permute.xlu0 %961
    %965 = vrot.lane.b32.xlu0 %v953, 24
    %v966 = vpop.permute.xlu0 %965
    %v968 = vsel %vm299, %v458, %v958
    %vm969 = vcmask 130048
    %v970 = vsel %vm969, %v968, %v962
    %vm971 = vcmask 195584
    %v972 = vsel %vm971, %v970, %v966
    %v974 = vsel %vm160, %v972, 0
    %976 = vmatprep.subr.mxu0 0.0
    %977 = vmatpush1.msra.mxu0 0.0
    %978 = vmatprep.subr.mxu0 0.0
    %979 = vmatpush1.msra.mxu0 0.0
    %980 = vmatprep.subr.mxu0 0.0
    %981 = vmatpush1.msra.mxu0 0.0
    %982 = vmatprep.subr.mxu0 0.0
    %983 = vmatpush1.msra.mxu0 0.0
    %984 = vmatprep.subr.mxu0 0.0
    %985 = vmatpush1.msra.mxu0 0.0
    %986 = vmatprep.subr.mxu0 0.0
    %987 = vmatpush1.msra.mxu0 0.0
    %988 = vmatprep.subr.mxu0 0.0
    %989 = vmatpush1.msra.mxu0 0.0
    %990 = vmatprep.subr.mxu0 0.0
    %991 = vmatpush1.msra.mxu0 0.0
    %992 = vmatprep.subr.mxu0 0.0
    %993 = vmatpush1.msra.mxu0 0.0
    %994 = vmatprep.subr.mxu0 0.0
    %995 = vmatpush1.msra.mxu0 0.0
    %996 = vmatprep.subr.mxu0 0.0
    %997 = vmatpush1.msra.mxu0 0.0
    %998 = vmatprep.subr.mxu0 0.0
    %999 = vmatpush1.msra.mxu0 0.0
    %1000 = vmatprep.subr.mxu0 0.0
    %1001 = vmatpush1.msra.mxu0 %v295
    %1002 = vmatprep.subr.mxu0 0.0
    %1003 = vmatpush1.msra.mxu0 %v294
    %1004 = vmatprep.subr.mxu0 0.0
    %1005 = vmatpush1.msra.mxu0 %v293
    %1006 = vmatprep.subr.mxu0 0.0
    %1007 = vmatpush1.msra.mxu0 %v292
    %1008 = vmatprep.subr.mxu0 0.0
    %1009 = vmatpush2.msra.mxu0 0.0
    %1010 = vmatprep.subr.mxu0 0.0
    %1011 = vmatpush2.msra.mxu0 0.0
    %1012 = vmatprep.subr.mxu0 0.0
    %1013 = vmatpush2.msra.mxu0 0.0
    %1014 = vmatprep.subr.mxu0 0.0
    %1015 = vmatpush2.msra.mxu0 0.0
    %1016 = vmatprep.subr.mxu0 0.0
    %1017 = vmatpush2.msra.mxu0 0.0
    %1018 = vmatprep.subr.mxu0 0.0
    %1019 = vmatpush2.msra.mxu0 0.0
    %1020 = vmatprep.subr.mxu0 0.0
    %1021 = vmatpush2.msra.mxu0 0.0
    %1022 = vmatprep.subr.mxu0 0.0
    %1023 = vmatpush2.msra.mxu0 0.0
    %1024 = vmatprep.subr.mxu0 0.0
    %1025 = vmatpush2.msra.mxu0 0.0
    %1026 = vmatprep.subr.mxu0 0.0
    %1027 = vmatpush2.msra.mxu0 0.0
    %1028 = vmatprep.subr.mxu0 0.0
    %1029 = vmatpush2.msra.mxu0 0.0
    %1030 = vmatprep.subr.mxu0 0.0
    %1031 = vmatpush2.msra.mxu0 0.0
    %1032 = vmatprep.subr.mxu0 0.0
    %1033 = vmatpush2.msra.mxu0 0.0
    %1034 = vmatprep.subr.mxu0 0.0
    %1035 = vmatpush2.msra.mxu0 0.0
    %1036 = vmatprep.subr.mxu0 0.0
    %1037 = vmatpush2.msra.mxu0 0.0
    %1038 = vmatprep.subr.mxu0 0.0
    %1039 = vmatpush2.msra.mxu0 0.0
    %1040 = vmatprep.mubr.f32.mxu0 0.0
    %1041 = vmatmul.mubr.f32.gmra.mxu0 %v974
    %v1042 = vpop.f32.mrf.mxu0
    %v1043 = vadd.f32 0.0, %v1042
    %v1044 = vpop.f32.mrf.mxu0
    %1045 = vdwg.mxu0
    %v1047 = vsel %vm160, %v214, 0
    %1049 = vmatprep.subr.mxu0 0.0
    %1050 = vmatpush1.msra.mxu0 0.0
    %1051 = vmatprep.subr.mxu0 0.0
    %1052 = vmatpush1.msra.mxu0 0.0
    %1053 = vmatprep.subr.mxu0 0.0
    %1054 = vmatpush1.msra.mxu0 0.0
    %1055 = vmatprep.subr.mxu0 0.0
    %1056 = vmatpush1.msra.mxu0 0.0
    %1057 = vmatprep.subr.mxu0 0.0
    %1058 = vmatpush1.msra.mxu0 0.0
    %1059 = vmatprep.subr.mxu0 0.0
    %1060 = vmatpush1.msra.mxu0 0.0
    %1061 = vmatprep.subr.mxu0 0.0
    %1062 = vmatpush1.msra.mxu0 0.0
    %1063 = vmatprep.subr.mxu0 0.0
    %1064 = vmatpush1.msra.mxu0 0.0
    %1065 = vmatprep.subr.mxu0 0.0
    %1066 = vmatpush1.msra.mxu0 0.0
    %1067 = vmatprep.subr.mxu0 0.0
    %1068 = vmatpush1.msra.mxu0 0.0
    %1069 = vmatprep.subr.mxu0 0.0
    %1070 = vmatpush1.msra.mxu0 0.0
    %1071 = vmatprep.subr.mxu0 0.0
    %1072 = vmatpush1.msra.mxu0 0.0
    %1073 = vmatprep.subr.mxu0 0.0
    %1074 = vmatpush1.msra.mxu0 %v218
    %1075 = vmatprep.subr.mxu0 0.0
    %1076 = vmatpush1.msra.mxu0 %v217
    %1077 = vmatprep.subr.mxu0 0.0
    %1078 = vmatpush1.msra.mxu0 %v216
    %1079 = vmatprep.subr.mxu0 0.0
    %1080 = vmatpush1.msra.mxu0 %v215
    %1081 = vmatprep.subr.mxu0 0.0
    %1082 = vmatpush2.msra.mxu0 0.0
    %1083 = vmatprep.subr.mxu0 0.0
    %1084 = vmatpush2.msra.mxu0 0.0
    %1085 = vmatprep.subr.mxu0 0.0
    %1086 = vmatpush2.msra.mxu0 0.0
    %1087 = vmatprep.subr.mxu0 0.0
    %1088 = vmatpush2.msra.mxu0 0.0
    %1089 = vmatprep.subr.mxu0 0.0
    %1090 = vmatpush2.msra.mxu0 0.0
    %1091 = vmatprep.subr.mxu0 0.0
    %1092 = vmatpush2.msra.mxu0 0.0
    %1093 = vmatprep.subr.mxu0 0.0
    %1094 = vmatpush2.msra.mxu0 0.0
    %1095 = vmatprep.subr.mxu0 0.0
    %1096 = vmatpush2.msra.mxu0 0.0
    %1097 = vmatprep.subr.mxu0 0.0
    %1098 = vmatpush2.msra.mxu0 0.0
    %1099 = vmatprep.subr.mxu0 0.0
    %1100 = vmatpush2.msra.mxu0 0.0
    %1101 = vmatprep.subr.mxu0 0.0
    %1102 = vmatpush2.msra.mxu0 0.0
    %1103 = vmatprep.subr.mxu0 0.0
    %1104 = vmatpush2.msra.mxu0 0.0
    %1105 = vmatprep.subr.mxu0 0.0
    %1106 = vmatpush2.msra.mxu0 0.0
    %1107 = vmatprep.subr.mxu0 0.0
    %1108 = vmatpush2.msra.mxu0 0.0
    %1109 = vmatprep.subr.mxu0 0.0
    %1110 = vmatpush2.msra.mxu0 0.0
    %1111 = vmatprep.subr.mxu0 0.0
    %1112 = vmatpush2.msra.mxu0 0.0
    %1113 = vmatprep.mubr.f32.mxu0 0.0
    %1114 = vmatmul.mubr.f32.gmra.mxu0 %v1047
    %v1115 = vpop.f32.mrf.mxu0
    %v1116 = vadd.f32 0.0, %v1115
    %v1117 = vpop.f32.mrf.mxu0
    %1118 = vdwg.mxu0
    %1120 = vrot.lane.b32.xlu0 %v1116, 96
    %v1121 = vpop.permute.xlu0 %1120
    %v1122 = vsel %vm299, %v1116, 0
    %v1124 = vsel %vm299, %v1121, 0
    %1126 = vmatprep.subr.mxu0 0.0
    %1127 = vmatpush1.xpose.msra.mxu0 0.0
    %1128 = vmatprep.subr.mxu0 0.0
    %1129 = vmatpush1.xpose.msra.mxu0 0.0
    %1130 = vmatprep.subr.mxu0 0.0
    %1131 = vmatpush1.xpose.msra.mxu0 0.0
    %1132 = vmatprep.subr.mxu0 0.0
    %1133 = vmatpush1.xpose.msra.mxu0 0.0
    %1134 = vmatprep.subr.mxu0 0.0
    %1135 = vmatpush1.xpose.msra.mxu0 0.0
    %1136 = vmatprep.subr.mxu0 0.0
    %1137 = vmatpush1.xpose.msra.mxu0 0.0
    %1138 = vmatprep.subr.mxu0 0.0
    %1139 = vmatpush1.xpose.msra.mxu0 0.0
    %1140 = vmatprep.subr.mxu0 0.0
    %1141 = vmatpush1.xpose.msra.mxu0 0.0
    %1142 = vmatprep.subr.mxu0 0.0
    %1143 = vmatpush1.xpose.msra.mxu0 0.0
    %1144 = vmatprep.subr.mxu0 0.0
    %1145 = vmatpush1.xpose.msra.mxu0 0.0
    %1146 = vmatprep.subr.mxu0 0.0
    %1147 = vmatpush1.xpose.msra.mxu0 0.0
    %1148 = vmatprep.subr.mxu0 0.0
    %1149 = vmatpush1.xpose.msra.mxu0 0.0
    %1150 = vmatprep.subr.mxu0 0.0
    %1151 = vmatpush1.xpose.msra.mxu0 0.0
    %1152 = vmatprep.subr.mxu0 0.0
    %1153 = vmatpush1.xpose.msra.mxu0 0.0
    %1154 = vmatprep.subr.mxu0 0.0
    %1155 = vmatpush1.xpose.msra.mxu0 0.0
    %1156 = vmatprep.subr.mxu0 0.0
    %1157 = vmatpush1.xpose.msra.mxu0 %v1124
    %1158 = vmatprep.subr.mxu0 0.0
    %1159 = vmatpush2.xpose.msra.mxu0 0.0
    %1160 = vmatprep.subr.mxu0 0.0
    %1161 = vmatpush2.xpose.msra.mxu0 0.0
    %1162 = vmatprep.subr.mxu0 0.0
    %1163 = vmatpush2.xpose.msra.mxu0 0.0
    %1164 = vmatprep.subr.mxu0 0.0
    %1165 = vmatpush2.xpose.msra.mxu0 0.0
    %1166 = vmatprep.subr.mxu0 0.0
    %1167 = vmatpush2.xpose.msra.mxu0 0.0
    %1168 = vmatprep.subr.mxu0 0.0
    %1169 = vmatpush2.xpose.msra.mxu0 0.0
    %1170 = vmatprep.subr.mxu0 0.0
    %1171 = vmatpush2.xpose.msra.mxu0 0.0
    %1172 = vmatprep.subr.mxu0 0.0
    %1173 = vmatpush2.xpose.msra.mxu0 0.0
    %1174 = vmatprep.subr.mxu0 0.0
    %1175 = vmatpush2.xpose.msra.mxu0 0.0
    %1176 = vmatprep.subr.mxu0 0.0
    %1177 = vmatpush2.xpose.msra.mxu0 0.0
    %1178 = vmatprep.subr.mxu0 0.0
    %1179 = vmatpush2.xpose.msra.mxu0 0.0
    %1180 = vmatprep.subr.mxu0 0.0
    %1181 = vmatpush2.xpose.msra.mxu0 0.0
    %1182 = vmatprep.subr.mxu0 0.0
    %1183 = vmatpush2.xpose.msra.mxu0 0.0
    %1184 = vmatprep.subr.mxu0 0.0
    %1185 = vmatpush2.xpose.msra.mxu0 0.0
    %1186 = vmatprep.subr.mxu0 0.0
    %1187 = vmatpush2.xpose.msra.mxu0 0.0
    %1188 = vmatprep.subr.mxu0 0.0
    %1189 = vmatpush2.xpose.msra.mxu0 0.0
    %1190 = vmatprep.mubr.f32.mxu0 0.0
    %1191 = vmatmul.mubr.f32.gmra.mxu0 %v1122
    %v1192 = vpop.f32.mrf.mxu0
    %v1193 = vadd.f32 %v157, %v1192
    %v1194 = vpop.f32.mrf.mxu0
    %1195 = vdwg.mxu0
    %v1196 = vsel %vm299, %v1193, -inf
    %1197 = vmax.xlane.f32.xlu0 %v1196
    %v1198 = vpop.xlane.xlu0 %1197
    %v1199 = vsub.f32 %v1193, %v1198
    %v1200 = vmul.f32 %v1199, 1.442695
    %v1201 = vpow.pop %v1200
    %v1202 = vsel %vm299, %v1201, 0.0
    %1203 = vadd.xlane.f32.xlu0 %v1202
    %v1204 = vpop.xlane.xlu0 %1203
    %v1205 = vrcp.pop %v1204
    %v1206 = vmul.f32 %v1201, %v1205
    %1207 = vrot.lane.b32.xlu0 %v1116, 64
    %v1208 = vpop.permute.xlu0 %1207
    %v1211 = vsel %vm299, %v1206, 0
    %1213 = vmatprep.subr.mxu0 0.0
    %1214 = vmatpush1.msra.mxu0 0.0
    %1215 = vmatprep.subr.mxu0 0.0
    %1216 = vmatpush1.msra.mxu0 0.0
    %1217 = vmatprep.subr.mxu0 0.0
    %1218 = vmatpush1.msra.mxu0 0.0
    %1219 = vmatprep.subr.mxu0 0.0
    %1220 = vmatpush1.msra.mxu0 0.0
    %1221 = vmatprep.subr.mxu0 0.0
    %1222 = vmatpush1.msra.mxu0 0.0
    %1223 = vmatprep.subr.mxu0 0.0
    %1224 = vmatpush1.msra.mxu0 0.0
    %1225 = vmatprep.subr.mxu0 0.0
    %1226 = vmatpush1.msra.mxu0 0.0
    %1227 = vmatprep.subr.mxu0 0.0
    %1228 = vmatpush1.msra.mxu0 0.0
    %1229 = vmatprep.subr.mxu0 0.0
    %1230 = vmatpush1.msra.mxu0 0.0
    %1231 = vmatprep.subr.mxu0 0.0
    %1232 = vmatpush1.msra.mxu0 0.0
    %1233 = vmatprep.subr.mxu0 0.0
    %1234 = vmatpush1.msra.mxu0 0.0
    %1235 = vmatprep.subr.mxu0 0.0
    %1236 = vmatpush1.msra.mxu0 0.0
    %1237 = vmatprep.subr.mxu0 0.0
    %1238 = vmatpush1.msra.mxu0 0.0
    %1239 = vmatprep.subr.mxu0 0.0
    %1240 = vmatpush1.msra.mxu0 0.0
    %1241 = vmatprep.subr.mxu0 0.0
    %1242 = vmatpush1.msra.mxu0 0.0
    %1243 = vmatprep.subr.mxu0 0.0
    %1244 = vmatpush1.msra.mxu0 %v1208
    %1245 = vmatprep.subr.mxu0 0.0
    %1246 = vmatpush2.msra.mxu0 0.0
    %1247 = vmatprep.subr.mxu0 0.0
    %1248 = vmatpush2.msra.mxu0 0.0
    %1249 = vmatprep.subr.mxu0 0.0
    %1250 = vmatpush2.msra.mxu0 0.0
    %1251 = vmatprep.subr.mxu0 0.0
    %1252 = vmatpush2.msra.mxu0 0.0
    %1253 = vmatprep.subr.mxu0 0.0
    %1254 = vmatpush2.msra.mxu0 0.0
    %1255 = vmatprep.subr.mxu0 0.0
    %1256 = vmatpush2.msra.mxu0 0.0
    %1257 = vmatprep.subr.mxu0 0.0
    %1258 = vmatpush2.msra.mxu0 0.0
    %1259 = vmatprep.subr.mxu0 0.0
    %1260 = vmatpush2.msra.mxu0 0.0
    %1261 = vmatprep.subr.mxu0 0.0
    %1262 = vmatpush2.msra.mxu0 0.0
    %1263 = vmatprep.subr.mxu0 0.0
    %1264 = vmatpush2.msra.mxu0 0.0
    %1265 = vmatprep.subr.mxu0 0.0
    %1266 = vmatpush2.msra.mxu0 0.0
    %1267 = vmatprep.subr.mxu0 0.0
    %1268 = vmatpush2.msra.mxu0 0.0
    %1269 = vmatprep.subr.mxu0 0.0
    %1270 = vmatpush2.msra.mxu0 0.0
    %1271 = vmatprep.subr.mxu0 0.0
    %1272 = vmatpush2.msra.mxu0 0.0
    %1273 = vmatprep.subr.mxu0 0.0
    %1274 = vmatpush2.msra.mxu0 0.0
    %1275 = vmatprep.subr.mxu0 0.0
    %1276 = vmatpush2.msra.mxu0 0.0
    %1277 = vmatprep.mubr.f32.mxu0 0.0
    %1278 = vmatmul.mubr.f32.gmra.mxu0 %v1211
    %v1279 = vpop.f32.mrf.mxu0
    %v1280 = vadd.f32 0.0, %v1279
    %v1281 = vpop.f32.mrf.mxu0
    %1282 = vdwg.mxu0
    %1283 = vrot.lane.b32.xlu0 %v1116, 120
    %v1284 = vpop.permute.xlu0 %1283
    %1285 = vrot.lane.b32.xlu0 %v1116, 88
    %v1286 = vpop.permute.xlu0 %1285
    %v1287 = vsel %vm299, %v1284, 0
    %v1289 = vsel %vm299, %v1286, 0
    %1291 = vmatprep.subr.mxu0 0.0
    %1292 = vmatpush1.xpose.msra.mxu0 0.0
    %1293 = vmatprep.subr.mxu0 0.0
    %1294 = vmatpush1.xpose.msra.mxu0 0.0
    %1295 = vmatprep.subr.mxu0 0.0
    %1296 = vmatpush1.xpose.msra.mxu0 0.0
    %1297 = vmatprep.subr.mxu0 0.0
    %1298 = vmatpush1.xpose.msra.mxu0 0.0
    %1299 = vmatprep.subr.mxu0 0.0
    %1300 = vmatpush1.xpose.msra.mxu0 0.0
    %1301 = vmatprep.subr.mxu0 0.0
    %1302 = vmatpush1.xpose.msra.mxu0 0.0
    %1303 = vmatprep.subr.mxu0 0.0
    %1304 = vmatpush1.xpose.msra.mxu0 0.0
    %1305 = vmatprep.subr.mxu0 0.0
    %1306 = vmatpush1.xpose.msra.mxu0 0.0
    %1307 = vmatprep.subr.mxu0 0.0
    %1308 = vmatpush1.xpose.msra.mxu0 0.0
    %1309 = vmatprep.subr.mxu0 0.0
    %1310 = vmatpush1.xpose.msra.mxu0 0.0
    %1311 = vmatprep.subr.mxu0 0.0
    %1312 = vmatpush1.xpose.msra.mxu0 0.0
    %1313 = vmatprep.subr.mxu0 0.0
    %1314 = vmatpush1.xpose.msra.mxu0 0.0
    %1315 = vmatprep.subr.mxu0 0.0
    %1316 = vmatpush1.xpose.msra.mxu0 0.0
    %1317 = vmatprep.subr.mxu0 0.0
    %1318 = vmatpush1.xpose.msra.mxu0 0.0
    %1319 = vmatprep.subr.mxu0 0.0
    %1320 = vmatpush1.xpose.msra.mxu0 0.0
    %1321 = vmatprep.subr.mxu0 0.0
    %1322 = vmatpush1.xpose.msra.mxu0 %v1289
    %1323 = vmatprep.subr.mxu0 0.0
    %1324 = vmatpush2.xpose.msra.mxu0 0.0
    %1325 = vmatprep.subr.mxu0 0.0
    %1326 = vmatpush2.xpose.msra.mxu0 0.0
    %1327 = vmatprep.subr.mxu0 0.0
    %1328 = vmatpush2.xpose.msra.mxu0 0.0
    %1329 = vmatprep.subr.mxu0 0.0
    %1330 = vmatpush2.xpose.msra.mxu0 0.0
    %1331 = vmatprep.subr.mxu0 0.0
    %1332 = vmatpush2.xpose.msra.mxu0 0.0
    %1333 = vmatprep.subr.mxu0 0.0
    %1334 = vmatpush2.xpose.msra.mxu0 0.0
    %1335 = vmatprep.subr.mxu0 0.0
    %1336 = vmatpush2.xpose.msra.mxu0 0.0
    %1337 = vmatprep.subr.mxu0 0.0
    %1338 = vmatpush2.xpose.msra.mxu0 0.0
    %1339 = vmatprep.subr.mxu0 0.0
    %1340 = vmatpush2.xpose.msra.mxu0 0.0
    %1341 = vmatprep.subr.mxu0 0.0
    %1342 = vmatpush2.xpose.msra.mxu0 0.0
    %1343 = vmatprep.subr.mxu0 0.0
    %1344 = vmatpush2.xpose.msra.mxu0 0.0
    %1345 = vmatprep.subr.mxu0 0.0
    %1346 = vmatpush2.xpose.msra.mxu0 0.0
    %1347 = vmatprep.subr.mxu0 0.0
    %1348 = vmatpush2.xpose.msra.mxu0 0.0
    %1349 = vmatprep.subr.mxu0 0.0
    %1350 = vmatpush2.xpose.msra.mxu0 0.0
    %1351 = vmatprep.subr.mxu0 0.0
    %1352 = vmatpush2.xpose.msra.mxu0 0.0
    %1353 = vmatprep.subr.mxu0 0.0
    %1354 = vmatpush2.xpose.msra.mxu0 0.0
    %1355 = vmatprep.mubr.f32.mxu0 0.0
    %1356 = vmatmul.mubr.f32.gmra.mxu0 %v1287
    %v1357 = vpop.f32.mrf.mxu0
    %v1358 = vadd.f32 %v157, %v1357
    %v1359 = vpop.f32.mrf.mxu0
    %1360 = vdwg.mxu0
    %v1361 = vsel %vm299, %v1358, -inf
    %1362 = vmax.xlane.f32.xlu0 %v1361
    %v1363 = vpop.xlane.xlu0 %1362
    %v1364 = vsub.f32 %v1358, %v1363
    %v1365 = vmul.f32 %v1364, 1.442695
    %v1366 = vpow.pop %v1365
    %v1367 = vsel %vm299, %v1366, 0.0
    %1368 = vadd.xlane.f32.xlu0 %v1367
    %v1369 = vpop.xlane.xlu0 %1368
    %v1370 = vrcp.pop %v1369
    %v1371 = vmul.f32 %v1366, %v1370
    %1372 = vrot.lane.b32.xlu0 %v1116, 56
    %v1373 = vpop.permute.xlu0 %1372
    %v1376 = vsel %vm299, %v1371, 0
    %1378 = vmatprep.subr.mxu0 0.0
    %1379 = vmatpush1.msra.mxu0 0.0
    %1380 = vmatprep.subr.mxu0 0.0
    %1381 = vmatpush1.msra.mxu0 0.0
    %1382 = vmatprep.subr.mxu0 0.0
    %1383 = vmatpush1.msra.mxu0 0.0
    %1384 = vmatprep.subr.mxu0 0.0
    %1385 = vmatpush1.msra.mxu0 0.0
    %1386 = vmatprep.subr.mxu0 0.0
    %1387 = vmatpush1.msra.mxu0 0.0
    %1388 = vmatprep.subr.mxu0 0.0
    %1389 = vmatpush1.msra.mxu0 0.0
    %1390 = vmatprep.subr.mxu0 0.0
    %1391 = vmatpush1.msra.mxu0 0.0
    %1392 = vmatprep.subr.mxu0 0.0
    %1393 = vmatpush1.msra.mxu0 0.0
    %1394 = vmatprep.subr.mxu0 0.0
    %1395 = vmatpush1.msra.mxu0 0.0
    %1396 = vmatprep.subr.mxu0 0.0
    %1397 = vmatpush1.msra.mxu0 0.0
    %1398 = vmatprep.subr.mxu0 0.0
    %1399 = vmatpush1.msra.mxu0 0.0
    %1400 = vmatprep.subr.mxu0 0.0
    %1401 = vmatpush1.msra.mxu0 0.0
    %1402 = vmatprep.subr.mxu0 0.0
    %1403 = vmatpush1.msra.mxu0 0.0
    %1404 = vmatprep.subr.mxu0 0.0
    %1405 = vmatpush1.msra.mxu0 0.0
    %1406 = vmatprep.subr.mxu0 0.0
    %1407 = vmatpush1.msra.mxu0 0.0
    %1408 = vmatprep.subr.mxu0 0.0
    %1409 = vmatpush1.msra.mxu0 %v1373
    %1410 = vmatprep.subr.mxu0 0.0
    %1411 = vmatpush2.msra.mxu0 0.0
    %1412 = vmatprep.subr.mxu0 0.0
    %1413 = vmatpush2.msra.mxu0 0.0
    %1414 = vmatprep.subr.mxu0 0.0
    %1415 = vmatpush2.msra.mxu0 0.0
    %1416 = vmatprep.subr.mxu0 0.0
    %1417 = vmatpush2.msra.mxu0 0.0
    %1418 = vmatprep.subr.mxu0 0.0
    %1419 = vmatpush2.msra.mxu0 0.0
    %1420 = vmatprep.subr.mxu0 0.0
    %1421 = vmatpush2.msra.mxu0 0.0
    %1422 = vmatprep.subr.mxu0 0.0
    %1423 = vmatpush2.msra.mxu0 0.0
    %1424 = vmatprep.subr.mxu0 0.0
    %1425 = vmatpush2.msra.mxu0 0.0
    %1426 = vmatprep.subr.mxu0 0.0
    %1427 = vmatpush2.msra.mxu0 0.0
    %1428 = vmatprep.subr.mxu0 0.0
    %1429 = vmatpush2.msra.mxu0 0.0
    %1430 = vmatprep.subr.mxu0 0.0
    %1431 = vmatpush2.msra.mxu0 0.0
    %1432 = vmatprep.subr.mxu0 0.0
    %1433 = vmatpush2.msra.mxu0 0.0
    %1434 = vmatprep.subr.mxu0 0.0
    %1435 = vmatpush2.msra.mxu0 0.0
    %1436 = vmatprep.subr.mxu0 0.0
    %1437 = vmatpush2.msra.mxu0 0.0
    %1438 = vmatprep.subr.mxu0 0.0
    %1439 = vmatpush2.msra.mxu0 0.0
    %1440 = vmatprep.subr.mxu0 0.0
    %1441 = vmatpush2.msra.mxu0 0.0
    %1442 = vmatprep.mubr.f32.mxu0 0.0
    %1443 = vmatmul.mubr.f32.gmra.mxu0 %v1376
    %v1444 = vpop.f32.mrf.mxu0
    %v1445 = vadd.f32 0.0, %v1444
    %v1446 = vpop.f32.mrf.mxu0
    %1447 = vdwg.mxu0
    %1448 = vrot.lane.b32.xlu0 %v1116, 112
    %v1449 = vpop.permute.xlu0 %1448
    %1450 = vrot.lane.b32.xlu0 %v1116, 80
    %v1451 = vpop.permute.xlu0 %1450
    %v1452 = vsel %vm299, %v1449, 0
    %v1454 = vsel %vm299, %v1451, 0
    %1456 = vmatprep.subr.mxu0 0.0
    %1457 = vmatpush1.xpose.msra.mxu0 0.0
    %1458 = vmatprep.subr.mxu0 0.0
    %1459 = vmatpush1.xpose.msra.mxu0 0.0
    %1460 = vmatprep.subr.mxu0 0.0
    %1461 = vmatpush1.xpose.msra.mxu0 0.0
    %1462 = vmatprep.subr.mxu0 0.0
    %1463 = vmatpush1.xpose.msra.mxu0 0.0
    %1464 = vmatprep.subr.mxu0 0.0
    %1465 = vmatpush1.xpose.msra.mxu0 0.0
    %1466 = vmatprep.subr.mxu0 0.0
    %1467 = vmatpush1.xpose.msra.mxu0 0.0
    %1468 = vmatprep.subr.mxu0 0.0
    %1469 = vmatpush1.xpose.msra.mxu0 0.0
    %1470 = vmatprep.subr.mxu0 0.0
    %1471 = vmatpush1.xpose.msra.mxu0 0.0
    %1472 = vmatprep.subr.mxu0 0.0
    %1473 = vmatpush1.xpose.msra.mxu0 0.0
    %1474 = vmatprep.subr.mxu0 0.0
    %1475 = vmatpush1.xpose.msra.mxu0 0.0
    %1476 = vmatprep.subr.mxu0 0.0
    %1477 = vmatpush1.xpose.msra.mxu0 0.0
    %1478 = vmatprep.subr.mxu0 0.0
    %1479 = vmatpush1.xpose.msra.mxu0 0.0
    %1480 = vmatprep.subr.mxu0 0.0
    %1481 = vmatpush1.xpose.msra.mxu0 0.0
    %1482 = vmatprep.subr.mxu0 0.0
    %1483 = vmatpush1.xpose.msra.mxu0 0.0
    %1484 = vmatprep.subr.mxu0 0.0
    %1485 = vmatpush1.xpose.msra.mxu0 0.0
    %1486 = vmatprep.subr.mxu0 0.0
    %1487 = vmatpush1.xpose.msra.mxu0 %v1454
    %1488 = vmatprep.subr.mxu0 0.0
    %1489 = vmatpush2.xpose.msra.mxu0 0.0
    %1490 = vmatprep.subr.mxu0 0.0
    %1491 = vmatpush2.xpose.msra.mxu0 0.0
    %1492 = vmatprep.subr.mxu0 0.0
    %1493 = vmatpush2.xpose.msra.mxu0 0.0
    %1494 = vmatprep.subr.mxu0 0.0
    %1495 = vmatpush2.xpose.msra.mxu0 0.0
    %1496 = vmatprep.subr.mxu0 0.0
    %1497 = vmatpush2.xpose.msra.mxu0 0.0
    %1498 = vmatprep.subr.mxu0 0.0
    %1499 = vmatpush2.xpose.msra.mxu0 0.0
    %1500 = vmatprep.subr.mxu0 0.0
    %1501 = vmatpush2.xpose.msra.mxu0 0.0
    %1502 = vmatprep.subr.mxu0 0.0
    %1503 = vmatpush2.xpose.msra.mxu0 0.0
    %1504 = vmatprep.subr.mxu0 0.0
    %1505 = vmatpush2.xpose.msra.mxu0 0.0
    %1506 = vmatprep.subr.mxu0 0.0
    %1507 = vmatpush2.xpose.msra.mxu0 0.0
    %1508 = vmatprep.subr.mxu0 0.0
    %1509 = vmatpush2.xpose.msra.mxu0 0.0
    %1510 = vmatprep.subr.mxu0 0.0
    %1511 = vmatpush2.xpose.msra.mxu0 0.0
    %1512 = vmatprep.subr.mxu0 0.0
    %1513 = vmatpush2.xpose.msra.mxu0 0.0
    %1514 = vmatprep.subr.mxu0 0.0
    %1515 = vmatpush2.xpose.msra.mxu0 0.0
    %1516 = vmatprep.subr.mxu0 0.0
    %1517 = vmatpush2.xpose.msra.mxu0 0.0
    %1518 = vmatprep.subr.mxu0 0.0
    %1519 = vmatpush2.xpose.msra.mxu0 0.0
    %1520 = vmatprep.mubr.f32.mxu0 0.0
    %1521 = vmatmul.mubr.f32.gmra.mxu0 %v1452
    %v1522 = vpop.f32.mrf.mxu0
    %v1523 = vadd.f32 %v157, %v1522
    %v1524 = vpop.f32.mrf.mxu0
    %1525 = vdwg.mxu0
    %v1526 = vsel %vm299, %v1523, -inf
    %1527 = vmax.xlane.f32.xlu0 %v1526
    %v1528 = vpop.xlane.xlu0 %1527
    %v1529 = vsub.f32 %v1523, %v1528
    %v1530 = vmul.f32 %v1529, 1.442695
    %v1531 = vpow.pop %v1530
    %v1532 = vsel %vm299, %v1531, 0.0
    %1533 = vadd.xlane.f32.xlu0 %v1532
    %v1534 = vpop.xlane.xlu0 %1533
    %v1535 = vrcp.pop %v1534
    %v1536 = vmul.f32 %v1531, %v1535
    %1537 = vrot.lane.b32.xlu0 %v1116, 48
    %v1538 = vpop.permute.xlu0 %1537
    %v1541 = vsel %vm299, %v1536, 0
    %1543 = vmatprep.subr.mxu0 0.0
    %1544 = vmatpush1.msra.mxu0 0.0
    %1545 = vmatprep.subr.mxu0 0.0
    %1546 = vmatpush1.msra.mxu0 0.0
    %1547 = vmatprep.subr.mxu0 0.0
    %1548 = vmatpush1.msra.mxu0 0.0
    %1549 = vmatprep.subr.mxu0 0.0
    %1550 = vmatpush1.msra.mxu0 0.0
    %1551 = vmatprep.subr.mxu0 0.0
    %1552 = vmatpush1.msra.mxu0 0.0
    %1553 = vmatprep.subr.mxu0 0.0
    %1554 = vmatpush1.msra.mxu0 0.0
    %1555 = vmatprep.subr.mxu0 0.0
    %1556 = vmatpush1.msra.mxu0 0.0
    %1557 = vmatprep.subr.mxu0 0.0
    %1558 = vmatpush1.msra.mxu0 0.0
    %1559 = vmatprep.subr.mxu0 0.0
    %1560 = vmatpush1.msra.mxu0 0.0
    %1561 = vmatprep.subr.mxu0 0.0
    %1562 = vmatpush1.msra.mxu0 0.0
    %1563 = vmatprep.subr.mxu0 0.0
    %1564 = vmatpush1.msra.mxu0 0.0
    %1565 = vmatprep.subr.mxu0 0.0
    %1566 = vmatpush1.msra.mxu0 0.0
    %1567 = vmatprep.subr.mxu0 0.0
    %1568 = vmatpush1.msra.mxu0 0.0
    %1569 = vmatprep.subr.mxu0 0.0
    %1570 = vmatpush1.msra.mxu0 0.0
    %1571 = vmatprep.subr.mxu0 0.0
    %1572 = vmatpush1.msra.mxu0 0.0
    %1573 = vmatprep.subr.mxu0 0.0
    %1574 = vmatpush1.msra.mxu0 %v1538
    %1575 = vmatprep.subr.mxu0 0.0
    %1576 = vmatpush2.msra.mxu0 0.0
    %1577 = vmatprep.subr.mxu0 0.0
    %1578 = vmatpush2.msra.mxu0 0.0
    %1579 = vmatprep.subr.mxu0 0.0
    %1580 = vmatpush2.msra.mxu0 0.0
    %1581 = vmatprep.subr.mxu0 0.0
    %1582 = vmatpush2.msra.mxu0 0.0
    %1583 = vmatprep.subr.mxu0 0.0
    %1584 = vmatpush2.msra.mxu0 0.0
    %1585 = vmatprep.subr.mxu0 0.0
    %1586 = vmatpush2.msra.mxu0 0.0
    %1587 = vmatprep.subr.mxu0 0.0
    %1588 = vmatpush2.msra.mxu0 0.0
    %1589 = vmatprep.subr.mxu0 0.0
    %1590 = vmatpush2.msra.mxu0 0.0
    %1591 = vmatprep.subr.mxu0 0.0
    %1592 = vmatpush2.msra.mxu0 0.0
    %1593 = vmatprep.subr.mxu0 0.0
    %1594 = vmatpush2.msra.mxu0 0.0
    %1595 = vmatprep.subr.mxu0 0.0
    %1596 = vmatpush2.msra.mxu0 0.0
    %1597 = vmatprep.subr.mxu0 0.0
    %1598 = vmatpush2.msra.mxu0 0.0
    %1599 = vmatprep.subr.mxu0 0.0
    %1600 = vmatpush2.msra.mxu0 0.0
    %1601 = vmatprep.subr.mxu0 0.0
    %1602 = vmatpush2.msra.mxu0 0.0
    %1603 = vmatprep.subr.mxu0 0.0
    %1604 = vmatpush2.msra.mxu0 0.0
    %1605 = vmatprep.subr.mxu0 0.0
    %1606 = vmatpush2.msra.mxu0 0.0
    %1607 = vmatprep.mubr.f32.mxu0 0.0
    %1608 = vmatmul.mubr.f32.gmra.mxu0 %v1541
    %v1609 = vpop.f32.mrf.mxu0
    %v1610 = vadd.f32 0.0, %v1609
    %v1611 = vpop.f32.mrf.mxu0
    %1612 = vdwg.mxu0
    %1613 = vrot.lane.b32.xlu0 %v1116, 104
    %v1614 = vpop.permute.xlu0 %1613
    %1615 = vrot.lane.b32.xlu0 %v1116, 72
    %v1616 = vpop.permute.xlu0 %1615
    %v1617 = vsel %vm299, %v1614, 0
    %v1619 = vsel %vm299, %v1616, 0
    %1621 = vmatprep.subr.mxu0 0.0
    %1622 = vmatpush1.xpose.msra.mxu0 0.0
    %1623 = vmatprep.subr.mxu0 0.0
    %1624 = vmatpush1.xpose.msra.mxu0 0.0
    %1625 = vmatprep.subr.mxu0 0.0
    %1626 = vmatpush1.xpose.msra.mxu0 0.0
    %1627 = vmatprep.subr.mxu0 0.0
    %1628 = vmatpush1.xpose.msra.mxu0 0.0
    %1629 = vmatprep.subr.mxu0 0.0
    %1630 = vmatpush1.xpose.msra.mxu0 0.0
    %1631 = vmatprep.subr.mxu0 0.0
    %1632 = vmatpush1.xpose.msra.mxu0 0.0
    %1633 = vmatprep.subr.mxu0 0.0
    %1634 = vmatpush1.xpose.msra.mxu0 0.0
    %1635 = vmatprep.subr.mxu0 0.0
    %1636 = vmatpush1.xpose.msra.mxu0 0.0
    %1637 = vmatprep.subr.mxu0 0.0
    %1638 = vmatpush1.xpose.msra.mxu0 0.0
    %1639 = vmatprep.subr.mxu0 0.0
    %1640 = vmatpush1.xpose.msra.mxu0 0.0
    %1641 = vmatprep.subr.mxu0 0.0
    %1642 = vmatpush1.xpose.msra.mxu0 0.0
    %1643 = vmatprep.subr.mxu0 0.0
    %1644 = vmatpush1.xpose.msra.mxu0 0.0
    %1645 = vmatprep.subr.mxu0 0.0
    %1646 = vmatpush1.xpose.msra.mxu0 0.0
    %1647 = vmatprep.subr.mxu0 0.0
    %1648 = vmatpush1.xpose.msra.mxu0 0.0
    %1649 = vmatprep.subr.mxu0 0.0
    %1650 = vmatpush1.xpose.msra.mxu0 0.0
    %1651 = vmatprep.subr.mxu0 0.0
    %1652 = vmatpush1.xpose.msra.mxu0 %v1619
    %1653 = vmatprep.subr.mxu0 0.0
    %1654 = vmatpush2.xpose.msra.mxu0 0.0
    %1655 = vmatprep.subr.mxu0 0.0
    %1656 = vmatpush2.xpose.msra.mxu0 0.0
    %1657 = vmatprep.subr.mxu0 0.0
    %1658 = vmatpush2.xpose.msra.mxu0 0.0
    %1659 = vmatprep.subr.mxu0 0.0
    %1660 = vmatpush2.xpose.msra.mxu0 0.0
    %1661 = vmatprep.subr.mxu0 0.0
    %1662 = vmatpush2.xpose.msra.mxu0 0.0
    %1663 = vmatprep.subr.mxu0 0.0
    %1664 = vmatpush2.xpose.msra.mxu0 0.0
    %1665 = vmatprep.subr.mxu0 0.0
    %1666 = vmatpush2.xpose.msra.mxu0 0.0
    %1667 = vmatprep.subr.mxu0 0.0
    %1668 = vmatpush2.xpose.msra.mxu0 0.0
    %1669 = vmatprep.subr.mxu0 0.0
    %1670 = vmatpush2.xpose.msra.mxu0 0.0
    %1671 = vmatprep.subr.mxu0 0.0
    %1672 = vmatpush2.xpose.msra.mxu0 0.0
    %1673 = vmatprep.subr.mxu0 0.0
    %1674 = vmatpush2.xpose.msra.mxu0 0.0
    %1675 = vmatprep.subr.mxu0 0.0
    %1676 = vmatpush2.xpose.msra.mxu0 0.0
    %1677 = vmatprep.subr.mxu0 0.0
    %1678 = vmatpush2.xpose.msra.mxu0 0.0
    %1679 = vmatprep.subr.mxu0 0.0
    %1680 = vmatpush2.xpose.msra.mxu0 0.0
    %1681 = vmatprep.subr.mxu0 0.0
    %1682 = vmatpush2.xpose.msra.mxu0 0.0
    %1683 = vmatprep.subr.mxu0 0.0
    %1684 = vmatpush2.xpose.msra.mxu0 0.0
    %1685 = vmatprep.mubr.f32.mxu0 0.0
    %1686 = vmatmul.mubr.f32.gmra.mxu0 %v1617
    %v1687 = vpop.f32.mrf.mxu0
    %v1688 = vadd.f32 %v157, %v1687
    %v1689 = vpop.f32.mrf.mxu0
    %1690 = vdwg.mxu0
    %v1691 = vsel %vm299, %v1688, -inf
    %1692 = vmax.xlane.f32.xlu0 %v1691
    %v1693 = vpop.xlane.xlu0 %1692
    %v1694 = vsub.f32 %v1688, %v1693
    %v1695 = vmul.f32 %v1694, 1.442695
    %v1696 = vpow.pop %v1695
    %v1697 = vsel %vm299, %v1696, 0.0
    %1698 = vadd.xlane.f32.xlu0 %v1697
    %v1699 = vpop.xlane.xlu0 %1698
    %v1700 = vrcp.pop %v1699
    %v1701 = vmul.f32 %v1696, %v1700
    %1702 = vrot.lane.b32.xlu0 %v1116, 40
    %v1703 = vpop.permute.xlu0 %1702
    %v1706 = vsel %vm299, %v1701, 0
    %1708 = vmatprep.subr.mxu0 0.0
    %1709 = vmatpush1.msra.mxu0 0.0
    %1710 = vmatprep.subr.mxu0 0.0
    %1711 = vmatpush1.msra.mxu0 0.0
    %1712 = vmatprep.subr.mxu0 0.0
    %1713 = vmatpush1.msra.mxu0 0.0
    %1714 = vmatprep.subr.mxu0 0.0
    %1715 = vmatpush1.msra.mxu0 0.0
    %1716 = vmatprep.subr.mxu0 0.0
    %1717 = vmatpush1.msra.mxu0 0.0
    %1718 = vmatprep.subr.mxu0 0.0
    %1719 = vmatpush1.msra.mxu0 0.0
    %1720 = vmatprep.subr.mxu0 0.0
    %1721 = vmatpush1.msra.mxu0 0.0
    %1722 = vmatprep.subr.mxu0 0.0
    %1723 = vmatpush1.msra.mxu0 0.0
    %1724 = vmatprep.subr.mxu0 0.0
    %1725 = vmatpush1.msra.mxu0 0.0
    %1726 = vmatprep.subr.mxu0 0.0
    %1727 = vmatpush1.msra.mxu0 0.0
    %1728 = vmatprep.subr.mxu0 0.0
    %1729 = vmatpush1.msra.mxu0 0.0
    %1730 = vmatprep.subr.mxu0 0.0
    %1731 = vmatpush1.msra.mxu0 0.0
    %1732 = vmatprep.subr.mxu0 0.0
    %1733 = vmatpush1.msra.mxu0 0.0
    %1734 = vmatprep.subr.mxu0 0.0
    %1735 = vmatpush1.msra.mxu0 0.0
    %1736 = vmatprep.subr.mxu0 0.0
    %1737 = vmatpush1.msra.mxu0 0.0
    %1738 = vmatprep.subr.mxu0 0.0
    %1739 = vmatpush1.msra.mxu0 %v1703
    %1740 = vmatprep.subr.mxu0 0.0
    %1741 = vmatpush2.msra.mxu0 0.0
    %1742 = vmatprep.subr.mxu0 0.0
    %1743 = vmatpush2.msra.mxu0 0.0
    %1744 = vmatprep.subr.mxu0 0.0
    %1745 = vmatpush2.msra.mxu0 0.0
    %1746 = vmatprep.subr.mxu0 0.0
    %1747 = vmatpush2.msra.mxu0 0.0
    %1748 = vmatprep.subr.mxu0 0.0
    %1749 = vmatpush2.msra.mxu0 0.0
    %1750 = vmatprep.subr.mxu0 0.0
    %1751 = vmatpush2.msra.mxu0 0.0
    %1752 = vmatprep.subr.mxu0 0.0
    %1753 = vmatpush2.msra.mxu0 0.0
    %1754 = vmatprep.subr.mxu0 0.0
    %1755 = vmatpush2.msra.mxu0 0.0
    %1756 = vmatprep.subr.mxu0 0.0
    %1757 = vmatpush2.msra.mxu0 0.0
    %1758 = vmatprep.subr.mxu0 0.0
    %1759 = vmatpush2.msra.mxu0 0.0
    %1760 = vmatprep.subr.mxu0 0.0
    %1761 = vmatpush2.msra.mxu0 0.0
    %1762 = vmatprep.subr.mxu0 0.0
    %1763 = vmatpush2.msra.mxu0 0.0
    %1764 = vmatprep.subr.mxu0 0.0
    %1765 = vmatpush2.msra.mxu0 0.0
    %1766 = vmatprep.subr.mxu0 0.0
    %1767 = vmatpush2.msra.mxu0 0.0
    %1768 = vmatprep.subr.mxu0 0.0
    %1769 = vmatpush2.msra.mxu0 0.0
    %1770 = vmatprep.subr.mxu0 0.0
    %1771 = vmatpush2.msra.mxu0 0.0
    %1772 = vmatprep.mubr.f32.mxu0 0.0
    %1773 = vmatmul.mubr.f32.gmra.mxu0 %v1706
    %v1774 = vpop.f32.mrf.mxu0
    %v1775 = vadd.f32 0.0, %v1774
    %v1776 = vpop.f32.mrf.mxu0
    %1777 = vdwg.mxu0
    %1779 = vrot.lane.b32.xlu0 %v1445, 8
    %v1780 = vpop.permute.xlu0 %1779
    %1783 = vrot.lane.b32.xlu0 %v1610, 16
    %v1784 = vpop.permute.xlu0 %1783
    %1787 = vrot.lane.b32.xlu0 %v1775, 24
    %v1788 = vpop.permute.xlu0 %1787
    %v1790 = vsel %vm299, %v1280, %v1780
    %v1791 = vsel %vm969, %v1790, %v1784
    %v1792 = vsel %vm971, %v1791, %v1788
    %v1794 = vsel %vm160, %v1792, 0
    %1796 = vmatprep.subr.mxu0 0.0
    %1797 = vmatpush1.msra.mxu0 0.0
    %1798 = vmatprep.subr.mxu0 0.0
    %1799 = vmatpush1.msra.mxu0 0.0
    %1800 = vmatprep.subr.mxu0 0.0
    %1801 = vmatpush1.msra.mxu0 0.0
    %1802 = vmatprep.subr.mxu0 0.0
    %1803 = vmatpush1.msra.mxu0 0.0
    %1804 = vmatprep.subr.mxu0 0.0
    %1805 = vmatpush1.msra.mxu0 0.0
    %1806 = vmatprep.subr.mxu0 0.0
    %1807 = vmatpush1.msra.mxu0 0.0
    %1808 = vmatprep.subr.mxu0 0.0
    %1809 = vmatpush1.msra.mxu0 0.0
    %1810 = vmatprep.subr.mxu0 0.0
    %1811 = vmatpush1.msra.mxu0 0.0
    %1812 = vmatprep.subr.mxu0 0.0
    %1813 = vmatpush1.msra.mxu0 0.0
    %1814 = vmatprep.subr.mxu0 0.0
    %1815 = vmatpush1.msra.mxu0 0.0
    %1816 = vmatprep.subr.mxu0 0.0
    %1817 = vmatpush1.msra.mxu0 0.0
    %1818 = vmatprep.subr.mxu0 0.0
    %1819 = vmatpush1.msra.mxu0 0.0
    %1820 = vmatprep.subr.mxu0 0.0
    %1821 = vmatpush1.msra.mxu0 %v295
    %1822 = vmatprep.subr.mxu0 0.0
    %1823 = vmatpush1.msra.mxu0 %v294
    %1824 = vmatprep.subr.mxu0 0.0
    %1825 = vmatpush1.msra.mxu0 %v293
    %1826 = vmatprep.subr.mxu0 0.0
    %1827 = vmatpush1.msra.mxu0 %v292
    %1828 = vmatprep.subr.mxu0 0.0
    %1829 = vmatpush2.msra.mxu0 0.0
    %1830 = vmatprep.subr.mxu0 0.0
    %1831 = vmatpush2.msra.mxu0 0.0
    %1832 = vmatprep.subr.mxu0 0.0
    %1833 = vmatpush2.msra.mxu0 0.0
    %1834 = vmatprep.subr.mxu0 0.0
    %1835 = vmatpush2.msra.mxu0 0.0
    %1836 = vmatprep.subr.mxu0 0.0
    %1837 = vmatpush2.msra.mxu0 0.0
    %1838 = vmatprep.subr.mxu0 0.0
    %1839 = vmatpush2.msra.mxu0 0.0
    %1840 = vmatprep.subr.mxu0 0.0
    %1841 = vmatpush2.msra.mxu0 0.0
    %1842 = vmatprep.subr.mxu0 0.0
    %1843 = vmatpush2.msra.mxu0 0.0
    %1844 = vmatprep.subr.mxu0 0.0
    %1845 = vmatpush2.msra.mxu0 0.0
    %1846 = vmatprep.subr.mxu0 0.0
    %1847 = vmatpush2.msra.mxu0 0.0
    %1848 = vmatprep.subr.mxu0 0.0
    %1849 = vmatpush2.msra.mxu0 0.0
    %1850 = vmatprep.subr.mxu0 0.0
    %1851 = vmatpush2.msra.mxu0 0.0
    %1852 = vmatprep.subr.mxu0 0.0
    %1853 = vmatpush2.msra.mxu0 0.0
    %1854 = vmatprep.subr.mxu0 0.0
    %1855 = vmatpush2.msra.mxu0 0.0
    %1856 = vmatprep.subr.mxu0 0.0
    %1857 = vmatpush2.msra.mxu0 0.0
    %1858 = vmatprep.subr.mxu0 0.0
    %1859 = vmatpush2.msra.mxu0 0.0
    %1860 = vmatprep.mubr.f32.mxu0 0.0
    %1861 = vmatmul.mubr.f32.gmra.mxu0 %v1794
    %v1862 = vpop.f32.mrf.mxu0
    %v1863 = vadd.f32 0.0, %v1862
    %v1864 = vpop.f32.mrf.mxu0
    %1865 = vdwg.mxu0
    %v1866 = vadd.f32 %v151, %v1043
    %v1867 = vadd.f32 %v152, %v1863
    %v1868 = vsel %vm160, %v1866, 0.0
    %1869 = vadd.xlane.f32.xlu0 %v1868
    %v1870 = vpop.xlane.xlu0 %1869
    %v1871 = vsel %vm160, %v1867, 0.0
    %1872 = vadd.xlane.f32.xlu0 %v1871
    %v1873 = vpop.xlane.xlu0 %1872
    %v1874 = vmul.f32 %v1870, %v167
    %v1875 = vmul.f32 %v1873, %v167
    %v1876 = vsub.f32 %v1866, %v1874
    %v1877 = vsub.f32 %v1867, %v1875
    %v1878 = vmul.f32 %v1876, %v1876
    %v1879 = vmul.f32 %v1877, %v1877
    %v1880 = vsel %vm160, %v1878, 0.0
    %1881 = vadd.xlane.f32.xlu0 %v1880
    %v1882 = vpop.xlane.xlu0 %1881
    %v1883 = vsel %vm160, %v1879, 0.0
    %1884 = vadd.xlane.f32.xlu0 %v1883
    %v1885 = vpop.xlane.xlu0 %1884
    %v1886 = vmul.f32 %v1882, %v180
    %v1887 = vmul.f32 %v1885, %v180
    %v1888 = vrsqrt.pop %v1886
    %v1889 = vmul.f32 %v1886, %v1888
    %vm1890 = vcmp.eq.f32.partialorder %v1886, inf
    %v1891 = vsel %vm1890, %v1886, %v1889
    %vm1892 = vcmp.eq.f32.partialorder %v1886, 0.0
    %v1893 = vand.u32 %v1886, 2147483648
    %v1894 = vsel %vm1892, %v1893, %v1891
    %v1895 = vrsqrt.pop %v1887
    %v1896 = vmul.f32 %v1887, %v1895
    %vm1897 = vcmp.eq.f32.partialorder %v1887, inf
    %v1898 = vsel %vm1897, %v1887, %v1896
    %vm1899 = vcmp.eq.f32.partialorder %v1887, 0.0
    %v1900 = vand.u32 %v1887, 2147483648
    %v1901 = vsel %vm1899, %v1900, %v1898
    %v1902 = vlaneseq
    %v1903 = vshrl.u32 %v1902, 7
    %v1904 = vsub.s32 2, %v1903
    %v1905 = vrot.slane %v159, %v1904
    %v1906 = vmul.f32 %v1905, %v1876
    %v1907 = vmul.f32 %v1905, %v1877
    %v1908 = vadd.f32 %v1894, 1e-06
    %v1909 = vadd.f32 %v1901, 1e-06
    %v1910 = vrcp.pop %v1908
    %v1911 = vmul.f32 %v1906, %v1910
    %v1912 = vrcp.pop %v1909
    %v1913 = vmul.f32 %v1907, %v1912
    %v1914 = vlaneseq
    %v1915 = vshrl.u32 %v1914, 7
    %v1916 = vsub.s32 3, %v1915
    %v1917 = vrot.slane %v159, %v1916
    %v1918 = vadd.f32 %v1911, %v1917
    %v1919 = vadd.f32 %v1913, %v1917
    %v1920 = vld [vmem:[#allocation10] sm:$0xff]
    %v1921 = vld [vmem:[#allocation10 + $0x8] sm:$0xff]
    %v1922 = vld [vmem:[#allocation10 + $0x10] sm:$0xff]
    %v1923 = vld [vmem:[#allocation10 + $0x18] sm:$0xff]
    %v1925 = vsel %vm160, %v1918, 0
    %1927 = vmatprep.subr.mxu0 0.0
    %1928 = vmatpush1.msra.mxu0 0.0
    %1929 = vmatprep.subr.mxu0 0.0
    %1930 = vmatpush1.msra.mxu0 0.0
    %1931 = vmatprep.subr.mxu0 0.0
    %1932 = vmatpush1.msra.mxu0 0.0
    %1933 = vmatprep.subr.mxu0 0.0
    %1934 = vmatpush1.msra.mxu0 0.0
    %1935 = vmatprep.subr.mxu0 0.0
    %1936 = vmatpush1.msra.mxu0 0.0
    %1937 = vmatprep.subr.mxu0 0.0
    %1938 = vmatpush1.msra.mxu0 0.0
    %1939 = vmatprep.subr.mxu0 0.0
    %1940 = vmatpush1.msra.mxu0 0.0
    %1941 = vmatprep.subr.mxu0 0.0
    %1942 = vmatpush1.msra.mxu0 0.0
    %1943 = vmatprep.subr.mxu0 0.0
    %1944 = vmatpush1.msra.mxu0 0.0
    %1945 = vmatprep.subr.mxu0 0.0
    %1946 = vmatpush1.msra.mxu0 0.0
    %1947 = vmatprep.subr.mxu0 0.0
    %1948 = vmatpush1.msra.mxu0 0.0
    %1949 = vmatprep.subr.mxu0 0.0
    %1950 = vmatpush1.msra.mxu0 0.0
    %1951 = vmatprep.subr.mxu0 0.0
    %1952 = vmatpush1.msra.mxu0 %v1923
    %1953 = vmatprep.subr.mxu0 0.0
    %1954 = vmatpush1.msra.mxu0 %v1922
    %1955 = vmatprep.subr.mxu0 0.0
    %1956 = vmatpush1.msra.mxu0 %v1921
    %1957 = vmatprep.subr.mxu0 0.0
    %1958 = vmatpush1.msra.mxu0 %v1920
    %1959 = vmatprep.subr.mxu0 0.0
    %1960 = vmatpush2.msra.mxu0 0.0
    %1961 = vmatprep.subr.mxu0 0.0
    %1962 = vmatpush2.msra.mxu0 0.0
    %1963 = vmatprep.subr.mxu0 0.0
    %1964 = vmatpush2.msra.mxu0 0.0
    %1965 = vmatprep.subr.mxu0 0.0
    %1966 = vmatpush2.msra.mxu0 0.0
    %1967 = vmatprep.subr.mxu0 0.0
    %1968 = vmatpush2.msra.mxu0 0.0
    %1969 = vmatprep.subr.mxu0 0.0
    %1970 = vmatpush2.msra.mxu0 0.0
    %1971 = vmatprep.subr.mxu0 0.0
    %1972 = vmatpush2.msra.mxu0 0.0
    %1973 = vmatprep.subr.mxu0 0.0
    %1974 = vmatpush2.msra.mxu0 0.0
    %1975 = vmatprep.subr.mxu0 0.0
    %1976 = vmatpush2.msra.mxu0 0.0
    %1977 = vmatprep.subr.mxu0 0.0
    %1978 = vmatpush2.msra.mxu0 0.0
    %1979 = vmatprep.subr.mxu0 0.0
    %1980 = vmatpush2.msra.mxu0 0.0
    %1981 = vmatprep.subr.mxu0 0.0
    %1982 = vmatpush2.msra.mxu0 0.0
    %1983 = vmatprep.subr.mxu0 0.0
    %1984 = vmatpush2.msra.mxu0 0.0
    %1985 = vmatprep.subr.mxu0 0.0
    %1986 = vmatpush2.msra.mxu0 0.0
    %1987 = vmatprep.subr.mxu0 0.0
    %1988 = vmatpush2.msra.mxu0 0.0
    %1989 = vmatprep.subr.mxu0 0.0
    %1990 = vmatpush2.msra.mxu0 0.0
    %1991 = vmatprep.mubr.f32.mxu0 0.0
    %1992 = vmatmul.mubr.f32.gmra.mxu0 %v1925
    %v1993 = vpop.f32.mrf.mxu0
    %v1994 = vadd.f32 0.0, %v1993
    %v1995 = vpop.f32.mrf.mxu0
    %1996 = vdwg.mxu0
    %v1997 = vld [vmem:[#allocation11] sm:$0xff]
    %v1998 = vld [vmem:[#allocation11 + $0x8] sm:$0xff]
    %v1999 = vld [vmem:[#allocation11 + $0x10] sm:$0xff]
    %v2000 = vld [vmem:[#allocation11 + $0x18] sm:$0xff]
    %v2002 = vsel %vm160, %v153, 0
    %v2005 = vsel %vm160, %v154, 0
    %2007 = vmatprep.subr.mxu0 0.0
    %2008 = vmatpush1.msra.mxu0 0.0
    %2009 = vmatprep.subr.mxu0 0.0
    %2010 = vmatpush1.msra.mxu0 0.0
    %2011 = vmatprep.subr.mxu0 0.0
    %2012 = vmatpush1.msra.mxu0 0.0
    %2013 = vmatprep.subr.mxu0 0.0
    %2014 = vmatpush1.msra.mxu0 0.0
    %2015 = vmatprep.subr.mxu0 0.0
    %2016 = vmatpush1.msra.mxu0 0.0
    %2017 = vmatprep.subr.mxu0 0.0
    %2018 = vmatpush1.msra.mxu0 0.0
    %2019 = vmatprep.subr.mxu0 0.0
    %2020 = vmatpush1.msra.mxu0 0.0
    %2021 = vmatprep.subr.mxu0 0.0
    %2022 = vmatpush1.msra.mxu0 0.0
    %2023 = vmatprep.subr.mxu0 0.0
    %2024 = vmatpush1.msra.mxu0 0.0
    %2025 = vmatprep.subr.mxu0 0.0
    %2026 = vmatpush1.msra.mxu0 0.0
    %2027 = vmatprep.subr.mxu0 0.0
    %2028 = vmatpush1.msra.mxu0 0.0
    %2029 = vmatprep.subr.mxu0 0.0
    %2030 = vmatpush1.msra.mxu0 0.0
    %2031 = vmatprep.subr.mxu0 0.0
    %2032 = vmatpush1.msra.mxu0 %v2000
    %2033 = vmatprep.subr.mxu0 0.0
    %2034 = vmatpush1.msra.mxu0 %v1999
    %2035 = vmatprep.subr.mxu0 0.0
    %2036 = vmatpush1.msra.mxu0 %v1998
    %2037 = vmatprep.subr.mxu0 0.0
    %2038 = vmatpush1.msra.mxu0 %v1997
    %2039 = vmatprep.subr.mxu0 0.0
    %2040 = vmatpush2.msra.mxu0 0.0
    %2041 = vmatprep.subr.mxu0 0.0
    %2042 = vmatpush2.msra.mxu0 0.0
    %2043 = vmatprep.subr.mxu0 0.0
    %2044 = vmatpush2.msra.mxu0 0.0
    %2045 = vmatprep.subr.mxu0 0.0
    %2046 = vmatpush2.msra.mxu0 0.0
    %2047 = vmatprep.subr.mxu0 0.0
    %2048 = vmatpush2.msra.mxu0 0.0
    %2049 = vmatprep.subr.mxu0 0.0
    %2050 = vmatpush2.msra.mxu0 0.0
    %2051 = vmatprep.subr.mxu0 0.0
    %2052 = vmatpush2.msra.mxu0 0.0
    %2053 = vmatprep.subr.mxu0 0.0
    %2054 = vmatpush2.msra.mxu0 0.0
    %2055 = vmatprep.subr.mxu0 0.0
    %2056 = vmatpush2.msra.mxu0 0.0
    %2057 = vmatprep.subr.mxu0 0.0
    %2058 = vmatpush2.msra.mxu0 0.0
    %2059 = vmatprep.subr.mxu0 0.0
    %2060 = vmatpush2.msra.mxu0 0.0
    %2061 = vmatprep.subr.mxu0 0.0
    %2062 = vmatpush2.msra.mxu0 0.0
    %2063 = vmatprep.subr.mxu0 0.0
    %2064 = vmatpush2.msra.mxu0 0.0
    %2065 = vmatprep.subr.mxu0 0.0
    %2066 = vmatpush2.msra.mxu0 0.0
    %2067 = vmatprep.subr.mxu0 0.0
    %2068 = vmatpush2.msra.mxu0 0.0
    %2069 = vmatprep.subr.mxu0 0.0
    %2070 = vmatpush2.msra.mxu0 0.0
    %2071 = vmatprep.mubr.f32.mxu0 0.0
    %2072 = vmatmul.mubr.f32.gmra.mxu0 %v2002
    %v2073 = vpop.f32.mrf.mxu0
    %v2074 = vadd.f32 0.0, %v2073
    %v2075 = vpop.f32.mrf.mxu0
    %2076 = vmatprep.mubr.f32.mxu0 0.0
    %2077 = vmatmul.mubr.f32.gmra.mxu0 %v2005
    %v2078 = vpop.f32.mrf.mxu0
    %v2079 = vadd.f32 0.0, %v2078
    %v2080 = vpop.f32.mrf.mxu0
    %2081 = vdwg.mxu0
    %v2082 = vld [vmem:[#allocation13] sm:$0xff]
    %v2083 = vld [vmem:[#allocation13 + $0x8] sm:$0xff]
    %v2084 = vld [vmem:[#allocation13 + $0x10] sm:$0xff]
    %v2085 = vld [vmem:[#allocation13 + $0x18] sm:$0xff]
    %v2087 = vsel %vm299, %v1994, 0
    %v2090 = vsel %vm299, %v2074, 0
    %v2093 = vsel %vm299, %v2079, 0
    %2095 = vmatprep.subr.mxu0 0.0
    %2096 = vmatpush1.xpose.msra.mxu0 0.0
    %2097 = vmatprep.subr.mxu0 0.0
    %2098 = vmatpush1.xpose.msra.mxu0 0.0
    %2099 = vmatprep.subr.mxu0 0.0
    %2100 = vmatpush1.xpose.msra.mxu0 0.0
    %2101 = vmatprep.subr.mxu0 0.0
    %2102 = vmatpush1.xpose.msra.mxu0 0.0
    %2103 = vmatprep.subr.mxu0 0.0
    %2104 = vmatpush1.xpose.msra.mxu0 0.0
    %2105 = vmatprep.subr.mxu0 0.0
    %2106 = vmatpush1.xpose.msra.mxu0 0.0
    %2107 = vmatprep.subr.mxu0 0.0
    %2108 = vmatpush1.xpose.msra.mxu0 0.0
    %2109 = vmatprep.subr.mxu0 0.0
    %2110 = vmatpush1.xpose.msra.mxu0 0.0
    %2111 = vmatprep.subr.mxu0 0.0
    %2112 = vmatpush1.xpose.msra.mxu0 0.0
    %2113 = vmatprep.subr.mxu0 0.0
    %2114 = vmatpush1.xpose.msra.mxu0 0.0
    %2115 = vmatprep.subr.mxu0 0.0
    %2116 = vmatpush1.xpose.msra.mxu0 0.0
    %2117 = vmatprep.subr.mxu0 0.0
    %2118 = vmatpush1.xpose.msra.mxu0 0.0
    %2119 = vmatprep.subr.mxu0 0.0
    %2120 = vmatpush1.xpose.msra.mxu0 0.0
    %2121 = vmatprep.subr.mxu0 0.0
    %2122 = vmatpush1.xpose.msra.mxu0 0.0
    %2123 = vmatprep.subr.mxu0 0.0
    %2124 = vmatpush1.xpose.msra.mxu0 %v2093
    %2125 = vmatprep.subr.mxu0 0.0
    %2126 = vmatpush1.xpose.msra.mxu0 %v2090
    %2127 = vmatprep.subr.mxu0 0.0
    %2128 = vmatpush2.xpose.msra.mxu0 0.0
    %2129 = vmatprep.subr.mxu0 0.0
    %2130 = vmatpush2.xpose.msra.mxu0 0.0
    %2131 = vmatprep.subr.mxu0 0.0
    %2132 = vmatpush2.xpose.msra.mxu0 0.0
    %2133 = vmatprep.subr.mxu0 0.0
    %2134 = vmatpush2.xpose.msra.mxu0 0.0
    %2135 = vmatprep.subr.mxu0 0.0
    %2136 = vmatpush2.xpose.msra.mxu0 0.0
    %2137 = vmatprep.subr.mxu0 0.0
    %2138 = vmatpush2.xpose.msra.mxu0 0.0
    %2139 = vmatprep.subr.mxu0 0.0
    %2140 = vmatpush2.xpose.msra.mxu0 0.0
    %2141 = vmatprep.subr.mxu0 0.0
    %2142 = vmatpush2.xpose.msra.mxu0 0.0
    %2143 = vmatprep.subr.mxu0 0.0
    %2144 = vmatpush2.xpose.msra.mxu0 0.0
    %2145 = vmatprep.subr.mxu0 0.0
    %2146 = vmatpush2.xpose.msra.mxu0 0.0
    %2147 = vmatprep.subr.mxu0 0.0
    %2148 = vmatpush2.xpose.msra.mxu0 0.0
    %2149 = vmatprep.subr.mxu0 0.0
    %2150 = vmatpush2.xpose.msra.mxu0 0.0
    %2151 = vmatprep.subr.mxu0 0.0
    %2152 = vmatpush2.xpose.msra.mxu0 0.0
    %2153 = vmatprep.subr.mxu0 0.0
    %2154 = vmatpush2.xpose.msra.mxu0 0.0
    %2155 = vmatprep.subr.mxu0 0.0
    %2156 = vmatpush2.xpose.msra.mxu0 0.0
    %2157 = vmatprep.subr.mxu0 0.0
    %2158 = vmatpush2.xpose.msra.mxu0 0.0
    %2159 = vmatprep.mubr.f32.mxu0 0.0
    %2160 = vmatmul.mubr.f32.gmra.mxu0 %v2087
    %v2161 = vpop.f32.mrf.mxu0
    %v2162 = vadd.f32 %v158, %v2161
    %v2163 = vpop.f32.mrf.mxu0
    %2164 = vdwg.mxu0
    %v2165 = vsel %vm969, %v2162, -inf
    %2166 = vmax.xlane.f32.xlu0 %v2165
    %v2167 = vpop.xlane.xlu0 %2166
    %v2168 = vsub.f32 %v2162, %v2167
    %v2169 = vmul.f32 %v2168, 1.442695
    %v2170 = vpow.pop %v2169
    %v2171 = vsel %vm969, %v2170, 0.0
    %2172 = vadd.xlane.f32.xlu0 %v2171
    %v2173 = vpop.xlane.xlu0 %2172
    %v2174 = vrcp.pop %v2173
    %v2175 = vmul.f32 %v2170, %v2174
    %2176 = vrot.lane.b32.xlu0 %v2074, 96
    %v2177 = vpop.permute.xlu0 %2176
    %2178 = vrot.lane.b32.xlu0 %v2079, 96
    %v2179 = vpop.permute.xlu0 %2178
    %v2183 = vsel %vm969, %v2175, 0
    %2185 = vmatprep.subr.mxu0 0.0
    %2186 = vmatpush1.msra.mxu0 0.0
    %2187 = vmatprep.subr.mxu0 0.0
    %2188 = vmatpush1.msra.mxu0 0.0
    %2189 = vmatprep.subr.mxu0 0.0
    %2190 = vmatpush1.msra.mxu0 0.0
    %2191 = vmatprep.subr.mxu0 0.0
    %2192 = vmatpush1.msra.mxu0 0.0
    %2193 = vmatprep.subr.mxu0 0.0
    %2194 = vmatpush1.msra.mxu0 0.0
    %2195 = vmatprep.subr.mxu0 0.0
    %2196 = vmatpush1.msra.mxu0 0.0
    %2197 = vmatprep.subr.mxu0 0.0
    %2198 = vmatpush1.msra.mxu0 0.0
    %2199 = vmatprep.subr.mxu0 0.0
    %2200 = vmatpush1.msra.mxu0 0.0
    %2201 = vmatprep.subr.mxu0 0.0
    %2202 = vmatpush1.msra.mxu0 0.0
    %2203 = vmatprep.subr.mxu0 0.0
    %2204 = vmatpush1.msra.mxu0 0.0
    %2205 = vmatprep.subr.mxu0 0.0
    %2206 = vmatpush1.msra.mxu0 0.0
    %2207 = vmatprep.subr.mxu0 0.0
    %2208 = vmatpush1.msra.mxu0 0.0
    %2209 = vmatprep.subr.mxu0 0.0
    %2210 = vmatpush1.msra.mxu0 0.0
    %2211 = vmatprep.subr.mxu0 0.0
    %2212 = vmatpush1.msra.mxu0 0.0
    %2213 = vmatprep.subr.mxu0 0.0
    %2214 = vmatpush1.msra.mxu0 %v2179
    %2215 = vmatprep.subr.mxu0 0.0
    %2216 = vmatpush1.msra.mxu0 %v2177
    %2217 = vmatprep.subr.mxu0 0.0
    %2218 = vmatpush2.msra.mxu0 0.0
    %2219 = vmatprep.subr.mxu0 0.0
    %2220 = vmatpush2.msra.mxu0 0.0
    %2221 = vmatprep.subr.mxu0 0.0
    %2222 = vmatpush2.msra.mxu0 0.0
    %2223 = vmatprep.subr.mxu0 0.0
    %2224 = vmatpush2.msra.mxu0 0.0
    %2225 = vmatprep.subr.mxu0 0.0
    %2226 = vmatpush2.msra.mxu0 0.0
    %2227 = vmatprep.subr.mxu0 0.0
    %2228 = vmatpush2.msra.mxu0 0.0
    %2229 = vmatprep.subr.mxu0 0.0
    %2230 = vmatpush2.msra.mxu0 0.0
    %2231 = vmatprep.subr.mxu0 0.0
    %2232 = vmatpush2.msra.mxu0 0.0
    %2233 = vmatprep.subr.mxu0 0.0
    %2234 = vmatpush2.msra.mxu0 0.0
    %2235 = vmatprep.subr.mxu0 0.0
    %2236 = vmatpush2.msra.mxu0 0.0
    %2237 = vmatprep.subr.mxu0 0.0
    %2238 = vmatpush2.msra.mxu0 0.0
    %2239 = vmatprep.subr.mxu0 0.0
    %2240 = vmatpush2.msra.mxu0 0.0
    %2241 = vmatprep.subr.mxu0 0.0
    %2242 = vmatpush2.msra.mxu0 0.0
    %2243 = vmatprep.subr.mxu0 0.0
    %2244 = vmatpush2.msra.mxu0 0.0
    %2245 = vmatprep.subr.mxu0 0.0
    %2246 = vmatpush2.msra.mxu0 0.0
    %2247 = vmatprep.subr.mxu0 0.0
    %2248 = vmatpush2.msra.mxu0 0.0
    %2249 = vmatprep.mubr.f32.mxu0 0.0
    %2250 = vmatmul.mubr.f32.gmra.mxu0 %v2183
    %v2251 = vpop.f32.mrf.mxu0
    %v2252 = vadd.f32 0.0, %v2251
    %v2253 = vpop.f32.mrf.mxu0
    %2254 = vdwg.mxu0
    %2255 = vrot.lane.b32.xlu0 %v1994, 120
    %v2256 = vpop.permute.xlu0 %2255
    %2257 = vrot.lane.b32.xlu0 %v2074, 120
    %v2258 = vpop.permute.xlu0 %2257
    %2259 = vrot.lane.b32.xlu0 %v2079, 120
    %v2260 = vpop.permute.xlu0 %2259
    %v2261 = vsel %vm299, %v2256, 0
    %v2263 = vsel %vm299, %v2258, 0
    %v2265 = vsel %vm299, %v2260, 0
    %2267 = vmatprep.subr.mxu0 0.0
    %2268 = vmatpush1.xpose.msra.mxu0 0.0
    %2269 = vmatprep.subr.mxu0 0.0
    %2270 = vmatpush1.xpose.msra.mxu0 0.0
    %2271 = vmatprep.subr.mxu0 0.0
    %2272 = vmatpush1.xpose.msra.mxu0 0.0
    %2273 = vmatprep.subr.mxu0 0.0
    %2274 = vmatpush1.xpose.msra.mxu0 0.0
    %2275 = vmatprep.subr.mxu0 0.0
    %2276 = vmatpush1.xpose.msra.mxu0 0.0
    %2277 = vmatprep.subr.mxu0 0.0
    %2278 = vmatpush1.xpose.msra.mxu0 0.0
    %2279 = vmatprep.subr.mxu0 0.0
    %2280 = vmatpush1.xpose.msra.mxu0 0.0
    %2281 = vmatprep.subr.mxu0 0.0
    %2282 = vmatpush1.xpose.msra.mxu0 0.0
    %2283 = vmatprep.subr.mxu0 0.0
    %2284 = vmatpush1.xpose.msra.mxu0 0.0
    %2285 = vmatprep.subr.mxu0 0.0
    %2286 = vmatpush1.xpose.msra.mxu0 0.0
    %2287 = vmatprep.subr.mxu0 0.0
    %2288 = vmatpush1.xpose.msra.mxu0 0.0
    %2289 = vmatprep.subr.mxu0 0.0
    %2290 = vmatpush1.xpose.msra.mxu0 0.0
    %2291 = vmatprep.subr.mxu0 0.0
    %2292 = vmatpush1.xpose.msra.mxu0 0.0
    %2293 = vmatprep.subr.mxu0 0.0
    %2294 = vmatpush1.xpose.msra.mxu0 0.0
    %2295 = vmatprep.subr.mxu0 0.0
    %2296 = vmatpush1.xpose.msra.mxu0 %v2265
    %2297 = vmatprep.subr.mxu0 0.0
    %2298 = vmatpush1.xpose.msra.mxu0 %v2263
    %2299 = vmatprep.subr.mxu0 0.0
    %2300 = vmatpush2.xpose.msra.mxu0 0.0
    %2301 = vmatprep.subr.mxu0 0.0
    %2302 = vmatpush2.xpose.msra.mxu0 0.0
    %2303 = vmatprep.subr.mxu0 0.0
    %2304 = vmatpush2.xpose.msra.mxu0 0.0
    %2305 = vmatprep.subr.mxu0 0.0
    %2306 = vmatpush2.xpose.msra.mxu0 0.0
    %2307 = vmatprep.subr.mxu0 0.0
    %2308 = vmatpush2.xpose.msra.mxu0 0.0
    %2309 = vmatprep.subr.mxu0 0.0
    %2310 = vmatpush2.xpose.msra.mxu0 0.0
    %2311 = vmatprep.subr.mxu0 0.0
    %2312 = vmatpush2.xpose.msra.mxu0 0.0
    %2313 = vmatprep.subr.mxu0 0.0
    %2314 = vmatpush2.xpose.msra.mxu0 0.0
    %2315 = vmatprep.subr.mxu0 0.0
    %2316 = vmatpush2.xpose.msra.mxu0 0.0
    %2317 = vmatprep.subr.mxu0 0.0
    %2318 = vmatpush2.xpose.msra.mxu0 0.0
    %2319 = vmatprep.subr.mxu0 0.0
    %2320 = vmatpush2.xpose.msra.mxu0 0.0
    %2321 = vmatprep.subr.mxu0 0.0
    %2322 = vmatpush2.xpose.msra.mxu0 0.0
    %2323 = vmatprep.subr.mxu0 0.0
    %2324 = vmatpush2.xpose.msra.mxu0 0.0
    %2325 = vmatprep.subr.mxu0 0.0
    %2326 = vmatpush2.xpose.msra.mxu0 0.0
    %2327 = vmatprep.subr.mxu0 0.0
    %2328 = vmatpush2.xpose.msra.mxu0 0.0
    %2329 = vmatprep.subr.mxu0 0.0
    %2330 = vmatpush2.xpose.msra.mxu0 0.0
    %2331 = vmatprep.mubr.f32.mxu0 0.0
    %2332 = vmatmul.mubr.f32.gmra.mxu0 %v2261
    %v2333 = vpop.f32.mrf.mxu0
    %v2334 = vadd.f32 %v158, %v2333
    %v2335 = vpop.f32.mrf.mxu0
    %2336 = vdwg.mxu0
    %v2337 = vsel %vm969, %v2334, -inf
    %2338 = vmax.xlane.f32.xlu0 %v2337
    %v2339 = vpop.xlane.xlu0 %2338
    %v2340 = vsub.f32 %v2334, %v2339
    %v2341 = vmul.f32 %v2340, 1.442695
    %v2342 = vpow.pop %v2341
    %v2343 = vsel %vm969, %v2342, 0.0
    %2344 = vadd.xlane.f32.xlu0 %v2343
    %v2345 = vpop.xlane.xlu0 %2344
    %v2346 = vrcp.pop %v2345
    %v2347 = vmul.f32 %v2342, %v2346
    %2348 = vrot.lane.b32.xlu0 %v2074, 88
    %v2349 = vpop.permute.xlu0 %2348
    %2350 = vrot.lane.b32.xlu0 %v2079, 88
    %v2351 = vpop.permute.xlu0 %2350
    %v2355 = vsel %vm969, %v2347, 0
    %2357 = vmatprep.subr.mxu0 0.0
    %2358 = vmatpush1.msra.mxu0 0.0
    %2359 = vmatprep.subr.mxu0 0.0
    %2360 = vmatpush1.msra.mxu0 0.0
    %2361 = vmatprep.subr.mxu0 0.0
    %2362 = vmatpush1.msra.mxu0 0.0
    %2363 = vmatprep.subr.mxu0 0.0
    %2364 = vmatpush1.msra.mxu0 0.0
    %2365 = vmatprep.subr.mxu0 0.0
    %2366 = vmatpush1.msra.mxu0 0.0
    %2367 = vmatprep.subr.mxu0 0.0
    %2368 = vmatpush1.msra.mxu0 0.0
    %2369 = vmatprep.subr.mxu0 0.0
    %2370 = vmatpush1.msra.mxu0 0.0
    %2371 = vmatprep.subr.mxu0 0.0
    %2372 = vmatpush1.msra.mxu0 0.0
    %2373 = vmatprep.subr.mxu0 0.0
    %2374 = vmatpush1.msra.mxu0 0.0
    %2375 = vmatprep.subr.mxu0 0.0
    %2376 = vmatpush1.msra.mxu0 0.0
    %2377 = vmatprep.subr.mxu0 0.0
    %2378 = vmatpush1.msra.mxu0 0.0
    %2379 = vmatprep.subr.mxu0 0.0
    %2380 = vmatpush1.msra.mxu0 0.0
    %2381 = vmatprep.subr.mxu0 0.0
    %2382 = vmatpush1.msra.mxu0 0.0
    %2383 = vmatprep.subr.mxu0 0.0
    %2384 = vmatpush1.msra.mxu0 0.0
    %2385 = vmatprep.subr.mxu0 0.0
    %2386 = vmatpush1.msra.mxu0 %v2351
    %2387 = vmatprep.subr.mxu0 0.0
    %2388 = vmatpush1.msra.mxu0 %v2349
    %2389 = vmatprep.subr.mxu0 0.0
    %2390 = vmatpush2.msra.mxu0 0.0
    %2391 = vmatprep.subr.mxu0 0.0
    %2392 = vmatpush2.msra.mxu0 0.0
    %2393 = vmatprep.subr.mxu0 0.0
    %2394 = vmatpush2.msra.mxu0 0.0
    %2395 = vmatprep.subr.mxu0 0.0
    %2396 = vmatpush2.msra.mxu0 0.0
    %2397 = vmatprep.subr.mxu0 0.0
    %2398 = vmatpush2.msra.mxu0 0.0
    %2399 = vmatprep.subr.mxu0 0.0
    %2400 = vmatpush2.msra.mxu0 0.0
    %2401 = vmatprep.subr.mxu0 0.0
    %2402 = vmatpush2.msra.mxu0 0.0
    %2403 = vmatprep.subr.mxu0 0.0
    %2404 = vmatpush2.msra.mxu0 0.0
    %2405 = vmatprep.subr.mxu0 0.0
    %2406 = vmatpush2.msra.mxu0 0.0
    %2407 = vmatprep.subr.mxu0 0.0
    %2408 = vmatpush2.msra.mxu0 0.0
    %2409 = vmatprep.subr.mxu0 0.0
    %2410 = vmatpush2.msra.mxu0 0.0
    %2411 = vmatprep.subr.mxu0 0.0
    %2412 = vmatpush2.msra.mxu0 0.0
    %2413 = vmatprep.subr.mxu0 0.0
    %2414 = vmatpush2.msra.mxu0 0.0
    %2415 = vmatprep.subr.mxu0 0.0
    %2416 = vmatpush2.msra.mxu0 0.0
    %2417 = vmatprep.subr.mxu0 0.0
    %2418 = vmatpush2.msra.mxu0 0.0
    %2419 = vmatprep.subr.mxu0 0.0
    %2420 = vmatpush2.msra.mxu0 0.0
    %2421 = vmatprep.mubr.f32.mxu0 0.0
    %2422 = vmatmul.mubr.f32.gmra.mxu0 %v2355
    %v2423 = vpop.f32.mrf.mxu0
    %v2424 = vadd.f32 0.0, %v2423
    %v2425 = vpop.f32.mrf.mxu0
    %2426 = vdwg.mxu0
    %2427 = vrot.lane.b32.xlu0 %v1994, 112
    %v2428 = vpop.permute.xlu0 %2427
    %2429 = vrot.lane.b32.xlu0 %v2074, 112
    %v2430 = vpop.permute.xlu0 %2429
    %2431 = vrot.lane.b32.xlu0 %v2079, 112
    %v2432 = vpop.permute.xlu0 %2431
    %v2433 = vsel %vm299, %v2428, 0
    %v2435 = vsel %vm299, %v2430, 0
    %v2437 = vsel %vm299, %v2432, 0
    %2439 = vmatprep.subr.mxu0 0.0
    %2440 = vmatpush1.xpose.msra.mxu0 0.0
    %2441 = vmatprep.subr.mxu0 0.0
    %2442 = vmatpush1.xpose.msra.mxu0 0.0
    %2443 = vmatprep.subr.mxu0 0.0
    %2444 = vmatpush1.xpose.msra.mxu0 0.0
    %2445 = vmatprep.subr.mxu0 0.0
    %2446 = vmatpush1.xpose.msra.mxu0 0.0
    %2447 = vmatprep.subr.mxu0 0.0
    %2448 = vmatpush1.xpose.msra.mxu0 0.0
    %2449 = vmatprep.subr.mxu0 0.0
    %2450 = vmatpush1.xpose.msra.mxu0 0.0
    %2451 = vmatprep.subr.mxu0 0.0
    %2452 = vmatpush1.xpose.msra.mxu0 0.0
    %2453 = vmatprep.subr.mxu0 0.0
    %2454 = vmatpush1.xpose.msra.mxu0 0.0
    %2455 = vmatprep.subr.mxu0 0.0
    %2456 = vmatpush1.xpose.msra.mxu0 0.0
    %2457 = vmatprep.subr.mxu0 0.0
    %2458 = vmatpush1.xpose.msra.mxu0 0.0
    %2459 = vmatprep.subr.mxu0 0.0
    %2460 = vmatpush1.xpose.msra.mxu0 0.0
    %2461 = vmatprep.subr.mxu0 0.0
    %2462 = vmatpush1.xpose.msra.mxu0 0.0
    %2463 = vmatprep.subr.mxu0 0.0
    %2464 = vmatpush1.xpose.msra.mxu0 0.0
    %2465 = vmatprep.subr.mxu0 0.0
    %2466 = vmatpush1.xpose.msra.mxu0 0.0
    %2467 = vmatprep.subr.mxu0 0.0
    %2468 = vmatpush1.xpose.msra.mxu0 %v2437
    %2469 = vmatprep.subr.mxu0 0.0
    %2470 = vmatpush1.xpose.msra.mxu0 %v2435
    %2471 = vmatprep.subr.mxu0 0.0
    %2472 = vmatpush2.xpose.msra.mxu0 0.0
    %2473 = vmatprep.subr.mxu0 0.0
    %2474 = vmatpush2.xpose.msra.mxu0 0.0
    %2475 = vmatprep.subr.mxu0 0.0
    %2476 = vmatpush2.xpose.msra.mxu0 0.0
    %2477 = vmatprep.subr.mxu0 0.0
    %2478 = vmatpush2.xpose.msra.mxu0 0.0
    %2479 = vmatprep.subr.mxu0 0.0
    %2480 = vmatpush2.xpose.msra.mxu0 0.0
    %2481 = vmatprep.subr.mxu0 0.0
    %2482 = vmatpush2.xpose.msra.mxu0 0.0
    %2483 = vmatprep.subr.mxu0 0.0
    %2484 = vmatpush2.xpose.msra.mxu0 0.0
    %2485 = vmatprep.subr.mxu0 0.0
    %2486 = vmatpush2.xpose.msra.mxu0 0.0
    %2487 = vmatprep.subr.mxu0 0.0
    %2488 = vmatpush2.xpose.msra.mxu0 0.0
    %2489 = vmatprep.subr.mxu0 0.0
    %2490 = vmatpush2.xpose.msra.mxu0 0.0
    %2491 = vmatprep.subr.mxu0 0.0
    %2492 = vmatpush2.xpose.msra.mxu0 0.0
    %2493 = vmatprep.subr.mxu0 0.0
    %2494 = vmatpush2.xpose.msra.mxu0 0.0
    %2495 = vmatprep.subr.mxu0 0.0
    %2496 = vmatpush2.xpose.msra.mxu0 0.0
    %2497 = vmatprep.subr.mxu0 0.0
    %2498 = vmatpush2.xpose.msra.mxu0 0.0
    %2499 = vmatprep.subr.mxu0 0.0
    %2500 = vmatpush2.xpose.msra.mxu0 0.0
    %2501 = vmatprep.subr.mxu0 0.0
    %2502 = vmatpush2.xpose.msra.mxu0 0.0
    %2503 = vmatprep.mubr.f32.mxu0 0.0
    %2504 = vmatmul.mubr.f32.gmra.mxu0 %v2433
    %v2505 = vpop.f32.mrf.mxu0
    %v2506 = vadd.f32 %v158, %v2505
    %v2507 = vpop.f32.mrf.mxu0
    %2508 = vdwg.mxu0
    %v2509 = vsel %vm969, %v2506, -inf
    %2510 = vmax.xlane.f32.xlu0 %v2509
    %v2511 = vpop.xlane.xlu0 %2510
    %v2512 = vsub.f32 %v2506, %v2511
    %v2513 = vmul.f32 %v2512, 1.442695
    %v2514 = vpow.pop %v2513
    %v2515 = vsel %vm969, %v2514, 0.0
    %2516 = vadd.xlane.f32.xlu0 %v2515
    %v2517 = vpop.xlane.xlu0 %2516
    %v2518 = vrcp.pop %v2517
    %v2519 = vmul.f32 %v2514, %v2518
    %2520 = vrot.lane.b32.xlu0 %v2074, 80
    %v2521 = vpop.permute.xlu0 %2520
    %2522 = vrot.lane.b32.xlu0 %v2079, 80
    %v2523 = vpop.permute.xlu0 %2522
    %v2527 = vsel %vm969, %v2519, 0
    %2529 = vmatprep.subr.mxu0 0.0
    %2530 = vmatpush1.msra.mxu0 0.0
    %2531 = vmatprep.subr.mxu0 0.0
    %2532 = vmatpush1.msra.mxu0 0.0
    %2533 = vmatprep.subr.mxu0 0.0
    %2534 = vmatpush1.msra.mxu0 0.0
    %2535 = vmatprep.subr.mxu0 0.0
    %2536 = vmatpush1.msra.mxu0 0.0
    %2537 = vmatprep.subr.mxu0 0.0
    %2538 = vmatpush1.msra.mxu0 0.0
    %2539 = vmatprep.subr.mxu0 0.0
    %2540 = vmatpush1.msra.mxu0 0.0
    %2541 = vmatprep.subr.mxu0 0.0
    %2542 = vmatpush1.msra.mxu0 0.0
    %2543 = vmatprep.subr.mxu0 0.0
    %2544 = vmatpush1.msra.mxu0 0.0
    %2545 = vmatprep.subr.mxu0 0.0
    %2546 = vmatpush1.msra.mxu0 0.0
    %2547 = vmatprep.subr.mxu0 0.0
    %2548 = vmatpush1.msra.mxu0 0.0
    %2549 = vmatprep.subr.mxu0 0.0
    %2550 = vmatpush1.msra.mxu0 0.0
    %2551 = vmatprep.subr.mxu0 0.0
    %2552 = vmatpush1.msra.mxu0 0.0
    %2553 = vmatprep.subr.mxu0 0.0
    %2554 = vmatpush1.msra.mxu0 0.0
    %2555 = vmatprep.subr.mxu0 0.0
    %2556 = vmatpush1.msra.mxu0 0.0
    %2557 = vmatprep.subr.mxu0 0.0
    %2558 = vmatpush1.msra.mxu0 %v2523
    %2559 = vmatprep.subr.mxu0 0.0
    %2560 = vmatpush1.msra.mxu0 %v2521
    %2561 = vmatprep.subr.mxu0 0.0
    %2562 = vmatpush2.msra.mxu0 0.0
    %2563 = vmatprep.subr.mxu0 0.0
    %2564 = vmatpush2.msra.mxu0 0.0
    %2565 = vmatprep.subr.mxu0 0.0
    %2566 = vmatpush2.msra.mxu0 0.0
    %2567 = vmatprep.subr.mxu0 0.0
    %2568 = vmatpush2.msra.mxu0 0.0
    %2569 = vmatprep.subr.mxu0 0.0
    %2570 = vmatpush2.msra.mxu0 0.0
    %2571 = vmatprep.subr.mxu0 0.0
    %2572 = vmatpush2.msra.mxu0 0.0
    %2573 = vmatprep.subr.mxu0 0.0
    %2574 = vmatpush2.msra.mxu0 0.0
    %2575 = vmatprep.subr.mxu0 0.0
    %2576 = vmatpush2.msra.mxu0 0.0
    %2577 = vmatprep.subr.mxu0 0.0
    %2578 = vmatpush2.msra.mxu0 0.0
    %2579 = vmatprep.subr.mxu0 0.0
    %2580 = vmatpush2.msra.mxu0 0.0
    %2581 = vmatprep.subr.mxu0 0.0
    %2582 = vmatpush2.msra.mxu0 0.0
    %2583 = vmatprep.subr.mxu0 0.0
    %2584 = vmatpush2.msra.mxu0 0.0
    %2585 = vmatprep.subr.mxu0 0.0
    %2586 = vmatpush2.msra.mxu0 0.0
    %2587 = vmatprep.subr.mxu0 0.0
    %2588 = vmatpush2.msra.mxu0 0.0
    %2589 = vmatprep.subr.mxu0 0.0
    %2590 = vmatpush2.msra.mxu0 0.0
    %2591 = vmatprep.subr.mxu0 0.0
    %2592 = vmatpush2.msra.mxu0 0.0
    %2593 = vmatprep.mubr.f32.mxu0 0.0
    %2594 = vmatmul.mubr.f32.gmra.mxu0 %v2527
    %v2595 = vpop.f32.mrf.mxu0
    %v2596 = vadd.f32 0.0, %v2595
    %v2597 = vpop.f32.mrf.mxu0
    %2598 = vdwg.mxu0
    %2599 = vrot.lane.b32.xlu0 %v1994, 104
    %v2600 = vpop.permute.xlu0 %2599
    %2601 = vrot.lane.b32.xlu0 %v2074, 104
    %v2602 = vpop.permute.xlu0 %2601
    %2603 = vrot.lane.b32.xlu0 %v2079, 104
    %v2604 = vpop.permute.xlu0 %2603
    %v2605 = vsel %vm299, %v2600, 0
    %v2607 = vsel %vm299, %v2602, 0
    %v2609 = vsel %vm299, %v2604, 0
    %2611 = vmatprep.subr.mxu0 0.0
    %2612 = vmatpush1.xpose.msra.mxu0 0.0
    %2613 = vmatprep.subr.mxu0 0.0
    %2614 = vmatpush1.xpose.msra.mxu0 0.0
    %2615 = vmatprep.subr.mxu0 0.0
    %2616 = vmatpush1.xpose.msra.mxu0 0.0
    %2617 = vmatprep.subr.mxu0 0.0
    %2618 = vmatpush1.xpose.msra.mxu0 0.0
    %2619 = vmatprep.subr.mxu0 0.0
    %2620 = vmatpush1.xpose.msra.mxu0 0.0
    %2621 = vmatprep.subr.mxu0 0.0
    %2622 = vmatpush1.xpose.msra.mxu0 0.0
    %2623 = vmatprep.subr.mxu0 0.0
    %2624 = vmatpush1.xpose.msra.mxu0 0.0
    %2625 = vmatprep.subr.mxu0 0.0
    %2626 = vmatpush1.xpose.msra.mxu0 0.0
    %2627 = vmatprep.subr.mxu0 0.0
    %2628 = vmatpush1.xpose.msra.mxu0 0.0
    %2629 = vmatprep.subr.mxu0 0.0
    %2630 = vmatpush1.xpose.msra.mxu0 0.0
    %2631 = vmatprep.subr.mxu0 0.0
    %2632 = vmatpush1.xpose.msra.mxu0 0.0
    %2633 = vmatprep.subr.mxu0 0.0
    %2634 = vmatpush1.xpose.msra.mxu0 0.0
    %2635 = vmatprep.subr.mxu0 0.0
    %2636 = vmatpush1.xpose.msra.mxu0 0.0
    %2637 = vmatprep.subr.mxu0 0.0
    %2638 = vmatpush1.xpose.msra.mxu0 0.0
    %2639 = vmatprep.subr.mxu0 0.0
    %2640 = vmatpush1.xpose.msra.mxu0 %v2609
    %2641 = vmatprep.subr.mxu0 0.0
    %2642 = vmatpush1.xpose.msra.mxu0 %v2607
    %2643 = vmatprep.subr.mxu0 0.0
    %2644 = vmatpush2.xpose.msra.mxu0 0.0
    %2645 = vmatprep.subr.mxu0 0.0
    %2646 = vmatpush2.xpose.msra.mxu0 0.0
    %2647 = vmatprep.subr.mxu0 0.0
    %2648 = vmatpush2.xpose.msra.mxu0 0.0
    %2649 = vmatprep.subr.mxu0 0.0
    %2650 = vmatpush2.xpose.msra.mxu0 0.0
    %2651 = vmatprep.subr.mxu0 0.0
    %2652 = vmatpush2.xpose.msra.mxu0 0.0
    %2653 = vmatprep.subr.mxu0 0.0
    %2654 = vmatpush2.xpose.msra.mxu0 0.0
    %2655 = vmatprep.subr.mxu0 0.0
    %2656 = vmatpush2.xpose.msra.mxu0 0.0
    %2657 = vmatprep.subr.mxu0 0.0
    %2658 = vmatpush2.xpose.msra.mxu0 0.0
    %2659 = vmatprep.subr.mxu0 0.0
    %2660 = vmatpush2.xpose.msra.mxu0 0.0
    %2661 = vmatprep.subr.mxu0 0.0
    %2662 = vmatpush2.xpose.msra.mxu0 0.0
    %2663 = vmatprep.subr.mxu0 0.0
    %2664 = vmatpush2.xpose.msra.mxu0 0.0
    %2665 = vmatprep.subr.mxu0 0.0
    %2666 = vmatpush2.xpose.msra.mxu0 0.0
    %2667 = vmatprep.subr.mxu0 0.0
    %2668 = vmatpush2.xpose.msra.mxu0 0.0
    %2669 = vmatprep.subr.mxu0 0.0
    %2670 = vmatpush2.xpose.msra.mxu0 0.0
    %2671 = vmatprep.subr.mxu0 0.0
    %2672 = vmatpush2.xpose.msra.mxu0 0.0
    %2673 = vmatprep.subr.mxu0 0.0
    %2674 = vmatpush2.xpose.msra.mxu0 0.0
    %2675 = vmatprep.mubr.f32.mxu0 0.0
    %2676 = vmatmul.mubr.f32.gmra.mxu0 %v2605
    %v2677 = vpop.f32.mrf.mxu0
    %v2678 = vadd.f32 %v158, %v2677
    %v2679 = vpop.f32.mrf.mxu0
    %2680 = vdwg.mxu0
    %v2681 = vsel %vm969, %v2678, -inf
    %2682 = vmax.xlane.f32.xlu0 %v2681
    %v2683 = vpop.xlane.xlu0 %2682
    %v2684 = vsub.f32 %v2678, %v2683
    %v2685 = vmul.f32 %v2684, 1.442695
    %v2686 = vpow.pop %v2685
    %v2687 = vsel %vm969, %v2686, 0.0
    %2688 = vadd.xlane.f32.xlu0 %v2687
    %v2689 = vpop.xlane.xlu0 %2688
    %v2690 = vrcp.pop %v2689
    %v2691 = vmul.f32 %v2686, %v2690
    %2692 = vrot.lane.b32.xlu0 %v2074, 72
    %v2693 = vpop.permute.xlu0 %2692
    %2694 = vrot.lane.b32.xlu0 %v2079, 72
    %v2695 = vpop.permute.xlu0 %2694
    %v2699 = vsel %vm969, %v2691, 0
    %2701 = vmatprep.subr.mxu0 0.0
    %2702 = vmatpush1.msra.mxu0 0.0
    %2703 = vmatprep.subr.mxu0 0.0
    %2704 = vmatpush1.msra.mxu0 0.0
    %2705 = vmatprep.subr.mxu0 0.0
    %2706 = vmatpush1.msra.mxu0 0.0
    %2707 = vmatprep.subr.mxu0 0.0
    %2708 = vmatpush1.msra.mxu0 0.0
    %2709 = vmatprep.subr.mxu0 0.0
    %2710 = vmatpush1.msra.mxu0 0.0
    %2711 = vmatprep.subr.mxu0 0.0
    %2712 = vmatpush1.msra.mxu0 0.0
    %2713 = vmatprep.subr.mxu0 0.0
    %2714 = vmatpush1.msra.mxu0 0.0
    %2715 = vmatprep.subr.mxu0 0.0
    %2716 = vmatpush1.msra.mxu0 0.0
    %2717 = vmatprep.subr.mxu0 0.0
    %2718 = vmatpush1.msra.mxu0 0.0
    %2719 = vmatprep.subr.mxu0 0.0
    %2720 = vmatpush1.msra.mxu0 0.0
    %2721 = vmatprep.subr.mxu0 0.0
    %2722 = vmatpush1.msra.mxu0 0.0
    %2723 = vmatprep.subr.mxu0 0.0
    %2724 = vmatpush1.msra.mxu0 0.0
    %2725 = vmatprep.subr.mxu0 0.0
    %2726 = vmatpush1.msra.mxu0 0.0
    %2727 = vmatprep.subr.mxu0 0.0
    %2728 = vmatpush1.msra.mxu0 0.0
    %2729 = vmatprep.subr.mxu0 0.0
    %2730 = vmatpush1.msra.mxu0 %v2695
    %2731 = vmatprep.subr.mxu0 0.0
    %2732 = vmatpush1.msra.mxu0 %v2693
    %2733 = vmatprep.subr.mxu0 0.0
    %2734 = vmatpush2.msra.mxu0 0.0
    %2735 = vmatprep.subr.mxu0 0.0
    %2736 = vmatpush2.msra.mxu0 0.0
    %2737 = vmatprep.subr.mxu0 0.0
    %2738 = vmatpush2.msra.mxu0 0.0
    %2739 = vmatprep.subr.mxu0 0.0
    %2740 = vmatpush2.msra.mxu0 0.0
    %2741 = vmatprep.subr.mxu0 0.0
    %2742 = vmatpush2.msra.mxu0 0.0
    %2743 = vmatprep.subr.mxu0 0.0
    %2744 = vmatpush2.msra.mxu0 0.0
    %2745 = vmatprep.subr.mxu0 0.0
    %2746 = vmatpush2.msra.mxu0 0.0
    %2747 = vmatprep.subr.mxu0 0.0
    %2748 = vmatpush2.msra.mxu0 0.0
    %2749 = vmatprep.subr.mxu0 0.0
    %2750 = vmatpush2.msra.mxu0 0.0
    %2751 = vmatprep.subr.mxu0 0.0
    %2752 = vmatpush2.msra.mxu0 0.0
    %2753 = vmatprep.subr.mxu0 0.0
    %2754 = vmatpush2.msra.mxu0 0.0
    %2755 = vmatprep.subr.mxu0 0.0
    %2756 = vmatpush2.msra.mxu0 0.0
    %2757 = vmatprep.subr.mxu0 0.0
    %2758 = vmatpush2.msra.mxu0 0.0
    %2759 = vmatprep.subr.mxu0 0.0
    %2760 = vmatpush2.msra.mxu0 0.0
    %2761 = vmatprep.subr.mxu0 0.0
    %2762 = vmatpush2.msra.mxu0 0.0
    %2763 = vmatprep.subr.mxu0 0.0
    %2764 = vmatpush2.msra.mxu0 0.0
    %2765 = vmatprep.mubr.f32.mxu0 0.0
    %2766 = vmatmul.mubr.f32.gmra.mxu0 %v2699
    %v2767 = vpop.f32.mrf.mxu0
    %v2768 = vadd.f32 0.0, %v2767
    %v2769 = vpop.f32.mrf.mxu0
    %2770 = vdwg.mxu0
    %2772 = vrot.lane.b32.xlu0 %v2424, 8
    %v2773 = vpop.permute.xlu0 %2772
    %2776 = vrot.lane.b32.xlu0 %v2596, 16
    %v2777 = vpop.permute.xlu0 %2776
    %2780 = vrot.lane.b32.xlu0 %v2768, 24
    %v2781 = vpop.permute.xlu0 %2780
    %v2783 = vsel %vm299, %v2252, %v2773
    %v2784 = vsel %vm969, %v2783, %v2777
    %v2785 = vsel %vm971, %v2784, %v2781
    %v2787 = vsel %vm160, %v2785, 0
    %2789 = vmatprep.subr.mxu0 0.0
    %2790 = vmatpush1.msra.mxu0 0.0
    %2791 = vmatprep.subr.mxu0 0.0
    %2792 = vmatpush1.msra.mxu0 0.0
    %2793 = vmatprep.subr.mxu0 0.0
    %2794 = vmatpush1.msra.mxu0 0.0
    %2795 = vmatprep.subr.mxu0 0.0
    %2796 = vmatpush1.msra.mxu0 0.0
    %2797 = vmatprep.subr.mxu0 0.0
    %2798 = vmatpush1.msra.mxu0 0.0
    %2799 = vmatprep.subr.mxu0 0.0
    %2800 = vmatpush1.msra.mxu0 0.0
    %2801 = vmatprep.subr.mxu0 0.0
    %2802 = vmatpush1.msra.mxu0 0.0
    %2803 = vmatprep.subr.mxu0 0.0
    %2804 = vmatpush1.msra.mxu0 0.0
    %2805 = vmatprep.subr.mxu0 0.0
    %2806 = vmatpush1.msra.mxu0 0.0
    %2807 = vmatprep.subr.mxu0 0.0
    %2808 = vmatpush1.msra.mxu0 0.0
    %2809 = vmatprep.subr.mxu0 0.0
    %2810 = vmatpush1.msra.mxu0 0.0
    %2811 = vmatprep.subr.mxu0 0.0
    %2812 = vmatpush1.msra.mxu0 0.0
    %2813 = vmatprep.subr.mxu0 0.0
    %2814 = vmatpush1.msra.mxu0 %v2085
    %2815 = vmatprep.subr.mxu0 0.0
    %2816 = vmatpush1.msra.mxu0 %v2084
    %2817 = vmatprep.subr.mxu0 0.0
    %2818 = vmatpush1.msra.mxu0 %v2083
    %2819 = vmatprep.subr.mxu0 0.0
    %2820 = vmatpush1.msra.mxu0 %v2082
    %2821 = vmatprep.subr.mxu0 0.0
    %2822 = vmatpush2.msra.mxu0 0.0
    %2823 = vmatprep.subr.mxu0 0.0
    %2824 = vmatpush2.msra.mxu0 0.0
    %2825 = vmatprep.subr.mxu0 0.0
    %2826 = vmatpush2.msra.mxu0 0.0
    %2827 = vmatprep.subr.mxu0 0.0
    %2828 = vmatpush2.msra.mxu0 0.0
    %2829 = vmatprep.subr.mxu0 0.0
    %2830 = vmatpush2.msra.mxu0 0.0
    %2831 = vmatprep.subr.mxu0 0.0
    %2832 = vmatpush2.msra.mxu0 0.0
    %2833 = vmatprep.subr.mxu0 0.0
    %2834 = vmatpush2.msra.mxu0 0.0
    %2835 = vmatprep.subr.mxu0 0.0
    %2836 = vmatpush2.msra.mxu0 0.0
    %2837 = vmatprep.subr.mxu0 0.0
    %2838 = vmatpush2.msra.mxu0 0.0
    %2839 = vmatprep.subr.mxu0 0.0
    %2840 = vmatpush2.msra.mxu0 0.0
    %2841 = vmatprep.subr.mxu0 0.0
    %2842 = vmatpush2.msra.mxu0 0.0
    %2843 = vmatprep.subr.mxu0 0.0
    %2844 = vmatpush2.msra.mxu0 0.0
    %2845 = vmatprep.subr.mxu0 0.0
    %2846 = vmatpush2.msra.mxu0 0.0
    %2847 = vmatprep.subr.mxu0 0.0
    %2848 = vmatpush2.msra.mxu0 0.0
    %2849 = vmatprep.subr.mxu0 0.0
    %2850 = vmatpush2.msra.mxu0 0.0
    %2851 = vmatprep.subr.mxu0 0.0
    %2852 = vmatpush2.msra.mxu0 0.0
    %2853 = vmatprep.mubr.f32.mxu0 0.0
    %2854 = vmatmul.mubr.f32.gmra.mxu0 %v2787
    %v2855 = vpop.f32.mrf.mxu0
    %v2856 = vadd.f32 0.0, %v2855
    %v2857 = vpop.f32.mrf.mxu0
    %2858 = vdwg.mxu0
    %v2860 = vsel %vm160, %v1919, 0
    %2862 = vmatprep.subr.mxu0 0.0
    %2863 = vmatpush1.msra.mxu0 0.0
    %2864 = vmatprep.subr.mxu0 0.0
    %2865 = vmatpush1.msra.mxu0 0.0
    %2866 = vmatprep.subr.mxu0 0.0
    %2867 = vmatpush1.msra.mxu0 0.0
    %2868 = vmatprep.subr.mxu0 0.0
    %2869 = vmatpush1.msra.mxu0 0.0
    %2870 = vmatprep.subr.mxu0 0.0
    %2871 = vmatpush1.msra.mxu0 0.0
    %2872 = vmatprep.subr.mxu0 0.0
    %2873 = vmatpush1.msra.mxu0 0.0
    %2874 = vmatprep.subr.mxu0 0.0
    %2875 = vmatpush1.msra.mxu0 0.0
    %2876 = vmatprep.subr.mxu0 0.0
    %2877 = vmatpush1.msra.mxu0 0.0
    %2878 = vmatprep.subr.mxu0 0.0
    %2879 = vmatpush1.msra.mxu0 0.0
    %2880 = vmatprep.subr.mxu0 0.0
    %2881 = vmatpush1.msra.mxu0 0.0
    %2882 = vmatprep.subr.mxu0 0.0
    %2883 = vmatpush1.msra.mxu0 0.0
    %2884 = vmatprep.subr.mxu0 0.0
    %2885 = vmatpush1.msra.mxu0 0.0
    %2886 = vmatprep.subr.mxu0 0.0
    %2887 = vmatpush1.msra.mxu0 %v1923
    %2888 = vmatprep.subr.mxu0 0.0
    %2889 = vmatpush1.msra.mxu0 %v1922
    %2890 = vmatprep.subr.mxu0 0.0
    %2891 = vmatpush1.msra.mxu0 %v1921
    %2892 = vmatprep.subr.mxu0 0.0
    %2893 = vmatpush1.msra.mxu0 %v1920
    %2894 = vmatprep.subr.mxu0 0.0
    %2895 = vmatpush2.msra.mxu0 0.0
    %2896 = vmatprep.subr.mxu0 0.0
    %2897 = vmatpush2.msra.mxu0 0.0
    %2898 = vmatprep.subr.mxu0 0.0
    %2899 = vmatpush2.msra.mxu0 0.0
    %2900 = vmatprep.subr.mxu0 0.0
    %2901 = vmatpush2.msra.mxu0 0.0
    %2902 = vmatprep.subr.mxu0 0.0
    %2903 = vmatpush2.msra.mxu0 0.0
    %2904 = vmatprep.subr.mxu0 0.0
    %2905 = vmatpush2.msra.mxu0 0.0
    %2906 = vmatprep.subr.mxu0 0.0
    %2907 = vmatpush2.msra.mxu0 0.0
    %2908 = vmatprep.subr.mxu0 0.0
    %2909 = vmatpush2.msra.mxu0 0.0
    %2910 = vmatprep.subr.mxu0 0.0
    %2911 = vmatpush2.msra.mxu0 0.0
    %2912 = vmatprep.subr.mxu0 0.0
    %2913 = vmatpush2.msra.mxu0 0.0
    %2914 = vmatprep.subr.mxu0 0.0
    %2915 = vmatpush2.msra.mxu0 0.0
    %2916 = vmatprep.subr.mxu0 0.0
    %2917 = vmatpush2.msra.mxu0 0.0
    %2918 = vmatprep.subr.mxu0 0.0
    %2919 = vmatpush2.msra.mxu0 0.0
    %2920 = vmatprep.subr.mxu0 0.0
    %2921 = vmatpush2.msra.mxu0 0.0
    %2922 = vmatprep.subr.mxu0 0.0
    %2923 = vmatpush2.msra.mxu0 0.0
    %2924 = vmatprep.subr.mxu0 0.0
    %2925 = vmatpush2.msra.mxu0 0.0
    %2926 = vmatprep.mubr.f32.mxu0 0.0
    %2927 = vmatmul.mubr.f32.gmra.mxu0 %v2860
    %v2928 = vpop.f32.mrf.mxu0
    %v2929 = vadd.f32 0.0, %v2928
    %v2930 = vpop.f32.mrf.mxu0
    %2931 = vdwg.mxu0
    %v2933 = vsel %vm160, %v155, 0
    %v2936 = vsel %vm160, %v156, 0
    %2938 = vmatprep.subr.mxu0 0.0
    %2939 = vmatpush1.msra.mxu0 0.0
    %2940 = vmatprep.subr.mxu0 0.0
    %2941 = vmatpush1.msra.mxu0 0.0
    %2942 = vmatprep.subr.mxu0 0.0
    %2943 = vmatpush1.msra.mxu0 0.0
    %2944 = vmatprep.subr.mxu0 0.0
    %2945 = vmatpush1.msra.mxu0 0.0
    %2946 = vmatprep.subr.mxu0 0.0
    %2947 = vmatpush1.msra.mxu0 0.0
    %2948 = vmatprep.subr.mxu0 0.0
    %2949 = vmatpush1.msra.mxu0 0.0
    %2950 = vmatprep.subr.mxu0 0.0
    %2951 = vmatpush1.msra.mxu0 0.0
    %2952 = vmatprep.subr.mxu0 0.0
    %2953 = vmatpush1.msra.mxu0 0.0
    %2954 = vmatprep.subr.mxu0 0.0
    %2955 = vmatpush1.msra.mxu0 0.0
    %2956 = vmatprep.subr.mxu0 0.0
    %2957 = vmatpush1.msra.mxu0 0.0
    %2958 = vmatprep.subr.mxu0 0.0
    %2959 = vmatpush1.msra.mxu0 0.0
    %2960 = vmatprep.subr.mxu0 0.0
    %2961 = vmatpush1.msra.mxu0 0.0
    %2962 = vmatprep.subr.mxu0 0.0
    %2963 = vmatpush1.msra.mxu0 %v2000
    %2964 = vmatprep.subr.mxu0 0.0
    %2965 = vmatpush1.msra.mxu0 %v1999
    %2966 = vmatprep.subr.mxu0 0.0
    %2967 = vmatpush1.msra.mxu0 %v1998
    %2968 = vmatprep.subr.mxu0 0.0
    %2969 = vmatpush1.msra.mxu0 %v1997
    %2970 = vmatprep.subr.mxu0 0.0
    %2971 = vmatpush2.msra.mxu0 0.0
    %2972 = vmatprep.subr.mxu0 0.0
    %2973 = vmatpush2.msra.mxu0 0.0
    %2974 = vmatprep.subr.mxu0 0.0
    %2975 = vmatpush2.msra.mxu0 0.0
    %2976 = vmatprep.subr.mxu0 0.0
    %2977 = vmatpush2.msra.mxu0 0.0
    %2978 = vmatprep.subr.mxu0 0.0
    %2979 = vmatpush2.msra.mxu0 0.0
    %2980 = vmatprep.subr.mxu0 0.0
    %2981 = vmatpush2.msra.mxu0 0.0
    %2982 = vmatprep.subr.mxu0 0.0
    %2983 = vmatpush2.msra.mxu0 0.0
    %2984 = vmatprep.subr.mxu0 0.0
    %2985 = vmatpush2.msra.mxu0 0.0
    %2986 = vmatprep.subr.mxu0 0.0
    %2987 = vmatpush2.msra.mxu0 0.0
    %2988 = vmatprep.subr.mxu0 0.0
    %2989 = vmatpush2.msra.mxu0 0.0
    %2990 = vmatprep.subr.mxu0 0.0
    %2991 = vmatpush2.msra.mxu0 0.0
    %2992 = vmatprep.subr.mxu0 0.0
    %2993 = vmatpush2.msra.mxu0 0.0
    %2994 = vmatprep.subr.mxu0 0.0
    %2995 = vmatpush2.msra.mxu0 0.0
    %2996 = vmatprep.subr.mxu0 0.0
    %2997 = vmatpush2.msra.mxu0 0.0
    %2998 = vmatprep.subr.mxu0 0.0
    %2999 = vmatpush2.msra.mxu0 0.0
    %3000 = vmatprep.subr.mxu0 0.0
    %3001 = vmatpush2.msra.mxu0 0.0
    %3002 = vmatprep.mubr.f32.mxu0 0.0
    %3003 = vmatmul.mubr.f32.gmra.mxu0 %v2933
    %v3004 = vpop.f32.mrf.mxu0
    %v3005 = vadd.f32 0.0, %v3004
    %v3006 = vpop.f32.mrf.mxu0
    %3007 = vmatprep.mubr.f32.mxu0 0.0
    %3008 = vmatmul.mubr.f32.gmra.mxu0 %v2936
    %v3009 = vpop.f32.mrf.mxu0
    %v3010 = vadd.f32 0.0, %v3009
    %v3011 = vpop.f32.mrf.mxu0
    %3012 = vdwg.mxu0
    %v3014 = vsel %vm299, %v2929, 0
    %v3017 = vsel %vm299, %v3005, 0
    %v3020 = vsel %vm299, %v3010, 0
    %3022 = vmatprep.subr.mxu0 0.0
    %3023 = vmatpush1.xpose.msra.mxu0 0.0
    %3024 = vmatprep.subr.mxu0 0.0
    %3025 = vmatpush1.xpose.msra.mxu0 0.0
    %3026 = vmatprep.subr.mxu0 0.0
    %3027 = vmatpush1.xpose.msra.mxu0 0.0
    %3028 = vmatprep.subr.mxu0 0.0
    %3029 = vmatpush1.xpose.msra.mxu0 0.0
    %3030 = vmatprep.subr.mxu0 0.0
    %3031 = vmatpush1.xpose.msra.mxu0 0.0
    %3032 = vmatprep.subr.mxu0 0.0
    %3033 = vmatpush1.xpose.msra.mxu0 0.0
    %3034 = vmatprep.subr.mxu0 0.0
    %3035 = vmatpush1.xpose.msra.mxu0 0.0
    %3036 = vmatprep.subr.mxu0 0.0
    %3037 = vmatpush1.xpose.msra.mxu0 0.0
    %3038 = vmatprep.subr.mxu0 0.0
    %3039 = vmatpush1.xpose.msra.mxu0 0.0
    %3040 = vmatprep.subr.mxu0 0.0
    %3041 = vmatpush1.xpose.msra.mxu0 0.0
    %3042 = vmatprep.subr.mxu0 0.0
    %3043 = vmatpush1.xpose.msra.mxu0 0.0
    %3044 = vmatprep.subr.mxu0 0.0
    %3045 = vmatpush1.xpose.msra.mxu0 0.0
    %3046 = vmatprep.subr.mxu0 0.0
    %3047 = vmatpush1.xpose.msra.mxu0 0.0
    %3048 = vmatprep.subr.mxu0 0.0
    %3049 = vmatpush1.xpose.msra.mxu0 0.0
    %3050 = vmatprep.subr.mxu0 0.0
    %3051 = vmatpush1.xpose.msra.mxu0 %v3020
    %3052 = vmatprep.subr.mxu0 0.0
    %3053 = vmatpush1.xpose.msra.mxu0 %v3017
    %3054 = vmatprep.subr.mxu0 0.0
    %3055 = vmatpush2.xpose.msra.mxu0 0.0
    %3056 = vmatprep.subr.mxu0 0.0
    %3057 = vmatpush2.xpose.msra.mxu0 0.0
    %3058 = vmatprep.subr.mxu0 0.0
    %3059 = vmatpush2.xpose.msra.mxu0 0.0
    %3060 = vmatprep.subr.mxu0 0.0
    %3061 = vmatpush2.xpose.msra.mxu0 0.0
    %3062 = vmatprep.subr.mxu0 0.0
    %3063 = vmatpush2.xpose.msra.mxu0 0.0
    %3064 = vmatprep.subr.mxu0 0.0
    %3065 = vmatpush2.xpose.msra.mxu0 0.0
    %3066 = vmatprep.subr.mxu0 0.0
    %3067 = vmatpush2.xpose.msra.mxu0 0.0
    %3068 = vmatprep.subr.mxu0 0.0
    %3069 = vmatpush2.xpose.msra.mxu0 0.0
    %3070 = vmatprep.subr.mxu0 0.0
    %3071 = vmatpush2.xpose.msra.mxu0 0.0
    %3072 = vmatprep.subr.mxu0 0.0
    %3073 = vmatpush2.xpose.msra.mxu0 0.0
    %3074 = vmatprep.subr.mxu0 0.0
    %3075 = vmatpush2.xpose.msra.mxu0 0.0
    %3076 = vmatprep.subr.mxu0 0.0
    %3077 = vmatpush2.xpose.msra.mxu0 0.0
    %3078 = vmatprep.subr.mxu0 0.0
    %3079 = vmatpush2.xpose.msra.mxu0 0.0
    %3080 = vmatprep.subr.mxu0 0.0
    %3081 = vmatpush2.xpose.msra.mxu0 0.0
    %3082 = vmatprep.subr.mxu0 0.0
    %3083 = vmatpush2.xpose.msra.mxu0 0.0
    %3084 = vmatprep.subr.mxu0 0.0
    %3085 = vmatpush2.xpose.msra.mxu0 0.0
    %3086 = vmatprep.mubr.f32.mxu0 0.0
    %3087 = vmatmul.mubr.f32.gmra.mxu0 %v3014
    %v3088 = vpop.f32.mrf.mxu0
    %v3089 = vadd.f32 %v158, %v3088
    %v3090 = vpop.f32.mrf.mxu0
    %3091 = vdwg.mxu0
    %v3092 = vsel %vm969, %v3089, -inf
    %3093 = vmax.xlane.f32.xlu0 %v3092
    %v3094 = vpop.xlane.xlu0 %3093
    %v3095 = vsub.f32 %v3089, %v3094
    %v3096 = vmul.f32 %v3095, 1.442695
    %v3097 = vpow.pop %v3096
    %v3098 = vsel %vm969, %v3097, 0.0
    %3099 = vadd.xlane.f32.xlu0 %v3098
    %v3100 = vpop.xlane.xlu0 %3099
    %v3101 = vrcp.pop %v3100
    %v3102 = vmul.f32 %v3097, %v3101
    %3103 = vrot.lane.b32.xlu0 %v3005, 96
    %v3104 = vpop.permute.xlu0 %3103
    %3105 = vrot.lane.b32.xlu0 %v3010, 96
    %v3106 = vpop.permute.xlu0 %3105
    %v3110 = vsel %vm969, %v3102, 0
    %3112 = vmatprep.subr.mxu0 0.0
    %3113 = vmatpush1.msra.mxu0 0.0
    %3114 = vmatprep.subr.mxu0 0.0
    %3115 = vmatpush1.msra.mxu0 0.0
    %3116 = vmatprep.subr.mxu0 0.0
    %3117 = vmatpush1.msra.mxu0 0.0
    %3118 = vmatprep.subr.mxu0 0.0
    %3119 = vmatpush1.msra.mxu0 0.0
    %3120 = vmatprep.subr.mxu0 0.0
    %3121 = vmatpush1.msra.mxu0 0.0
    %3122 = vmatprep.subr.mxu0 0.0
    %3123 = vmatpush1.msra.mxu0 0.0
    %3124 = vmatprep.subr.mxu0 0.0
    %3125 = vmatpush1.msra.mxu0 0.0
    %3126 = vmatprep.subr.mxu0 0.0
    %3127 = vmatpush1.msra.mxu0 0.0
    %3128 = vmatprep.subr.mxu0 0.0
    %3129 = vmatpush1.msra.mxu0 0.0
    %3130 = vmatprep.subr.mxu0 0.0
    %3131 = vmatpush1.msra.mxu0 0.0
    %3132 = vmatprep.subr.mxu0 0.0
    %3133 = vmatpush1.msra.mxu0 0.0
    %3134 = vmatprep.subr.mxu0 0.0
    %3135 = vmatpush1.msra.mxu0 0.0
    %3136 = vmatprep.subr.mxu0 0.0
    %3137 = vmatpush1.msra.mxu0 0.0
    %3138 = vmatprep.subr.mxu0 0.0
    %3139 = vmatpush1.msra.mxu0 0.0
    %3140 = vmatprep.subr.mxu0 0.0
    %3141 = vmatpush1.msra.mxu0 %v3106
    %3142 = vmatprep.subr.mxu0 0.0
    %3143 = vmatpush1.msra.mxu0 %v3104
    %3144 = vmatprep.subr.mxu0 0.0
    %3145 = vmatpush2.msra.mxu0 0.0
    %3146 = vmatprep.subr.mxu0 0.0
    %3147 = vmatpush2.msra.mxu0 0.0
    %3148 = vmatprep.subr.mxu0 0.0
    %3149 = vmatpush2.msra.mxu0 0.0
    %3150 = vmatprep.subr.mxu0 0.0
    %3151 = vmatpush2.msra.mxu0 0.0
    %3152 = vmatprep.subr.mxu0 0.0
    %3153 = vmatpush2.msra.mxu0 0.0
    %3154 = vmatprep.subr.mxu0 0.0
    %3155 = vmatpush2.msra.mxu0 0.0
    %3156 = vmatprep.subr.mxu0 0.0
    %3157 = vmatpush2.msra.mxu0 0.0
    %3158 = vmatprep.subr.mxu0 0.0
    %3159 = vmatpush2.msra.mxu0 0.0
    %3160 = vmatprep.subr.mxu0 0.0
    %3161 = vmatpush2.msra.mxu0 0.0
    %3162 = vmatprep.subr.mxu0 0.0
    %3163 = vmatpush2.msra.mxu0 0.0
    %3164 = vmatprep.subr.mxu0 0.0
    %3165 = vmatpush2.msra.mxu0 0.0
    %3166 = vmatprep.subr.mxu0 0.0
    %3167 = vmatpush2.msra.mxu0 0.0
    %3168 = vmatprep.subr.mxu0 0.0
    %3169 = vmatpush2.msra.mxu0 0.0
    %3170 = vmatprep.subr.mxu0 0.0
    %3171 = vmatpush2.msra.mxu0 0.0
    %3172 = vmatprep.subr.mxu0 0.0
    %3173 = vmatpush2.msra.mxu0 0.0
    %3174 = vmatprep.subr.mxu0 0.0
    %3175 = vmatpush2.msra.mxu0 0.0
    %3176 = vmatprep.mubr.f32.mxu0 0.0
    %3177 = vmatmul.mubr.f32.gmra.mxu0 %v3110
    %v3178 = vpop.f32.mrf.mxu0
    %v3179 = vadd.f32 0.0, %v3178
    %v3180 = vpop.f32.mrf.mxu0
    %3181 = vdwg.mxu0
    %3182 = vrot.lane.b32.xlu0 %v2929, 120
    %v3183 = vpop.permute.xlu0 %3182
    %3184 = vrot.lane.b32.xlu0 %v3005, 120
    %v3185 = vpop.permute.xlu0 %3184
    %3186 = vrot.lane.b32.xlu0 %v3010, 120
    %v3187 = vpop.permute.xlu0 %3186
    %v3188 = vsel %vm299, %v3183, 0
    %v3190 = vsel %vm299, %v3185, 0
    %v3192 = vsel %vm299, %v3187, 0
    %3194 = vmatprep.subr.mxu0 0.0
    %3195 = vmatpush1.xpose.msra.mxu0 0.0
    %3196 = vmatprep.subr.mxu0 0.0
    %3197 = vmatpush1.xpose.msra.mxu0 0.0
    %3198 = vmatprep.subr.mxu0 0.0
    %3199 = vmatpush1.xpose.msra.mxu0 0.0
    %3200 = vmatprep.subr.mxu0 0.0
    %3201 = vmatpush1.xpose.msra.mxu0 0.0
    %3202 = vmatprep.subr.mxu0 0.0
    %3203 = vmatpush1.xpose.msra.mxu0 0.0
    %3204 = vmatprep.subr.mxu0 0.0
    %3205 = vmatpush1.xpose.msra.mxu0 0.0
    %3206 = vmatprep.subr.mxu0 0.0
    %3207 = vmatpush1.xpose.msra.mxu0 0.0
    %3208 = vmatprep.subr.mxu0 0.0
    %3209 = vmatpush1.xpose.msra.mxu0 0.0
    %3210 = vmatprep.subr.mxu0 0.0
    %3211 = vmatpush1.xpose.msra.mxu0 0.0
    %3212 = vmatprep.subr.mxu0 0.0
    %3213 = vmatpush1.xpose.msra.mxu0 0.0
    %3214 = vmatprep.subr.mxu0 0.0
    %3215 = vmatpush1.xpose.msra.mxu0 0.0
    %3216 = vmatprep.subr.mxu0 0.0
    %3217 = vmatpush1.xpose.msra.mxu0 0.0
    %3218 = vmatprep.subr.mxu0 0.0
    %3219 = vmatpush1.xpose.msra.mxu0 0.0
    %3220 = vmatprep.subr.mxu0 0.0
    %3221 = vmatpush1.xpose.msra.mxu0 0.0
    %3222 = vmatprep.subr.mxu0 0.0
    %3223 = vmatpush1.xpose.msra.mxu0 %v3192
    %3224 = vmatprep.subr.mxu0 0.0
    %3225 = vmatpush1.xpose.msra.mxu0 %v3190
    %3226 = vmatprep.subr.mxu0 0.0
    %3227 = vmatpush2.xpose.msra.mxu0 0.0
    %3228 = vmatprep.subr.mxu0 0.0
    %3229 = vmatpush2.xpose.msra.mxu0 0.0
    %3230 = vmatprep.subr.mxu0 0.0
    %3231 = vmatpush2.xpose.msra.mxu0 0.0
    %3232 = vmatprep.subr.mxu0 0.0
    %3233 = vmatpush2.xpose.msra.mxu0 0.0
    %3234 = vmatprep.subr.mxu0 0.0
    %3235 = vmatpush2.xpose.msra.mxu0 0.0
    %3236 = vmatprep.subr.mxu0 0.0
    %3237 = vmatpush2.xpose.msra.mxu0 0.0
    %3238 = vmatprep.subr.mxu0 0.0
    %3239 = vmatpush2.xpose.msra.mxu0 0.0
    %3240 = vmatprep.subr.mxu0 0.0
    %3241 = vmatpush2.xpose.msra.mxu0 0.0
    %3242 = vmatprep.subr.mxu0 0.0
    %3243 = vmatpush2.xpose.msra.mxu0 0.0
    %3244 = vmatprep.subr.mxu0 0.0
    %3245 = vmatpush2.xpose.msra.mxu0 0.0
    %3246 = vmatprep.subr.mxu0 0.0
    %3247 = vmatpush2.xpose.msra.mxu0 0.0
    %3248 = vmatprep.subr.mxu0 0.0
    %3249 = vmatpush2.xpose.msra.mxu0 0.0
    %3250 = vmatprep.subr.mxu0 0.0
    %3251 = vmatpush2.xpose.msra.mxu0 0.0
    %3252 = vmatprep.subr.mxu0 0.0
    %3253 = vmatpush2.xpose.msra.mxu0 0.0
    %3254 = vmatprep.subr.mxu0 0.0
    %3255 = vmatpush2.xpose.msra.mxu0 0.0
    %3256 = vmatprep.subr.mxu0 0.0
    %3257 = vmatpush2.xpose.msra.mxu0 0.0
    %3258 = vmatprep.mubr.f32.mxu0 0.0
    %3259 = vmatmul.mubr.f32.gmra.mxu0 %v3188
    %v3260 = vpop.f32.mrf.mxu0
    %v3261 = vadd.f32 %v158, %v3260
    %v3262 = vpop.f32.mrf.mxu0
    %3263 = vdwg.mxu0
    %v3264 = vsel %vm969, %v3261, -inf
    %3265 = vmax.xlane.f32.xlu0 %v3264
    %v3266 = vpop.xlane.xlu0 %3265
    %v3267 = vsub.f32 %v3261, %v3266
    %v3268 = vmul.f32 %v3267, 1.442695
    %v3269 = vpow.pop %v3268
    %v3270 = vsel %vm969, %v3269, 0.0
    %3271 = vadd.xlane.f32.xlu0 %v3270
    %v3272 = vpop.xlane.xlu0 %3271
    %v3273 = vrcp.pop %v3272
    %v3274 = vmul.f32 %v3269, %v3273
    %3275 = vrot.lane.b32.xlu0 %v3005, 88
    %v3276 = vpop.permute.xlu0 %3275
    %3277 = vrot.lane.b32.xlu0 %v3010, 88
    %v3278 = vpop.permute.xlu0 %3277
    %v3282 = vsel %vm969, %v3274, 0
    %3284 = vmatprep.subr.mxu0 0.0
    %3285 = vmatpush1.msra.mxu0 0.0
    %3286 = vmatprep.subr.mxu0 0.0
    %3287 = vmatpush1.msra.mxu0 0.0
    %3288 = vmatprep.subr.mxu0 0.0
    %3289 = vmatpush1.msra.mxu0 0.0
    %3290 = vmatprep.subr.mxu0 0.0
    %3291 = vmatpush1.msra.mxu0 0.0
    %3292 = vmatprep.subr.mxu0 0.0
    %3293 = vmatpush1.msra.mxu0 0.0
    %3294 = vmatprep.subr.mxu0 0.0
    %3295 = vmatpush1.msra.mxu0 0.0
    %3296 = vmatprep.subr.mxu0 0.0
    %3297 = vmatpush1.msra.mxu0 0.0
    %3298 = vmatprep.subr.mxu0 0.0
    %3299 = vmatpush1.msra.mxu0 0.0
    %3300 = vmatprep.subr.mxu0 0.0
    %3301 = vmatpush1.msra.mxu0 0.0
    %3302 = vmatprep.subr.mxu0 0.0
    %3303 = vmatpush1.msra.mxu0 0.0
    %3304 = vmatprep.subr.mxu0 0.0
    %3305 = vmatpush1.msra.mxu0 0.0
    %3306 = vmatprep.subr.mxu0 0.0
    %3307 = vmatpush1.msra.mxu0 0.0
    %3308 = vmatprep.subr.mxu0 0.0
    %3309 = vmatpush1.msra.mxu0 0.0
    %3310 = vmatprep.subr.mxu0 0.0
    %3311 = vmatpush1.msra.mxu0 0.0
    %3312 = vmatprep.subr.mxu0 0.0
    %3313 = vmatpush1.msra.mxu0 %v3278
    %3314 = vmatprep.subr.mxu0 0.0
    %3315 = vmatpush1.msra.mxu0 %v3276
    %3316 = vmatprep.subr.mxu0 0.0
    %3317 = vmatpush2.msra.mxu0 0.0
    %3318 = vmatprep.subr.mxu0 0.0
    %3319 = vmatpush2.msra.mxu0 0.0
    %3320 = vmatprep.subr.mxu0 0.0
    %3321 = vmatpush2.msra.mxu0 0.0
    %3322 = vmatprep.subr.mxu0 0.0
    %3323 = vmatpush2.msra.mxu0 0.0
    %3324 = vmatprep.subr.mxu0 0.0
    %3325 = vmatpush2.msra.mxu0 0.0
    %3326 = vmatprep.subr.mxu0 0.0
    %3327 = vmatpush2.msra.mxu0 0.0
    %3328 = vmatprep.subr.mxu0 0.0
    %3329 = vmatpush2.msra.mxu0 0.0
    %3330 = vmatprep.subr.mxu0 0.0
    %3331 = vmatpush2.msra.mxu0 0.0
    %3332 = vmatprep.subr.mxu0 0.0
    %3333 = vmatpush2.msra.mxu0 0.0
    %3334 = vmatprep.subr.mxu0 0.0
    %3335 = vmatpush2.msra.mxu0 0.0
    %3336 = vmatprep.subr.mxu0 0.0
    %3337 = vmatpush2.msra.mxu0 0.0
    %3338 = vmatprep.subr.mxu0 0.0
    %3339 = vmatpush2.msra.mxu0 0.0
    %3340 = vmatprep.subr.mxu0 0.0
    %3341 = vmatpush2.msra.mxu0 0.0
    %3342 = vmatprep.subr.mxu0 0.0
    %3343 = vmatpush2.msra.mxu0 0.0
    %3344 = vmatprep.subr.mxu0 0.0
    %3345 = vmatpush2.msra.mxu0 0.0
    %3346 = vmatprep.subr.mxu0 0.0
    %3347 = vmatpush2.msra.mxu0 0.0
    %3348 = vmatprep.mubr.f32.mxu0 0.0
    %3349 = vmatmul.mubr.f32.gmra.mxu0 %v3282
    %v3350 = vpop.f32.mrf.mxu0
    %v3351 = vadd.f32 0.0, %v3350
    %v3352 = vpop.f32.mrf.mxu0
    %3353 = vdwg.mxu0
    %3354 = vrot.lane.b32.xlu0 %v2929, 112
    %v3355 = vpop.permute.xlu0 %3354
    %3356 = vrot.lane.b32.xlu0 %v3005, 112
    %v3357 = vpop.permute.xlu0 %3356
    %3358 = vrot.lane.b32.xlu0 %v3010, 112
    %v3359 = vpop.permute.xlu0 %3358
    %v3360 = vsel %vm299, %v3355, 0
    %v3362 = vsel %vm299, %v3357, 0
    %v3364 = vsel %vm299, %v3359, 0
    %3366 = vmatprep.subr.mxu0 0.0
    %3367 = vmatpush1.xpose.msra.mxu0 0.0
    %3368 = vmatprep.subr.mxu0 0.0
    %3369 = vmatpush1.xpose.msra.mxu0 0.0
    %3370 = vmatprep.subr.mxu0 0.0
    %3371 = vmatpush1.xpose.msra.mxu0 0.0
    %3372 = vmatprep.subr.mxu0 0.0
    %3373 = vmatpush1.xpose.msra.mxu0 0.0
    %3374 = vmatprep.subr.mxu0 0.0
    %3375 = vmatpush1.xpose.msra.mxu0 0.0
    %3376 = vmatprep.subr.mxu0 0.0
    %3377 = vmatpush1.xpose.msra.mxu0 0.0
    %3378 = vmatprep.subr.mxu0 0.0
    %3379 = vmatpush1.xpose.msra.mxu0 0.0
    %3380 = vmatprep.subr.mxu0 0.0
    %3381 = vmatpush1.xpose.msra.mxu0 0.0
    %3382 = vmatprep.subr.mxu0 0.0
    %3383 = vmatpush1.xpose.msra.mxu0 0.0
    %3384 = vmatprep.subr.mxu0 0.0
    %3385 = vmatpush1.xpose.msra.mxu0 0.0
    %3386 = vmatprep.subr.mxu0 0.0
    %3387 = vmatpush1.xpose.msra.mxu0 0.0
    %3388 = vmatprep.subr.mxu0 0.0
    %3389 = vmatpush1.xpose.msra.mxu0 0.0
    %3390 = vmatprep.subr.mxu0 0.0
    %3391 = vmatpush1.xpose.msra.mxu0 0.0
    %3392 = vmatprep.subr.mxu0 0.0
    %3393 = vmatpush1.xpose.msra.mxu0 0.0
    %3394 = vmatprep.subr.mxu0 0.0
    %3395 = vmatpush1.xpose.msra.mxu0 %v3364
    %3396 = vmatprep.subr.mxu0 0.0
    %3397 = vmatpush1.xpose.msra.mxu0 %v3362
    %3398 = vmatprep.subr.mxu0 0.0
    %3399 = vmatpush2.xpose.msra.mxu0 0.0
    %3400 = vmatprep.subr.mxu0 0.0
    %3401 = vmatpush2.xpose.msra.mxu0 0.0
    %3402 = vmatprep.subr.mxu0 0.0
    %3403 = vmatpush2.xpose.msra.mxu0 0.0
    %3404 = vmatprep.subr.mxu0 0.0
    %3405 = vmatpush2.xpose.msra.mxu0 0.0
    %3406 = vmatprep.subr.mxu0 0.0
    %3407 = vmatpush2.xpose.msra.mxu0 0.0
    %3408 = vmatprep.subr.mxu0 0.0
    %3409 = vmatpush2.xpose.msra.mxu0 0.0
    %3410 = vmatprep.subr.mxu0 0.0
    %3411 = vmatpush2.xpose.msra.mxu0 0.0
    %3412 = vmatprep.subr.mxu0 0.0
    %3413 = vmatpush2.xpose.msra.mxu0 0.0
    %3414 = vmatprep.subr.mxu0 0.0
    %3415 = vmatpush2.xpose.msra.mxu0 0.0
    %3416 = vmatprep.subr.mxu0 0.0
    %3417 = vmatpush2.xpose.msra.mxu0 0.0
    %3418 = vmatprep.subr.mxu0 0.0
    %3419 = vmatpush2.xpose.msra.mxu0 0.0
    %3420 = vmatprep.subr.mxu0 0.0
    %3421 = vmatpush2.xpose.msra.mxu0 0.0
    %3422 = vmatprep.subr.mxu0 0.0
    %3423 = vmatpush2.xpose.msra.mxu0 0.0
    %3424 = vmatprep.subr.mxu0 0.0
    %3425 = vmatpush2.xpose.msra.mxu0 0.0
    %3426 = vmatprep.subr.mxu0 0.0
    %3427 = vmatpush2.xpose.msra.mxu0 0.0
    %3428 = vmatprep.subr.mxu0 0.0
    %3429 = vmatpush2.xpose.msra.mxu0 0.0
    %3430 = vmatprep.mubr.f32.mxu0 0.0
    %3431 = vmatmul.mubr.f32.gmra.mxu0 %v3360
    %v3432 = vpop.f32.mrf.mxu0
    %v3433 = vadd.f32 %v158, %v3432
    %v3434 = vpop.f32.mrf.mxu0
    %3435 = vdwg.mxu0
    %v3436 = vsel %vm969, %v3433, -inf
    %3437 = vmax.xlane.f32.xlu0 %v3436
    %v3438 = vpop.xlane.xlu0 %3437
    %v3439 = vsub.f32 %v3433, %v3438
    %v3440 = vmul.f32 %v3439, 1.442695
    %v3441 = vpow.pop %v3440
    %v3442 = vsel %vm969, %v3441, 0.0
    %3443 = vadd.xlane.f32.xlu0 %v3442
    %v3444 = vpop.xlane.xlu0 %3443
    %v3445 = vrcp.pop %v3444
    %v3446 = vmul.f32 %v3441, %v3445
    %3447 = vrot.lane.b32.xlu0 %v3005, 80
    %v3448 = vpop.permute.xlu0 %3447
    %3449 = vrot.lane.b32.xlu0 %v3010, 80
    %v3450 = vpop.permute.xlu0 %3449
    %v3454 = vsel %vm969, %v3446, 0
    %3456 = vmatprep.subr.mxu0 0.0
    %3457 = vmatpush1.msra.mxu0 0.0
    %3458 = vmatprep.subr.mxu0 0.0
    %3459 = vmatpush1.msra.mxu0 0.0
    %3460 = vmatprep.subr.mxu0 0.0
    %3461 = vmatpush1.msra.mxu0 0.0
    %3462 = vmatprep.subr.mxu0 0.0
    %3463 = vmatpush1.msra.mxu0 0.0
    %3464 = vmatprep.subr.mxu0 0.0
    %3465 = vmatpush1.msra.mxu0 0.0
    %3466 = vmatprep.subr.mxu0 0.0
    %3467 = vmatpush1.msra.mxu0 0.0
    %3468 = vmatprep.subr.mxu0 0.0
    %3469 = vmatpush1.msra.mxu0 0.0
    %3470 = vmatprep.subr.mxu0 0.0
    %3471 = vmatpush1.msra.mxu0 0.0
    %3472 = vmatprep.subr.mxu0 0.0
    %3473 = vmatpush1.msra.mxu0 0.0
    %3474 = vmatprep.subr.mxu0 0.0
    %3475 = vmatpush1.msra.mxu0 0.0
    %3476 = vmatprep.subr.mxu0 0.0
    %3477 = vmatpush1.msra.mxu0 0.0
    %3478 = vmatprep.subr.mxu0 0.0
    %3479 = vmatpush1.msra.mxu0 0.0
    %3480 = vmatprep.subr.mxu0 0.0
    %3481 = vmatpush1.msra.mxu0 0.0
    %3482 = vmatprep.subr.mxu0 0.0
    %3483 = vmatpush1.msra.mxu0 0.0
    %3484 = vmatprep.subr.mxu0 0.0
    %3485 = vmatpush1.msra.mxu0 %v3450
    %3486 = vmatprep.subr.mxu0 0.0
    %3487 = vmatpush1.msra.mxu0 %v3448
    %3488 = vmatprep.subr.mxu0 0.0
    %3489 = vmatpush2.msra.mxu0 0.0
    %3490 = vmatprep.subr.mxu0 0.0
    %3491 = vmatpush2.msra.mxu0 0.0
    %3492 = vmatprep.subr.mxu0 0.0
    %3493 = vmatpush2.msra.mxu0 0.0
    %3494 = vmatprep.subr.mxu0 0.0
    %3495 = vmatpush2.msra.mxu0 0.0
    %3496 = vmatprep.subr.mxu0 0.0
    %3497 = vmatpush2.msra.mxu0 0.0
    %3498 = vmatprep.subr.mxu0 0.0
    %3499 = vmatpush2.msra.mxu0 0.0
    %3500 = vmatprep.subr.mxu0 0.0
    %3501 = vmatpush2.msra.mxu0 0.0
    %3502 = vmatprep.subr.mxu0 0.0
    %3503 = vmatpush2.msra.mxu0 0.0
    %3504 = vmatprep.subr.mxu0 0.0
    %3505 = vmatpush2.msra.mxu0 0.0
    %3506 = vmatprep.subr.mxu0 0.0
    %3507 = vmatpush2.msra.mxu0 0.0
    %3508 = vmatprep.subr.mxu0 0.0
    %3509 = vmatpush2.msra.mxu0 0.0
    %3510 = vmatprep.subr.mxu0 0.0
    %3511 = vmatpush2.msra.mxu0 0.0
    %3512 = vmatprep.subr.mxu0 0.0
    %3513 = vmatpush2.msra.mxu0 0.0
    %3514 = vmatprep.subr.mxu0 0.0
    %3515 = vmatpush2.msra.mxu0 0.0
    %3516 = vmatprep.subr.mxu0 0.0
    %3517 = vmatpush2.msra.mxu0 0.0
    %3518 = vmatprep.subr.mxu0 0.0
    %3519 = vmatpush2.msra.mxu0 0.0
    %3520 = vmatprep.mubr.f32.mxu0 0.0
    %3521 = vmatmul.mubr.f32.gmra.mxu0 %v3454
    %v3522 = vpop.f32.mrf.mxu0
    %v3523 = vadd.f32 0.0, %v3522
    %v3524 = vpop.f32.mrf.mxu0
    %3525 = vdwg.mxu0
    %3526 = vrot.lane.b32.xlu0 %v2929, 104
    %v3527 = vpop.permute.xlu0 %3526
    %3528 = vrot.lane.b32.xlu0 %v3005, 104
    %v3529 = vpop.permute.xlu0 %3528
    %3530 = vrot.lane.b32.xlu0 %v3010, 104
    %v3531 = vpop.permute.xlu0 %3530
    %v3532 = vsel %vm299, %v3527, 0
    %v3534 = vsel %vm299, %v3529, 0
    %v3536 = vsel %vm299, %v3531, 0
    %3538 = vmatprep.subr.mxu0 0.0
    %3539 = vmatpush1.xpose.msra.mxu0 0.0
    %3540 = vmatprep.subr.mxu0 0.0
    %3541 = vmatpush1.xpose.msra.mxu0 0.0
    %3542 = vmatprep.subr.mxu0 0.0
    %3543 = vmatpush1.xpose.msra.mxu0 0.0
    %3544 = vmatprep.subr.mxu0 0.0
    %3545 = vmatpush1.xpose.msra.mxu0 0.0
    %3546 = vmatprep.subr.mxu0 0.0
    %3547 = vmatpush1.xpose.msra.mxu0 0.0
    %3548 = vmatprep.subr.mxu0 0.0
    %3549 = vmatpush1.xpose.msra.mxu0 0.0
    %3550 = vmatprep.subr.mxu0 0.0
    %3551 = vmatpush1.xpose.msra.mxu0 0.0
    %3552 = vmatprep.subr.mxu0 0.0
    %3553 = vmatpush1.xpose.msra.mxu0 0.0
    %3554 = vmatprep.subr.mxu0 0.0
    %3555 = vmatpush1.xpose.msra.mxu0 0.0
    %3556 = vmatprep.subr.mxu0 0.0
    %3557 = vmatpush1.xpose.msra.mxu0 0.0
    %3558 = vmatprep.subr.mxu0 0.0
    %3559 = vmatpush1.xpose.msra.mxu0 0.0
    %3560 = vmatprep.subr.mxu0 0.0
    %3561 = vmatpush1.xpose.msra.mxu0 0.0
    %3562 = vmatprep.subr.mxu0 0.0
    %3563 = vmatpush1.xpose.msra.mxu0 0.0
    %3564 = vmatprep.subr.mxu0 0.0
    %3565 = vmatpush1.xpose.msra.mxu0 0.0
    %3566 = vmatprep.subr.mxu0 0.0
    %3567 = vmatpush1.xpose.msra.mxu0 %v3536
    %3568 = vmatprep.subr.mxu0 0.0
    %3569 = vmatpush1.xpose.msra.mxu0 %v3534
    %3570 = vmatprep.subr.mxu0 0.0
    %3571 = vmatpush2.xpose.msra.mxu0 0.0
    %3572 = vmatprep.subr.mxu0 0.0
    %3573 = vmatpush2.xpose.msra.mxu0 0.0
    %3574 = vmatprep.subr.mxu0 0.0
    %3575 = vmatpush2.xpose.msra.mxu0 0.0
    %3576 = vmatprep.subr.mxu0 0.0
    %3577 = vmatpush2.xpose.msra.mxu0 0.0
    %3578 = vmatprep.subr.mxu0 0.0
    %3579 = vmatpush2.xpose.msra.mxu0 0.0
    %3580 = vmatprep.subr.mxu0 0.0
    %3581 = vmatpush2.xpose.msra.mxu0 0.0
    %3582 = vmatprep.subr.mxu0 0.0
    %3583 = vmatpush2.xpose.msra.mxu0 0.0
    %3584 = vmatprep.subr.mxu0 0.0
    %3585 = vmatpush2.xpose.msra.mxu0 0.0
    %3586 = vmatprep.subr.mxu0 0.0
    %3587 = vmatpush2.xpose.msra.mxu0 0.0
    %3588 = vmatprep.subr.mxu0 0.0
    %3589 = vmatpush2.xpose.msra.mxu0 0.0
    %3590 = vmatprep.subr.mxu0 0.0
    %3591 = vmatpush2.xpose.msra.mxu0 0.0
    %3592 = vmatprep.subr.mxu0 0.0
    %3593 = vmatpush2.xpose.msra.mxu0 0.0
    %3594 = vmatprep.subr.mxu0 0.0
    %3595 = vmatpush2.xpose.msra.mxu0 0.0
    %3596 = vmatprep.subr.mxu0 0.0
    %3597 = vmatpush2.xpose.msra.mxu0 0.0
    %3598 = vmatprep.subr.mxu0 0.0
    %3599 = vmatpush2.xpose.msra.mxu0 0.0
    %3600 = vmatprep.subr.mxu0 0.0
    %3601 = vmatpush2.xpose.msra.mxu0 0.0
    %3602 = vmatprep.mubr.f32.mxu0 0.0
    %3603 = vmatmul.mubr.f32.gmra.mxu0 %v3532
    %v3604 = vpop.f32.mrf.mxu0
    %v3605 = vadd.f32 %v158, %v3604
    %v3606 = vpop.f32.mrf.mxu0
    %3607 = vdwg.mxu0
    %v3608 = vsel %vm969, %v3605, -inf
    %3609 = vmax.xlane.f32.xlu0 %v3608
    %v3610 = vpop.xlane.xlu0 %3609
    %v3611 = vsub.f32 %v3605, %v3610
    %v3612 = vmul.f32 %v3611, 1.442695
    %v3613 = vpow.pop %v3612
    %v3614 = vsel %vm969, %v3613, 0.0
    %3615 = vadd.xlane.f32.xlu0 %v3614
    %v3616 = vpop.xlane.xlu0 %3615
    %v3617 = vrcp.pop %v3616
    %v3618 = vmul.f32 %v3613, %v3617
    %3619 = vrot.lane.b32.xlu0 %v3005, 72
    %v3620 = vpop.permute.xlu0 %3619
    %3621 = vrot.lane.b32.xlu0 %v3010, 72
    %v3622 = vpop.permute.xlu0 %3621
    %v3626 = vsel %vm969, %v3618, 0
    %3628 = vmatprep.subr.mxu0 0.0
    %3629 = vmatpush1.msra.mxu0 0.0
    %3630 = vmatprep.subr.mxu0 0.0
    %3631 = vmatpush1.msra.mxu0 0.0
    %3632 = vmatprep.subr.mxu0 0.0
    %3633 = vmatpush1.msra.mxu0 0.0
    %3634 = vmatprep.subr.mxu0 0.0
    %3635 = vmatpush1.msra.mxu0 0.0
    %3636 = vmatprep.subr.mxu0 0.0
    %3637 = vmatpush1.msra.mxu0 0.0
    %3638 = vmatprep.subr.mxu0 0.0
    %3639 = vmatpush1.msra.mxu0 0.0
    %3640 = vmatprep.subr.mxu0 0.0
    %3641 = vmatpush1.msra.mxu0 0.0
    %3642 = vmatprep.subr.mxu0 0.0
    %3643 = vmatpush1.msra.mxu0 0.0
    %3644 = vmatprep.subr.mxu0 0.0
    %3645 = vmatpush1.msra.mxu0 0.0
    %3646 = vmatprep.subr.mxu0 0.0
    %3647 = vmatpush1.msra.mxu0 0.0
    %3648 = vmatprep.subr.mxu0 0.0
    %3649 = vmatpush1.msra.mxu0 0.0
    %3650 = vmatprep.subr.mxu0 0.0
    %3651 = vmatpush1.msra.mxu0 0.0
    %3652 = vmatprep.subr.mxu0 0.0
    %3653 = vmatpush1.msra.mxu0 0.0
    %3654 = vmatprep.subr.mxu0 0.0
    %3655 = vmatpush1.msra.mxu0 0.0
    %3656 = vmatprep.subr.mxu0 0.0
    %3657 = vmatpush1.msra.mxu0 %v3622
    %3658 = vmatprep.subr.mxu0 0.0
    %3659 = vmatpush1.msra.mxu0 %v3620
    %3660 = vmatprep.subr.mxu0 0.0
    %3661 = vmatpush2.msra.mxu0 0.0
    %3662 = vmatprep.subr.mxu0 0.0
    %3663 = vmatpush2.msra.mxu0 0.0
    %3664 = vmatprep.subr.mxu0 0.0
    %3665 = vmatpush2.msra.mxu0 0.0
    %3666 = vmatprep.subr.mxu0 0.0
    %3667 = vmatpush2.msra.mxu0 0.0
    %3668 = vmatprep.subr.mxu0 0.0
    %3669 = vmatpush2.msra.mxu0 0.0
    %3670 = vmatprep.subr.mxu0 0.0
    %3671 = vmatpush2.msra.mxu0 0.0
    %3672 = vmatprep.subr.mxu0 0.0
    %3673 = vmatpush2.msra.mxu0 0.0
    %3674 = vmatprep.subr.mxu0 0.0
    %3675 = vmatpush2.msra.mxu0 0.0
    %3676 = vmatprep.subr.mxu0 0.0
    %3677 = vmatpush2.msra.mxu0 0.0
    %3678 = vmatprep.subr.mxu0 0.0
    %3679 = vmatpush2.msra.mxu0 0.0
    %3680 = vmatprep.subr.mxu0 0.0
    %3681 = vmatpush2.msra.mxu0 0.0
    %3682 = vmatprep.subr.mxu0 0.0
    %3683 = vmatpush2.msra.mxu0 0.0
    %3684 = vmatprep.subr.mxu0 0.0
    %3685 = vmatpush2.msra.mxu0 0.0
    %3686 = vmatprep.subr.mxu0 0.0
    %3687 = vmatpush2.msra.mxu0 0.0
    %3688 = vmatprep.subr.mxu0 0.0
    %3689 = vmatpush2.msra.mxu0 0.0
    %3690 = vmatprep.subr.mxu0 0.0
    %3691 = vmatpush2.msra.mxu0 0.0
    %3692 = vmatprep.mubr.f32.mxu0 0.0
    %3693 = vmatmul.mubr.f32.gmra.mxu0 %v3626
    %v3694 = vpop.f32.mrf.mxu0
    %v3695 = vadd.f32 0.0, %v3694
    %v3696 = vpop.f32.mrf.mxu0
    %3697 = vdwg.mxu0
    %3699 = vrot.lane.b32.xlu0 %v3351, 8
    %v3700 = vpop.permute.xlu0 %3699
    %3703 = vrot.lane.b32.xlu0 %v3523, 16
    %v3704 = vpop.permute.xlu0 %3703
    %3707 = vrot.lane.b32.xlu0 %v3695, 24
    %v3708 = vpop.permute.xlu0 %3707
    %v3710 = vsel %vm299, %v3179, %v3700
    %v3711 = vsel %vm969, %v3710, %v3704
    %v3712 = vsel %vm971, %v3711, %v3708
    %v3714 = vsel %vm160, %v3712, 0
    %3716 = vmatprep.subr.mxu0 0.0
    %3717 = vmatpush1.msra.mxu0 0.0
    %3718 = vmatprep.subr.mxu0 0.0
    %3719 = vmatpush1.msra.mxu0 0.0
    %3720 = vmatprep.subr.mxu0 0.0
    %3721 = vmatpush1.msra.mxu0 0.0
    %3722 = vmatprep.subr.mxu0 0.0
    %3723 = vmatpush1.msra.mxu0 0.0
    %3724 = vmatprep.subr.mxu0 0.0
    %3725 = vmatpush1.msra.mxu0 0.0
    %3726 = vmatprep.subr.mxu0 0.0
    %3727 = vmatpush1.msra.mxu0 0.0
    %3728 = vmatprep.subr.mxu0 0.0
    %3729 = vmatpush1.msra.mxu0 0.0
    %3730 = vmatprep.subr.mxu0 0.0
    %3731 = vmatpush1.msra.mxu0 0.0
    %3732 = vmatprep.subr.mxu0 0.0
    %3733 = vmatpush1.msra.mxu0 0.0
    %3734 = vmatprep.subr.mxu0 0.0
    %3735 = vmatpush1.msra.mxu0 0.0
    %3736 = vmatprep.subr.mxu0 0.0
    %3737 = vmatpush1.msra.mxu0 0.0
    %3738 = vmatprep.subr.mxu0 0.0
    %3739 = vmatpush1.msra.mxu0 0.0
    %3740 = vmatprep.subr.mxu0 0.0
    %3741 = vmatpush1.msra.mxu0 %v2085
    %3742 = vmatprep.subr.mxu0 0.0
    %3743 = vmatpush1.msra.mxu0 %v2084
    %3744 = vmatprep.subr.mxu0 0.0
    %3745 = vmatpush1.msra.mxu0 %v2083
    %3746 = vmatprep.subr.mxu0 0.0
    %3747 = vmatpush1.msra.mxu0 %v2082
    %3748 = vmatprep.subr.mxu0 0.0
    %3749 = vmatpush2.msra.mxu0 0.0
    %3750 = vmatprep.subr.mxu0 0.0
    %3751 = vmatpush2.msra.mxu0 0.0
    %3752 = vmatprep.subr.mxu0 0.0
    %3753 = vmatpush2.msra.mxu0 0.0
    %3754 = vmatprep.subr.mxu0 0.0
    %3755 = vmatpush2.msra.mxu0 0.0
    %3756 = vmatprep.subr.mxu0 0.0
    %3757 = vmatpush2.msra.mxu0 0.0
    %3758 = vmatprep.subr.mxu0 0.0
    %3759 = vmatpush2.msra.mxu0 0.0
    %3760 = vmatprep.subr.mxu0 0.0
    %3761 = vmatpush2.msra.mxu0 0.0
    %3762 = vmatprep.subr.mxu0 0.0
    %3763 = vmatpush2.msra.mxu0 0.0
    %3764 = vmatprep.subr.mxu0 0.0
    %3765 = vmatpush2.msra.mxu0 0.0
    %3766 = vmatprep.subr.mxu0 0.0
    %3767 = vmatpush2.msra.mxu0 0.0
    %3768 = vmatprep.subr.mxu0 0.0
    %3769 = vmatpush2.msra.mxu0 0.0
    %3770 = vmatprep.subr.mxu0 0.0
    %3771 = vmatpush2.msra.mxu0 0.0
    %3772 = vmatprep.subr.mxu0 0.0
    %3773 = vmatpush2.msra.mxu0 0.0
    %3774 = vmatprep.subr.mxu0 0.0
    %3775 = vmatpush2.msra.mxu0 0.0
    %3776 = vmatprep.subr.mxu0 0.0
    %3777 = vmatpush2.msra.mxu0 0.0
    %3778 = vmatprep.subr.mxu0 0.0
    %3779 = vmatpush2.msra.mxu0 0.0
    %3780 = vmatprep.mubr.f32.mxu0 0.0
    %3781 = vmatmul.mubr.f32.gmra.mxu0 %v3714
    %v3782 = vpop.f32.mrf.mxu0
    %v3783 = vadd.f32 0.0, %v3782
    %v3784 = vpop.f32.mrf.mxu0
    %3785 = vdwg.mxu0
    %v3786 = vadd.f32 %v1866, %v2856
    %v3787 = vadd.f32 %v1867, %v3783
    %v3788 = vsel %vm160, %v3786, 0.0
    %3789 = vadd.xlane.f32.xlu0 %v3788
    %v3790 = vpop.xlane.xlu0 %3789
    %v3791 = vsel %vm160, %v3787, 0.0
    %3792 = vadd.xlane.f32.xlu0 %v3791
    %v3793 = vpop.xlane.xlu0 %3792
    %v3794 = vmul.f32 %v3790, %v167
    %v3795 = vmul.f32 %v3793, %v167
    %v3796 = vsub.f32 %v3786, %v3794
    %v3797 = vsub.f32 %v3787, %v3795
    %v3798 = vmul.f32 %v3796, %v3796
    %v3799 = vmul.f32 %v3797, %v3797
    %v3800 = vsel %vm160, %v3798, 0.0
    %3801 = vadd.xlane.f32.xlu0 %v3800
    %v3802 = vpop.xlane.xlu0 %3801
    %v3803 = vsel %vm160, %v3799, 0.0
    %3804 = vadd.xlane.f32.xlu0 %v3803
    %v3805 = vpop.xlane.xlu0 %3804
    %v3806 = vmul.f32 %v3802, %v180
    %v3807 = vmul.f32 %v3805, %v180
    %v3808 = vrsqrt.pop %v3806
    %v3809 = vmul.f32 %v3806, %v3808
    %vm3810 = vcmp.eq.f32.partialorder %v3806, inf
    %v3811 = vsel %vm3810, %v3806, %v3809
    %vm3812 = vcmp.eq.f32.partialorder %v3806, 0.0
    %v3813 = vand.u32 %v3806, 2147483648
    %v3814 = vsel %vm3812, %v3813, %v3811
    %v3815 = vrsqrt.pop %v3807
    %v3816 = vmul.f32 %v3807, %v3815
    %vm3817 = vcmp.eq.f32.partialorder %v3807, inf
    %v3818 = vsel %vm3817, %v3807, %v3816
    %vm3819 = vcmp.eq.f32.partialorder %v3807, 0.0
    %v3820 = vand.u32 %v3807, 2147483648
    %v3821 = vsel %vm3819, %v3820, %v3818
    %v3822 = vlaneseq
    %v3823 = vshrl.u32 %v3822, 7
    %v3824 = vsub.s32 4, %v3823
    %v3825 = vrot.slane %v159, %v3824
    %v3826 = vmul.f32 %v3825, %v3796
    %v3827 = vmul.f32 %v3825, %v3797
    %v3828 = vadd.f32 %v3814, 1e-06
    %v3829 = vadd.f32 %v3821, 1e-06
    %v3830 = vrcp.pop %v3828
    %v3831 = vmul.f32 %v3826, %v3830
    %v3832 = vrcp.pop %v3829
    %v3833 = vmul.f32 %v3827, %v3832
    %v3834 = vlaneseq
    %v3835 = vshrl.u32 %v3834, 7
    %v3836 = vsub.s32 5, %v3835
    %v3837 = vrot.slane %v159, %v3836
    %v3838 = vadd.f32 %v3831, %v3837
    %v3839 = vadd.f32 %v3833, %v3837
    %v3840 = vld [vmem:[#allocation14] sm:$0xff]
    %v3841 = vld [vmem:[#allocation14 + $0x8] sm:$0xff]
    %v3842 = vld [vmem:[#allocation14 + $0x10] sm:$0xff]
    %v3843 = vld [vmem:[#allocation14 + $0x18] sm:$0xff]
    %v3844 = vld [vmem:[%s11] sm:$0x1]
    %v3846 = vlaneseq
    %v3847 = vshrl.u32 %v3846, 7
    %v3848 = vsub.s32 0, %v3847
    %v3849 = vrot.slane %v3844, %v3848
    %v3852 = vsel %vm160, %v3838, 0
    %v3855 = vsel %vm160, %v3839, 0
    %3857 = vmatprep.subr.mxu0 0.0
    %3858 = vmatpush1.msra.mxu0 0.0
    %3859 = vmatprep.subr.mxu0 0.0
    %3860 = vmatpush1.msra.mxu0 0.0
    %3861 = vmatprep.subr.mxu0 0.0
    %3862 = vmatpush1.msra.mxu0 0.0
    %3863 = vmatprep.subr.mxu0 0.0
    %3864 = vmatpush1.msra.mxu0 0.0
    %3865 = vmatprep.subr.mxu0 0.0
    %3866 = vmatpush1.msra.mxu0 0.0
    %3867 = vmatprep.subr.mxu0 0.0
    %3868 = vmatpush1.msra.mxu0 0.0
    %3869 = vmatprep.subr.mxu0 0.0
    %3870 = vmatpush1.msra.mxu0 0.0
    %3871 = vmatprep.subr.mxu0 0.0
    %3872 = vmatpush1.msra.mxu0 0.0
    %3873 = vmatprep.subr.mxu0 0.0
    %3874 = vmatpush1.msra.mxu0 0.0
    %3875 = vmatprep.subr.mxu0 0.0
    %3876 = vmatpush1.msra.mxu0 0.0
    %3877 = vmatprep.subr.mxu0 0.0
    %3878 = vmatpush1.msra.mxu0 0.0
    %3879 = vmatprep.subr.mxu0 0.0
    %3880 = vmatpush1.msra.mxu0 0.0
    %3881 = vmatprep.subr.mxu0 0.0
    %3882 = vmatpush1.msra.mxu0 %v3843
    %3883 = vmatprep.subr.mxu0 0.0
    %3884 = vmatpush1.msra.mxu0 %v3842
    %3885 = vmatprep.subr.mxu0 0.0
    %3886 = vmatpush1.msra.mxu0 %v3841
    %3887 = vmatprep.subr.mxu0 0.0
    %3888 = vmatpush1.msra.mxu0 %v3840
    %3889 = vmatprep.subr.mxu0 0.0
    %3890 = vmatpush2.msra.mxu0 0.0
    %3891 = vmatprep.subr.mxu0 0.0
    %3892 = vmatpush2.msra.mxu0 0.0
    %3893 = vmatprep.subr.mxu0 0.0
    %3894 = vmatpush2.msra.mxu0 0.0
    %3895 = vmatprep.subr.mxu0 0.0
    %3896 = vmatpush2.msra.mxu0 0.0
    %3897 = vmatprep.subr.mxu0 0.0
    %3898 = vmatpush2.msra.mxu0 0.0
    %3899 = vmatprep.subr.mxu0 0.0
    %3900 = vmatpush2.msra.mxu0 0.0
    %3901 = vmatprep.subr.mxu0 0.0
    %3902 = vmatpush2.msra.mxu0 0.0
    %3903 = vmatprep.subr.mxu0 0.0
    %3904 = vmatpush2.msra.mxu0 0.0
    %3905 = vmatprep.subr.mxu0 0.0
    %3906 = vmatpush2.msra.mxu0 0.0
    %3907 = vmatprep.subr.mxu0 0.0
    %3908 = vmatpush2.msra.mxu0 0.0
    %3909 = vmatprep.subr.mxu0 0.0
    %3910 = vmatpush2.msra.mxu0 0.0
    %3911 = vmatprep.subr.mxu0 0.0
    %3912 = vmatpush2.msra.mxu0 0.0
    %3913 = vmatprep.subr.mxu0 0.0
    %3914 = vmatpush2.msra.mxu0 0.0
    %3915 = vmatprep.subr.mxu0 0.0
    %3916 = vmatpush2.msra.mxu0 0.0
    %3917 = vmatprep.subr.mxu0 0.0
    %3918 = vmatpush2.msra.mxu0 0.0
    %3919 = vmatprep.subr.mxu0 0.0
    %3920 = vmatpush2.msra.mxu0 0.0
    %3921 = vmatprep.mubr.f32.mxu0 0.0
    %3922 = vmatmul.mubr.f32.gmra.mxu0 %v3852
    %v3923 = vpop.f32.mrf.mxu0
    %v3924 = vadd.f32 %v3849, %v3923
    %v3925 = vpop.f32.mrf.mxu0
    %3926 = vmatprep.mubr.f32.mxu0 0.0
    %3927 = vmatmul.mubr.f32.gmra.mxu0 %v3855
    %v3928 = vpop.f32.mrf.mxu0
    %v3929 = vadd.f32 %v3849, %v3928
    %v3930 = vpop.f32.mrf.mxu0
    %3931 = vdwg.mxu0
    %v3932 = vmax.f32 %v3924, 0.0
    %v3933 = vmax.f32 %v3929, 0.0
    %v3934 = vld [vmem:[%s12] sm:$0xff]
    %v3935 = vld [vmem:[%s12 + $0x8] sm:$0xff]
    %v3936 = vld [vmem:[%s12 + $0x10] sm:$0xff]
    %v3937 = vld [vmem:[%s12 + $0x18] sm:$0xff]
    %v3938 = vld [vmem:[%s12 + $0x20] sm:$0xff]
    %v3939 = vld [vmem:[%s12 + $0x28] sm:$0xff]
    %v3940 = vld [vmem:[%s12 + $0x30] sm:$0xff]
    %v3941 = vld [vmem:[%s12 + $0x38] sm:$0xff]
    %vm3942 = vcmask 523264
    %v3944 = vsel %vm3942, %v3932, 0
    %v3947 = vsel %vm3942, %v3933, 0
    %3949 = vmatprep.subr.mxu0 0.0
    %3950 = vmatpush1.msra.mxu0 0.0
    %3951 = vmatprep.subr.mxu0 0.0
    %3952 = vmatpush1.msra.mxu0 0.0
    %3953 = vmatprep.subr.mxu0 0.0
    %3954 = vmatpush1.msra.mxu0 0.0
    %3955 = vmatprep.subr.mxu0 0.0
    %3956 = vmatpush1.msra.mxu0 0.0
    %3957 = vmatprep.subr.mxu0 0.0
    %3958 = vmatpush1.msra.mxu0 0.0
    %3959 = vmatprep.subr.mxu0 0.0
    %3960 = vmatpush1.msra.mxu0 0.0
    %3961 = vmatprep.subr.mxu0 0.0
    %3962 = vmatpush1.msra.mxu0 0.0
    %3963 = vmatprep.subr.mxu0 0.0
    %3964 = vmatpush1.msra.mxu0 0.0
    %3965 = vmatprep.subr.mxu0 0.0
    %3966 = vmatpush1.msra.mxu0 %v3941
    %3967 = vmatprep.subr.mxu0 0.0
    %3968 = vmatpush1.msra.mxu0 %v3940
    %3969 = vmatprep.subr.mxu0 0.0
    %3970 = vmatpush1.msra.mxu0 %v3939
    %3971 = vmatprep.subr.mxu0 0.0
    %3972 = vmatpush1.msra.mxu0 %v3938
    %3973 = vmatprep.subr.mxu0 0.0
    %3974 = vmatpush1.msra.mxu0 %v3937
    %3975 = vmatprep.subr.mxu0 0.0
    %3976 = vmatpush1.msra.mxu0 %v3936
    %3977 = vmatprep.subr.mxu0 0.0
    %3978 = vmatpush1.msra.mxu0 %v3935
    %3979 = vmatprep.subr.mxu0 0.0
    %3980 = vmatpush1.msra.mxu0 %v3934
    %3981 = vmatprep.subr.mxu0 0.0
    %3982 = vmatpush2.msra.mxu0 0.0
    %3983 = vmatprep.subr.mxu0 0.0
    %3984 = vmatpush2.msra.mxu0 0.0
    %3985 = vmatprep.subr.mxu0 0.0
    %3986 = vmatpush2.msra.mxu0 0.0
    %3987 = vmatprep.subr.mxu0 0.0
    %3988 = vmatpush2.msra.mxu0 0.0
    %3989 = vmatprep.subr.mxu0 0.0
    %3990 = vmatpush2.msra.mxu0 0.0
    %3991 = vmatprep.subr.mxu0 0.0
    %3992 = vmatpush2.msra.mxu0 0.0
    %3993 = vmatprep.subr.mxu0 0.0
    %3994 = vmatpush2.msra.mxu0 0.0
    %3995 = vmatprep.subr.mxu0 0.0
    %3996 = vmatpush2.msra.mxu0 0.0
    %3997 = vmatprep.subr.mxu0 0.0
    %3998 = vmatpush2.msra.mxu0 0.0
    %3999 = vmatprep.subr.mxu0 0.0
    %4000 = vmatpush2.msra.mxu0 0.0
    %4001 = vmatprep.subr.mxu0 0.0
    %4002 = vmatpush2.msra.mxu0 0.0
    %4003 = vmatprep.subr.mxu0 0.0
    %4004 = vmatpush2.msra.mxu0 0.0
    %4005 = vmatprep.subr.mxu0 0.0
    %4006 = vmatpush2.msra.mxu0 0.0
    %4007 = vmatprep.subr.mxu0 0.0
    %4008 = vmatpush2.msra.mxu0 0.0
    %4009 = vmatprep.subr.mxu0 0.0
    %4010 = vmatpush2.msra.mxu0 0.0
    %4011 = vmatprep.subr.mxu0 0.0
    %4012 = vmatpush2.msra.mxu0 0.0
    %4013 = vmatprep.mubr.f32.mxu0 0.0
    %4014 = vmatmul.mubr.f32.gmra.mxu0 %v3944
    %v4015 = vpop.f32.mrf.mxu0
    %v4016 = vadd.f32 0.0, %v4015
    %v4017 = vpop.f32.mrf.mxu0
    %4018 = vmatprep.mubr.f32.mxu0 0.0
    %4019 = vmatmul.mubr.f32.gmra.mxu0 %v3947
    %v4020 = vpop.f32.mrf.mxu0
    %v4021 = vadd.f32 0.0, %v4020
    %v4022 = vpop.f32.mrf.mxu0
    %4023 = vdwg.mxu0
    %v4024 = vadd.f32 %v3786, %v4016
    %v4025 = vadd.f32 %v3787, %v4021
    %v4026 = vld [vmem:[%s13] sm:$0x1]
    %v4028 = vlaneseq
    %v4029 = vshrl.u32 %v4028, 7
    %v4030 = vsub.s32 0, %v4029
    %v4031 = vrot.slane %v4026, %v4030
    %v4033 = vadd.f32 %v4024, %v4031
    %v4034 = vadd.f32 %v4025, %v4031
    %4035 = vst.msk [vmem:[#allocation16] sm:$0xff] %vm160, %v4033
    %4036 = vst.msk [vmem:[#allocation16 + $0x8] sm:$0xff] %vm160, %v4034
    // Predicated region
    $region90: #{tpu_custom_call.1} parent=1 // pred_check
      _
    $region91: #{tpu_custom_call.1} parent=1 // pred_check_branch
      %4038 = sbr.rel (0) target = $region93
    $region92: #{tpu_custom_call.1} parent=1 // pred_region
      %s4040 = ssub.s32 256, 256
      %4041 = vsyncadd [#allocation4], %s4040
      %s4042 = sshll.u32 [#allocation16], 4
      %s4043 = int_to_ptr.vmem [resolvable:$true] %s4042
      %4048 = dma.vmem_to_hbm [thread:$0]  %s4043, 256, %s14, [#allocation4], 128, 128, 8
    $region93: #{tpu_custom_call.1} parent=1 // pred_fallthru
      _
    // Predicated region
    $region94: #{tpu_custom_call.1} parent=1 // pred_check
      _
    $region95: #{tpu_custom_call.1} parent=1 // pred_check_branch
      %4050 = sbr.rel (0) target = $region97
    $region96: #{tpu_custom_call.1} parent=1 // pred_region
      %4051 = dma.done [#allocation4], 256
    $region97: #{tpu_custom_call.1} parent=1 // pred_fallthru
      _
    %4052 = vsyncpa [#allocation3], 1
    %4053 = vsyncpa [#allocation6], 1
    %4054 = vsyncpa [#allocation9], 1
    %4055 = vsyncpa [#allocation12], 1
    %4056 = vsyncpa [#allocation15], 1
    %4057 = vsyncpa [#allocation4], 1

</llo_original>
